<compile_context>
chip_gen: v7x
topology: tpu7x:2x2x1
jax: 0.10.0
libtpu: 0.0.40
codegen_flags: <defaults>
</compile_context>

<pallas_src>
import math
import functools

import jax
import jax.numpy as jnp
from jax import lax
from jax.experimental import pallas as pl
from jax.experimental.pallas import tpu as pltpu

EPS = 1e-5  # nn.LayerNorm default eps


def _gelu_exact(x):
    # PyTorch nn.GELU() default = exact (erf) gelu
    return 0.5 * x * (1.0 + lax.erf(x * (1.0 / math.sqrt(2.0))))


def mixer_kernel(x_ref, gamma_ref, beta_ref,
                 w1t_ref, b1t_ref, w2t_ref, b2t_ref,
                 w1c_ref, b1c_ref, w2c_ref, b2c_ref,
                 o_ref, *, bb, n, d, mm_dtype, gelu_approx):
    """One grid step = `bb` batch elements presented as a flat (bb*n, d) tile."""

    def gelu(v):
        if gelu_approx:
            # tanh approximation routes the transcendental to the EUP slot.
            return jax.nn.gelu(v, approximate=True)
        return _gelu_exact(v)  # PyTorch nn.GELU default (exact erf)

    x = x_ref[...].astype(jnp.float32)                  # (bb*n, d)
    gamma = gamma_ref[...]                              # (1, d) f32
    beta = beta_ref[...]                                # (1, d) f32

    def layernorm(v):
        mu = jnp.mean(v, axis=-1, keepdims=True)
        var = jnp.mean(jnp.square(v - mu), axis=-1, keepdims=True)
        return (v - mu) * lax.rsqrt(var + EPS) * gamma + beta

    # ---------------- token mixing (MLP over the N axis) ----------------
    # Fold batch into the MXU M dimension: one per-batch transpose of the
    # LayerNorm output to (bb*d, n), two big matmuls, one transpose back.
    ln1 = layernorm(x)                                                   # (bb*n, d)
    ln1_t = jnp.transpose(ln1.reshape(bb, n, d), (0, 2, 1))              # (bb, d, n)
    ln1_t = ln1_t.reshape(bb * d, n).astype(mm_dtype)                    # (bb*d, n)
    h = jnp.dot(ln1_t, w1t_ref[...],
                preferred_element_type=jnp.float32)                      # (bb*d, token_dim)
    h = gelu(h + b1t_ref[...]).astype(mm_dtype)
    t2_t = jnp.dot(h, w2t_ref[...],
                   preferred_element_type=jnp.float32) + b2t_ref[...]    # (bb*d, n)
    t2 = jnp.transpose(t2_t.reshape(bb, d, n), (0, 2, 1)).reshape(bb * n, d)
    out = x + t2                                        # residual 1 (f32)

    # ------------- channel mixing (MLP over the D axis), M = bb*n -------------
    ln2 = layernorm(out)
    h2 = jnp.dot(ln2.astype(mm_dtype), w1c_ref[...],
                 preferred_element_type=jnp.float32)                     # (bb*n, channel_dim)
    h2 = gelu(h2 + b1c_ref[...]).astype(mm_dtype)
    c2 = jnp.dot(h2, w2c_ref[...],
                 preferred_element_type=jnp.float32) + b2c_ref[...]      # (bb*n, d)

    o_ref[...] = (out + c2).astype(o_ref.dtype)         # residual 2


def _tpu_hw():
    """(vmem_capacity_bytes, mxu_rows, num_tensorcores) with safe fallbacks."""
    vmem_cap, mxu_rows, num_tc = 128 << 20, 128, 1      # v5e-ish defaults
    try:
        kind = jax.devices()[0].device_kind.lower()
    except Exception:
        kind = ""
    if ("v6" in kind) or ("v7" in kind):
        mxu_rows = 256                                  # 2x256^2 MXU
    if "v7" in kind:
        vmem_cap, num_tc = 64 << 20, 2                  # 64 MiB / TC, 2 TCs
    try:
        vmem_cap = int(pltpu.get_tpu_info().vmem_capacity_bytes)
    except Exception:
        pass
    return vmem_cap, mxu_rows, num_tc


def _choose_block_batch(B, N, D, token_dim, channel_dim, *,
                        in_itemsize, out_itemsize, mm_itemsize,
                        vmem_budget, mxu_rows, num_tc, max_rows=2048):
    """Pick a batch-block bb (divisor of B) that fits the VMEM budget,
    fills the MXU rows (generation aware), minimizes grid steps on
    single-TC chips, and keeps an even grid on 2-TC chips when possible."""
    # Resident weight/bias blocks (constant index maps); x2 for buffering.
    weight_bytes = 2 * (mm_itemsize * (2 * N * token_dim + 2 * D * channel_dim)
                        + 4 * (token_dim + N + channel_dim + 3 * D))

    def fits(bb):
        rows = bb * N
        if rows > max_rows:
            return False
        # f32 intermediates (x, ln1, ln1_t, t2_t, t2, out, ln2, c2 ~ rows*D each,
        # since N == D) plus rows x hidden activations, plus mm_dtype casts.
        work = 4 * rows * (8 * D + token_dim + channel_dim) \
            + mm_itemsize * rows * (2 * D + token_dim + channel_dim)
        io = 2 * rows * D * (in_itemsize + out_itemsize)     # double-buffered tiles
        return weight_bytes + work + io <= vmem_budget

    # (8,128) sublane rule applies to partial blocks; full-array block is exempt.
    legal = [bb for bb in range(1, B + 1)
             if B % bb == 0 and (bb == B or (bb * N) % 8 == 0)]
    feasible = [bb for bb in legal if fits(bb)]
    if not feasible:
        # Smallest legal block = best chance of fitting; never an illegal block.
        return min(legal)
    fill = [bb for bb in feasible if bb * N >= mxu_rows] or feasible
    if num_tc >= 2:
        even = [bb for bb in fill if (B // bb) >= 2 and (B // bb) % 2 == 0]
        if even:
            return max(even)       # both TensorCores fed without dropping MXU fill
    return max(fill)               # single TC: fewest serial grid steps


def mixer_struc(x, params, *, matmul_dtype=None, block_batch=None,
                gelu_approx=False):
    B, N, D = x.shape
    assert N == D, ("Mixer_struc requires patches == dim "
                    "(token MLP output is added back as (N, D))")
    gamma, beta, w1t, b1t, w2t, b2t, w1c, b1c, w2c, b2c = params
    token_dim = w1t.shape[0]
    channel_dim = w1c.shape[0]

    # f32 by default (exact vs the reference).  bf16 MXU operands pay off on
    # v6e/v7x once D/token_dim/channel_dim reach >= 128; all VPU math
    # (LayerNorm, gelu, bias adds, residuals) stays f32 (v5e has no bf16 VALU).
    mm_dtype = (jnp.dtype(matmul_dtype) if matmul_dtype is not None
                else jnp.dtype(jnp.float32))

    vmem_cap, mxu_rows, num_tc = _tpu_hw()
    # Scoped VMEM limit with headroom under physical capacity
    # (64 MiB/TC on v7x, 128 MiB on v5e/v6e).
    vmem_limit = (48 << 20) if vmem_cap <= (64 << 20) else (96 << 20)
    vmem_budget = vmem_limit - (8 << 20)

    Bb = block_batch or _choose_block_batch(
        B, N, D, token_dim, channel_dim,
        in_itemsize=x.dtype.itemsize, out_itemsize=x.dtype.itemsize,
        mm_itemsize=mm_dtype.itemsize,
        vmem_budget=vmem_budget, mxu_rows=mxu_rows, num_tc=num_tc)
    assert B % Bb == 0, f"block_batch {Bb} must divide batch {B}"
    grid = B // Bb
    rows = Bb * N

    # Flatten (B, N, D) -> (B*N, D) so each grid step sees a clean 2D row-tile.
    # TODO(synk): for real configs keep D a multiple of 128 (lane-dense vregs
    # and unmasked output stores); at demo D=16 lanes are 1/8 full.
    x2d = x.reshape(B * N, D)
    args = (
        x2d,
        gamma.reshape(1, D).astype(jnp.float32),
        beta.reshape(1, D).astype(jnp.float32),
        jnp.transpose(w1t).astype(mm_dtype),              # (N, token_dim)
        b1t.reshape(1, token_dim).astype(jnp.float32),    # lane-major bias
        jnp.transpose(w2t).astype(mm_dtype),              # (token_dim, N)
        b2t.reshape(1, N).astype(jnp.float32),            # lane-major bias
        jnp.transpose(w1c).astype(mm_dtype),              # (D, channel_dim)
        b1c.reshape(1, channel_dim).astype(jnp.float32),
        jnp.transpose(w2c).astype(mm_dtype),              # (channel_dim, D)
        b2c.reshape(1, D).astype(jnp.float32),
    )

    def const(shape):
        # whole-array block, fetched once (constant index map)
        return pl.BlockSpec(shape, lambda i: (0, 0))

    kernel = functools.partial(mixer_kernel, bb=Bb, n=N, d=D,
                               mm_dtype=mm_dtype, gelu_approx=gelu_approx)

    out2d = pl.pallas_call(
        kernel,
        out_shape=jax.ShapeDtypeStruct((B * N, D), x.dtype),
        grid_spec=pltpu.PrefetchScalarGridSpec(
            num_scalar_prefetch=0,
            grid=(grid,),
            in_specs=[
                pl.BlockSpec((rows, D), lambda i: (i, 0)),          # x row-tile
                const((1, D)), const((1, D)),                       # LN gamma, beta
                const((N, token_dim)), const((1, token_dim)),       # token W1^T, b1
                const((token_dim, N)), const((1, N)),               # token W2^T, b2
                const((D, channel_dim)), const((1, channel_dim)),   # chan W1^T, b1
                const((channel_dim, D)), const((1, D)),             # chan W2^T, b2
            ],
            out_specs=pl.BlockSpec((rows, D), lambda i: (i, 0)),
        ),
        compiler_params=pltpu.CompilerParams(
            dimension_semantics=("parallel",),
            vmem_limit_bytes=vmem_limit,
        ),
    )(*args)
    return out2d.reshape(B, N, D)


def mixer_ref(x, params):
    """Pure-JAX reference reproducing the PyTorch forward."""
    gamma, beta, w1t, b1t, w2t, b2t, w1c, b1c, w2c, b2c = params

    def ln(v):
        mu = v.mean(-1, keepdims=True)
        var = ((v - mu) ** 2).mean(-1, keepdims=True)
        return (v - mu) / jnp.sqrt(var + EPS) * gamma + beta

    def gelu(v):
        return 0.5 * v * (1.0 + jax.scipy.special.erf(v / jnp.sqrt(2.0)))

    out = ln(x)
    out = jnp.swapaxes(out, 1, 2)                      # b n d -> b d n
    out = gelu(out @ w1t.T + b1t) @ w2t.T + b2t        # MLP_block_token
    out = jnp.swapaxes(out, 1, 2) + x                  # b d n -> b n d, residual
    out2 = ln(out)
    out2 = gelu(out2 @ w1c.T + b1c) @ w2c.T + b2c      # MLP_block_chan
    return out2 + out


if __name__ == "__main__":
    # Small, shape-consistent config: N == D == patches (required by the module)
    B, patches, dim = 16, 16, 16
    token_dim, channel_dim = 32, 32

    key = jax.random.PRNGKey(0)
    ks = jax.random.split(key, 11)

    x = jax.random.normal(ks[0], (B, patches, dim), dtype=jnp.float32)

    gamma = 1.0 + 0.1 * jax.random.normal(ks[1], (dim,), dtype=jnp.float32)
    beta = 0.1 * jax.random.normal(ks[2], (dim,), dtype=jnp.float32)
    # MLP_block_token: Linear(patches -> token_dim), Linear(token_dim -> patches)
    w1t = 0.1 * jax.random.normal(ks[3], (token_dim, patches), dtype=jnp.float32)
    b1t = 0.1 * jax.random.normal(ks[4], (token_dim,), dtype=jnp.float32)
    w2t = 0.1 * jax.random.normal(ks[5], (patches, token_dim), dtype=jnp.float32)
    b2t = 0.1 * jax.random.normal(ks[6], (patches,), dtype=jnp.float32)
    # MLP_block_chan: Linear(patches -> channel_dim), Linear(channel_dim -> patches)
    w1c = 0.1 * jax.random.normal(ks[7], (channel_dim, patches), dtype=jnp.float32)
    b1c = 0.1 * jax.random.normal(ks[8], (channel_dim,), dtype=jnp.float32)
    w2c = 0.1 * jax.random.normal(ks[9], (patches, channel_dim), dtype=jnp.float32)
    b2c = 0.1 * jax.random.normal(ks[10], (patches,), dtype=jnp.float32)

    params = (gamma, beta, w1t, b1t, w2t, b2t, w1c, b1c, w2c, b2c)
    ref = mixer_ref(x, params)

    # Exact (f32 MXU operands, erf GELU) path: must match the reference tightly.
    out = jax.block_until_ready(mixer_struc(x, params))
    assert out.shape == ref.shape and out.dtype == ref.dtype
    assert jnp.allclose(out, ref, atol=5e-4, rtol=5e-4), \
        f"f32 path: max abs err {jnp.max(jnp.abs(out - ref))}"

    # bf16-operand path (v6e/v7x MXU throughput); f32 accumulation keeps it close.
    out_bf16 = jax.block_until_ready(
        mixer_struc(x, params, matmul_dtype=jnp.bfloat16))
    assert jnp.allclose(out_bf16, ref, atol=1e-1, rtol=1e-1), \
        f"bf16 path: max abs err {jnp.max(jnp.abs(out_bf16 - ref))}"

    print("KERNEL_OK")
</pallas_src>

<mosaic_0001>
module attributes {stable_mosaic.version = 11 : i64} {
  func.func @mixer_kernel(%arg0: i32, %arg1: memref<256x16xf32, #tpu.memory_space<vmem>>, %arg2: memref<1x16xf32, #tpu.memory_space<vmem>>, %arg3: memref<1x16xf32, #tpu.memory_space<vmem>>, %arg4: memref<16x32xf32, #tpu.memory_space<vmem>>, %arg5: memref<1x32xf32, #tpu.memory_space<vmem>>, %arg6: memref<32x16xf32, #tpu.memory_space<vmem>>, %arg7: memref<1x16xf32, #tpu.memory_space<vmem>>, %arg8: memref<16x32xf32, #tpu.memory_space<vmem>>, %arg9: memref<1x32xf32, #tpu.memory_space<vmem>>, %arg10: memref<32x16xf32, #tpu.memory_space<vmem>>, %arg11: memref<1x16xf32, #tpu.memory_space<vmem>>, %arg12: memref<256x16xf32, #tpu.memory_space<vmem>>) attributes {dimension_semantics = [#tpu.dimension_semantics<parallel>], iteration_bounds = array<i64: 1>, scalar_prefetch = 0 : i64, scratch_operands = 0 : i64, tpu.core_type = #tpu.core_type<tc>, window_params = [{transform_indices = @transform_0, window_bounds = array<i64: 256, 16>}, {pipeline_mode = #tpu.pipeline_mode<synchronous>, transform_indices = @transform_1, window_bounds = array<i64: 1, 16>}, {pipeline_mode = #tpu.pipeline_mode<synchronous>, transform_indices = @transform_2, window_bounds = array<i64: 1, 16>}, {pipeline_mode = #tpu.pipeline_mode<synchronous>, transform_indices = @transform_3, window_bounds = array<i64: 16, 32>}, {pipeline_mode = #tpu.pipeline_mode<synchronous>, transform_indices = @transform_4, window_bounds = array<i64: 1, 32>}, {pipeline_mode = #tpu.pipeline_mode<synchronous>, transform_indices = @transform_5, window_bounds = array<i64: 32, 16>}, {pipeline_mode = #tpu.pipeline_mode<synchronous>, transform_indices = @transform_6, window_bounds = array<i64: 1, 16>}, {pipeline_mode = #tpu.pipeline_mode<synchronous>, transform_indices = @transform_7, window_bounds = array<i64: 16, 32>}, {pipeline_mode = #tpu.pipeline_mode<synchronous>, transform_indices = @transform_8, window_bounds = array<i64: 1, 32>}, {pipeline_mode = #tpu.pipeline_mode<synchronous>, transform_indices = @transform_9, window_bounds = array<i64: 32, 16>}, {pipeline_mode = #tpu.pipeline_mode<synchronous>, transform_indices = @transform_10, window_bounds = array<i64: 1, 16>}, {transform_indices = @transform_11, window_bounds = array<i64: 256, 16>}]} {
    %c0 = arith.constant 0 : index
    %c0_0 = arith.constant 0 : index
    %0 = vector.load %arg1[%c0, %c0_0] : memref<256x16xf32, #tpu.memory_space<vmem>>, vector<256x16xf32>
    %c0_1 = arith.constant 0 : index
    %c0_2 = arith.constant 0 : index
    %1 = vector.load %arg2[%c0_1, %c0_2] : memref<1x16xf32, #tpu.memory_space<vmem>>, vector<1x16xf32>
    %c0_3 = arith.constant 0 : index
    %c0_4 = arith.constant 0 : index
    %2 = vector.load %arg3[%c0_3, %c0_4] : memref<1x16xf32, #tpu.memory_space<vmem>>, vector<1x16xf32>
    %cst = arith.constant dense<0.000000e+00> : vector<256xf32>
    %3 = vector.multi_reduction <add>, %0, %cst [1] : vector<256x16xf32> to vector<256xf32>
    %4 = vector.shape_cast %3 : vector<256xf32> to vector<256x1xf32>
    %cst_5 = arith.constant 1.600000e+01 : f32
    %5 = vector.broadcast %cst_5 : f32 to vector<256x1xf32>
    %6 = arith.divf %4, %5 : vector<256x1xf32>
    %7 = vector.broadcast %6 : vector<256x1xf32> to vector<256x16xf32>
    %8 = arith.subf %0, %7 : vector<256x16xf32>
    %9 = arith.mulf %8, %8 : vector<256x16xf32>
    %cst_6 = arith.constant dense<0.000000e+00> : vector<256xf32>
    %10 = vector.multi_reduction <add>, %9, %cst_6 [1] : vector<256x16xf32> to vector<256xf32>
    %11 = vector.shape_cast %10 : vector<256xf32> to vector<256x1xf32>
    %cst_7 = arith.constant 1.600000e+01 : f32
    %12 = vector.broadcast %cst_7 : f32 to vector<256x1xf32>
    %13 = arith.divf %11, %12 : vector<256x1xf32>
    %14 = vector.broadcast %6 : vector<256x1xf32> to vector<256x16xf32>
    %15 = arith.subf %0, %14 : vector<256x16xf32>
    %cst_8 = arith.constant 9.99999974E-6 : f32
    %16 = vector.broadcast %cst_8 : f32 to vector<256x1xf32>
    %17 = arith.addf %13, %16 : vector<256x1xf32>
    %18 = math.rsqrt %17 : vector<256x1xf32>
    %19 = vector.broadcast %18 : vector<256x1xf32> to vector<256x16xf32>
    %20 = arith.mulf %15, %19 : vector<256x16xf32>
    %21 = vector.broadcast %1 : vector<1x16xf32> to vector<256x16xf32>
    %22 = arith.mulf %20, %21 : vector<256x16xf32>
    %23 = vector.broadcast %2 : vector<1x16xf32> to vector<256x16xf32>
    %24 = arith.addf %22, %23 : vector<256x16xf32>
    %25 = vector.shape_cast %24 : vector<256x16xf32> to vector<16x16x16xf32>
    %26 = tpu.transpose %25, [0, 2, 1] : vector<16x16x16xf32> -> vector<16x16x16xf32>
    %27 = vector.shape_cast %26 : vector<16x16x16xf32> to vector<256x16xf32>
    %c0_9 = arith.constant 0 : index
    %c0_10 = arith.constant 0 : index
    %28 = vector.load %arg4[%c0_9, %c0_10] : memref<16x32xf32, #tpu.memory_space<vmem>>, vector<16x32xf32>
    %cst_11 = arith.constant dense<0.000000e+00> : vector<256x32xf32>
    %29 = tpu.matmul %27, %28, %cst_11 {dimension_numbers = #tpu.dot_dimension_numbers<[1], [0], [0], [1], [0, 0, 1, 1], [], []>} : vector<256x16xf32>, vector<16x32xf32>, vector<256x32xf32> -> vector<256x32xf32>
    %c0_12 = arith.constant 0 : index
    %c0_13 = arith.constant 0 : index
    %30 = vector.load %arg5[%c0_12, %c0_13] : memref<1x32xf32, #tpu.memory_space<vmem>>, vector<1x32xf32>
    %31 = vector.broadcast %30 : vector<1x32xf32> to vector<256x32xf32>
    %32 = arith.addf %29, %31 : vector<256x32xf32>
    %cst_14 = arith.constant 5.000000e-01 : f32
    %33 = vector.broadcast %cst_14 : f32 to vector<256x32xf32>
    %34 = arith.mulf %33, %32 : vector<256x32xf32>
    %cst_15 = arith.constant 0.707106769 : f32
    %35 = vector.broadcast %cst_15 : f32 to vector<256x32xf32>
    %36 = arith.mulf %32, %35 : vector<256x32xf32>
    %37 = math.erf %36 : vector<256x32xf32>
    %cst_16 = arith.constant 1.000000e+00 : f32
    %38 = vector.broadcast %cst_16 : f32 to vector<256x32xf32>
    %39 = arith.addf %38, %37 : vector<256x32xf32>
    %40 = arith.mulf %34, %39 : vector<256x32xf32>
    %c0_17 = arith.constant 0 : index
    %c0_18 = arith.constant 0 : index
    %41 = vector.load %arg6[%c0_17, %c0_18] : memref<32x16xf32, #tpu.memory_space<vmem>>, vector<32x16xf32>
    %cst_19 = arith.constant dense<0.000000e+00> : vector<256x16xf32>
    %42 = tpu.matmul %40, %41, %cst_19 {dimension_numbers = #tpu.dot_dimension_numbers<[1], [0], [0], [1], [0, 0, 1, 1], [], []>} : vector<256x32xf32>, vector<32x16xf32>, vector<256x16xf32> -> vector<256x16xf32>
    %c0_20 = arith.constant 0 : index
    %c0_21 = arith.constant 0 : index
    %43 = vector.load %arg7[%c0_20, %c0_21] : memref<1x16xf32, #tpu.memory_space<vmem>>, vector<1x16xf32>
    %44 = vector.broadcast %43 : vector<1x16xf32> to vector<256x16xf32>
    %45 = arith.addf %42, %44 : vector<256x16xf32>
    %46 = vector.shape_cast %45 : vector<256x16xf32> to vector<16x16x16xf32>
    %47 = tpu.transpose %46, [0, 2, 1] : vector<16x16x16xf32> -> vector<16x16x16xf32>
    %48 = vector.shape_cast %47 : vector<16x16x16xf32> to vector<256x16xf32>
    %49 = arith.addf %0, %48 : vector<256x16xf32>
    %cst_22 = arith.constant dense<0.000000e+00> : vector<256xf32>
    %50 = vector.multi_reduction <add>, %49, %cst_22 [1] : vector<256x16xf32> to vector<256xf32>
    %51 = vector.shape_cast %50 : vector<256xf32> to vector<256x1xf32>
    %cst_23 = arith.constant 1.600000e+01 : f32
    %52 = vector.broadcast %cst_23 : f32 to vector<256x1xf32>
    %53 = arith.divf %51, %52 : vector<256x1xf32>
    %54 = vector.broadcast %53 : vector<256x1xf32> to vector<256x16xf32>
    %55 = arith.subf %49, %54 : vector<256x16xf32>
    %56 = arith.mulf %55, %55 : vector<256x16xf32>
    %cst_24 = arith.constant dense<0.000000e+00> : vector<256xf32>
    %57 = vector.multi_reduction <add>, %56, %cst_24 [1] : vector<256x16xf32> to vector<256xf32>
    %58 = vector.shape_cast %57 : vector<256xf32> to vector<256x1xf32>
    %cst_25 = arith.constant 1.600000e+01 : f32
    %59 = vector.broadcast %cst_25 : f32 to vector<256x1xf32>
    %60 = arith.divf %58, %59 : vector<256x1xf32>
    %61 = vector.broadcast %53 : vector<256x1xf32> to vector<256x16xf32>
    %62 = arith.subf %49, %61 : vector<256x16xf32>
    %cst_26 = arith.constant 9.99999974E-6 : f32
    %63 = vector.broadcast %cst_26 : f32 to vector<256x1xf32>
    %64 = arith.addf %60, %63 : vector<256x1xf32>
    %65 = math.rsqrt %64 : vector<256x1xf32>
    %66 = vector.broadcast %65 : vector<256x1xf32> to vector<256x16xf32>
    %67 = arith.mulf %62, %66 : vector<256x16xf32>
    %68 = vector.broadcast %1 : vector<1x16xf32> to vector<256x16xf32>
    %69 = arith.mulf %67, %68 : vector<256x16xf32>
    %70 = vector.broadcast %2 : vector<1x16xf32> to vector<256x16xf32>
    %71 = arith.addf %69, %70 : vector<256x16xf32>
    %c0_27 = arith.constant 0 : index
    %c0_28 = arith.constant 0 : index
    %72 = vector.load %arg8[%c0_27, %c0_28] : memref<16x32xf32, #tpu.memory_space<vmem>>, vector<16x32xf32>
    %cst_29 = arith.constant dense<0.000000e+00> : vector<256x32xf32>
    %73 = tpu.matmul %71, %72, %cst_29 {dimension_numbers = #tpu.dot_dimension_numbers<[1], [0], [0], [1], [0, 0, 1, 1], [], []>} : vector<256x16xf32>, vector<16x32xf32>, vector<256x32xf32> -> vector<256x32xf32>
    %c0_30 = arith.constant 0 : index
    %c0_31 = arith.constant 0 : index
    %74 = vector.load %arg9[%c0_30, %c0_31] : memref<1x32xf32, #tpu.memory_space<vmem>>, vector<1x32xf32>
    %75 = vector.broadcast %74 : vector<1x32xf32> to vector<256x32xf32>
    %76 = arith.addf %73, %75 : vector<256x32xf32>
    %cst_32 = arith.constant 5.000000e-01 : f32
    %77 = vector.broadcast %cst_32 : f32 to vector<256x32xf32>
    %78 = arith.mulf %77, %76 : vector<256x32xf32>
    %cst_33 = arith.constant 0.707106769 : f32
    %79 = vector.broadcast %cst_33 : f32 to vector<256x32xf32>
    %80 = arith.mulf %76, %79 : vector<256x32xf32>
    %81 = math.erf %80 : vector<256x32xf32>
    %cst_34 = arith.constant 1.000000e+00 : f32
    %82 = vector.broadcast %cst_34 : f32 to vector<256x32xf32>
    %83 = arith.addf %82, %81 : vector<256x32xf32>
    %84 = arith.mulf %78, %83 : vector<256x32xf32>
    %c0_35 = arith.constant 0 : index
    %c0_36 = arith.constant 0 : index
    %85 = vector.load %arg10[%c0_35, %c0_36] : memref<32x16xf32, #tpu.memory_space<vmem>>, vector<32x16xf32>
    %cst_37 = arith.constant dense<0.000000e+00> : vector<256x16xf32>
    %86 = tpu.matmul %84, %85, %cst_37 {dimension_numbers = #tpu.dot_dimension_numbers<[1], [0], [0], [1], [0, 0, 1, 1], [], []>} : vector<256x32xf32>, vector<32x16xf32>, vector<256x16xf32> -> vector<256x16xf32>
    %c0_38 = arith.constant 0 : index
    %c0_39 = arith.constant 0 : index
    %87 = vector.load %arg11[%c0_38, %c0_39] : memref<1x16xf32, #tpu.memory_space<vmem>>, vector<1x16xf32>
    %88 = vector.broadcast %87 : vector<1x16xf32> to vector<256x16xf32>
    %89 = arith.addf %86, %88 : vector<256x16xf32>
    %90 = arith.addf %49, %89 : vector<256x16xf32>
    %c0_40 = arith.constant 0 : index
    %c0_41 = arith.constant 0 : index
    %91 = vector.load %arg12[%c0_40, %c0_41] : memref<256x16xf32, #tpu.memory_space<vmem>>, vector<256x16xf32>
    tpu.vector_store %arg12[%c0_40, %c0_41], %90 {strides = array<i32>} : memref<256x16xf32, #tpu.memory_space<vmem>>, vector<256x16xf32>,
    return
  }
  func.func @transform_0(%arg0: i32) -> (i32, i32) {
    %c0_i32 = arith.constant 0 : i32
    %c0_i32_0 = arith.constant 0 : i32
    return %arg0, %c0_i32 : i32, i32
  }
  func.func @transform_1(%arg0: i32) -> (i32, i32) {
    %c0_i32 = arith.constant 0 : i32
    %c0_i32_0 = arith.constant 0 : i32
    %c0_i32_1 = arith.constant 0 : i32
    return %c0_i32, %c0_i32_0 : i32, i32
  }
  func.func @transform_2(%arg0: i32) -> (i32, i32) {
    %c0_i32 = arith.constant 0 : i32
    %c0_i32_0 = arith.constant 0 : i32
    %c0_i32_1 = arith.constant 0 : i32
    return %c0_i32, %c0_i32_0 : i32, i32
  }
  func.func @transform_3(%arg0: i32) -> (i32, i32) {
    %c0_i32 = arith.constant 0 : i32
    %c0_i32_0 = arith.constant 0 : i32
    %c0_i32_1 = arith.constant 0 : i32
    return %c0_i32, %c0_i32_0 : i32, i32
  }
  func.func @transform_4(%arg0: i32) -> (i32, i32) {
    %c0_i32 = arith.constant 0 : i32
    %c0_i32_0 = arith.constant 0 : i32
    %c0_i32_1 = arith.constant 0 : i32
    return %c0_i32, %c0_i32_0 : i32, i32
  }
  func.func @transform_5(%arg0: i32) -> (i32, i32) {
    %c0_i32 = arith.constant 0 : i32
    %c0_i32_0 = arith.constant 0 : i32
    %c0_i32_1 = arith.constant 0 : i32
    return %c0_i32, %c0_i32_0 : i32, i32
  }
  func.func @transform_6(%arg0: i32) -> (i32, i32) {
    %c0_i32 = arith.constant 0 : i32
    %c0_i32_0 = arith.constant 0 : i32
    %c0_i32_1 = arith.constant 0 : i32
    return %c0_i32, %c0_i32_0 : i32, i32
  }
  func.func @transform_7(%arg0: i32) -> (i32, i32) {
    %c0_i32 = arith.constant 0 : i32
    %c0_i32_0 = arith.constant 0 : i32
    %c0_i32_1 = arith.constant 0 : i32
    return %c0_i32, %c0_i32_0 : i32, i32
  }
  func.func @transform_8(%arg0: i32) -> (i32, i32) {
    %c0_i32 = arith.constant 0 : i32
    %c0_i32_0 = arith.constant 0 : i32
    %c0_i32_1 = arith.constant 0 : i32
    return %c0_i32, %c0_i32_0 : i32, i32
  }
  func.func @transform_9(%arg0: i32) -> (i32, i32) {
    %c0_i32 = arith.constant 0 : i32
    %c0_i32_0 = arith.constant 0 : i32
    %c0_i32_1 = arith.constant 0 : i32
    return %c0_i32, %c0_i32_0 : i32, i32
  }
  func.func @transform_10(%arg0: i32) -> (i32, i32) {
    %c0_i32 = arith.constant 0 : i32
    %c0_i32_0 = arith.constant 0 : i32
    %c0_i32_1 = arith.constant 0 : i32
    return %c0_i32, %c0_i32_0 : i32, i32
  }
  func.func @transform_11(%arg0: i32) -> (i32, i32) {
    %c0_i32 = arith.constant 0 : i32
    %c0_i32_0 = arith.constant 0 : i32
    return %arg0, %c0_i32 : i32, i32
  }
}

</mosaic_0001>

<llo_original>
// kernel: tpu_custom_call.1
$region0: #{tpu_custom_call.1}
  #allocation0 [shape = 'u32[]', space=smem, size = 0x4, offset = 0x4, fixed_abs, tag = 'smem constant byte address 0x4 - core index']
  #allocation1 [shape = 'u32[144,128]{1,0:T(1,128)}', space=vmem, size = 0x12000, scoped, tag = 'internal scratch']
  %s0 = inlined_call_operand.hbm [shape: f32[256,16], index: 0, kind: input, shape index: {}]
  %s1 = inlined_call_operand.hbm [shape: f32[1,16], index: 1, kind: input, shape index: {}]
  %s2 = inlined_call_operand.hbm [shape: f32[1,16], index: 2, kind: input, shape index: {}]
  %s3 = inlined_call_operand.hbm [shape: f32[16,32], index: 3, kind: input, shape index: {}]
  %s4 = inlined_call_operand.hbm [shape: f32[1,32], index: 4, kind: input, shape index: {}]
  %s5 = inlined_call_operand.hbm [shape: f32[32,16], index: 5, kind: input, shape index: {}]
  %s6 = inlined_call_operand.hbm [shape: f32[1,16], index: 6, kind: input, shape index: {}]
  %s7 = inlined_call_operand.hbm [shape: f32[16,32], index: 7, kind: input, shape index: {}]
  %s8 = inlined_call_operand.hbm [shape: f32[1,32], index: 8, kind: input, shape index: {}]
  %s9 = inlined_call_operand.hbm [shape: f32[32,16], index: 9, kind: input, shape index: {}]
  %s10 = inlined_call_operand.hbm [shape: f32[1,16], index: 10, kind: input, shape index: {}]
  %s11 = inlined_call_operand.hbm [shape: f32[256,16], index: 11, kind: output, shape index: {}]
  %s12 = sld [smem:[#allocation0]]
  $region98: #{tpu_custom_call.1} parent=0
    _
  %s14 = ssub.s32 1, %s12
  %s15 = scalar_select 0, %s14, %s12
  $region1: #{tpu_custom_call.1} parent=0
    #allocation2 [shape = 'u8[131072]{0}', space=vmem, size = 0x20000, scoped, tag = 'input window, operand 0, single buffered']
    #allocation3 [shape = 's32[1]{0}', space=sflag, size = 0x4, scoped, tag = 'scoped memory for tpu_custom_call.1']
    #allocation4 [shape = 's32[1]{0}', space=sflag, size = 0x4, scoped, tag = 'scoped memory for tpu_custom_call.1']
    #allocation5 [shape = 'u8[512]{0}', space=vmem, size = 0x400, scoped, tag = 'input window, operand 1, single buffered']
    #allocation6 [shape = 's32[1]{0}', space=sflag, size = 0x4, scoped, tag = 'scoped memory for tpu_custom_call.1']
    #allocation7 [shape = 'u8[512]{0}', space=vmem, size = 0x400, scoped, tag = 'input window, operand 2, single buffered']
    #allocation8 [shape = 'u8[8192]{0}', space=vmem, size = 0x2000, scoped, tag = 'input window, operand 3, single buffered']
    #allocation9 [shape = 's32[1]{0}', space=sflag, size = 0x4, scoped, tag = 'scoped memory for tpu_custom_call.1']
    #allocation10 [shape = 'u8[512]{0}', space=vmem, size = 0x400, scoped, tag = 'input window, operand 4, single buffered']
    #allocation11 [shape = 'u8[16384]{0}', space=vmem, size = 0x4000, scoped, tag = 'input window, operand 5, single buffered']
    #allocation12 [shape = 's32[1]{0}', space=sflag, size = 0x4, scoped, tag = 'scoped memory for tpu_custom_call.1']
    #allocation13 [shape = 'u8[512]{0}', space=vmem, size = 0x400, scoped, tag = 'input window, operand 6, single buffered']
    #allocation14 [shape = 'u8[8192]{0}', space=vmem, size = 0x2000, scoped, tag = 'input window, operand 7, single buffered']
    #allocation15 [shape = 's32[1]{0}', space=sflag, size = 0x4, scoped, tag = 'scoped memory for tpu_custom_call.1']
    #allocation16 [shape = 'u8[512]{0}', space=vmem, size = 0x400, scoped, tag = 'input window, operand 8, single buffered']
    #allocation17 [shape = 'u8[16384]{0}', space=vmem, size = 0x4000, scoped, tag = 'input window, operand 9, single buffered']
    #allocation18 [shape = 's32[1]{0}', space=sflag, size = 0x4, scoped, tag = 'scoped memory for tpu_custom_call.1']
    #allocation19 [shape = 'u8[512]{0}', space=vmem, size = 0x400, scoped, tag = 'input window, operand 10, single buffered']
    #allocation20 [shape = 'u8[131072]{0}', space=vmem, size = 0x20000, scoped, tag = 'output window, operand 0, single buffered']
    %16 = vsyncpa [#allocation3], 0
    %17 = vsyncpa [#allocation6], 0
    %18 = vsyncpa [#allocation9], 0
    %19 = vsyncpa [#allocation12], 0
    %20 = vsyncpa [#allocation15], 0
    %21 = vsyncpa [#allocation18], 0
    %22 = vsyncpa [#allocation4], 0
    // Predicated region
    $region2: #{tpu_custom_call.1} parent=1 // pred_check
      _
    $region3: #{tpu_custom_call.1} parent=1 // pred_check_branch
      %24 = sbr.rel (0) target = $region5
    $region4: #{tpu_custom_call.1} parent=1 // pred_region
      %s26 = ssub.s32 4096, 4096
      %27 = vsyncadd [#allocation3], %s26
      %s28 = sshll.u32 [#allocation2], 4
      %s29 = int_to_ptr.vmem [resolvable:$true] %s28
      %34 = dma.hbm_to_vmem [thread:$0]  %s0, 4096, %s29, [#allocation3], 128, 128, 8
    $region5: #{tpu_custom_call.1} parent=1 // pred_fallthru
      _
    // Predicated region
    $region6: #{tpu_custom_call.1} parent=1 // pred_check
      _
    $region7: #{tpu_custom_call.1} parent=1 // pred_check_branch
      %36 = sbr.rel (0) target = $region9
    $region8: #{tpu_custom_call.1} parent=1 // pred_region
      %s38 = ssub.s32 16, 16
      %39 = vsyncadd [#allocation6], %s38
      %s41 = sshll.u32 [#allocation5], 4
      %s42 = int_to_ptr.vmem [resolvable:$true] %s41
      %44 = dma.hbm_to_vmem [thread:$0]  %s1, 16, %s42, [#allocation6]
    $region9: #{tpu_custom_call.1} parent=1 // pred_fallthru
      _
    // Predicated region
    $region10: #{tpu_custom_call.1} parent=1 // pred_check
      _
    $region11: #{tpu_custom_call.1} parent=1 // pred_check_branch
      %46 = sbr.rel (0) target = $region13
    $region12: #{tpu_custom_call.1} parent=1 // pred_region
      %s48 = ssub.s32 16, 16
      %49 = vsyncadd [#allocation6], %s48
      %s51 = sshll.u32 [#allocation7], 4
      %s52 = int_to_ptr.vmem [resolvable:$true] %s51
      %54 = dma.hbm_to_vmem [thread:$0]  %s2, 16, %s52, [#allocation6]
    $region13: #{tpu_custom_call.1} parent=1 // pred_fallthru
      _
    // Predicated region
    $region14: #{tpu_custom_call.1} parent=1 // pred_check
      _
    $region15: #{tpu_custom_call.1} parent=1 // pred_check_branch
      %56 = sbr.rel (0) target = $region17
    $region16: #{tpu_custom_call.1} parent=1 // pred_region
      %s58 = ssub.s32 256, 256
      %59 = vsyncadd [#allocation9], %s58
      %s60 = sshll.u32 [#allocation8], 4
      %s61 = int_to_ptr.vmem [resolvable:$true] %s60
      %66 = dma.hbm_to_vmem [thread:$0]  %s3, 256, %s61, [#allocation9], 128, 128, 8
    $region17: #{tpu_custom_call.1} parent=1 // pred_fallthru
      _
    // Predicated region
    $region18: #{tpu_custom_call.1} parent=1 // pred_check
      _
    $region19: #{tpu_custom_call.1} parent=1 // pred_check_branch
      %68 = sbr.rel (0) target = $region21
    $region20: #{tpu_custom_call.1} parent=1 // pred_region
      %s70 = ssub.s32 16, 16
      %71 = vsyncadd [#allocation9], %s70
      %s73 = sshll.u32 [#allocation10], 4
      %s74 = int_to_ptr.vmem [resolvable:$true] %s73
      %76 = dma.hbm_to_vmem [thread:$0]  %s4, 16, %s74, [#allocation9]
    $region21: #{tpu_custom_call.1} parent=1 // pred_fallthru
      _
    // Predicated region
    $region22: #{tpu_custom_call.1} parent=1 // pred_check
      _
    $region23: #{tpu_custom_call.1} parent=1 // pred_check_branch
      %78 = sbr.rel (0) target = $region25
    $region24: #{tpu_custom_call.1} parent=1 // pred_region
      %s80 = ssub.s32 512, 512
      %81 = vsyncadd [#allocation12], %s80
      %s82 = sshll.u32 [#allocation11], 4
      %s83 = int_to_ptr.vmem [resolvable:$true] %s82
      %88 = dma.hbm_to_vmem [thread:$0]  %s5, 512, %s83, [#allocation12], 128, 128, 8
    $region25: #{tpu_custom_call.1} parent=1 // pred_fallthru
      _
    // Predicated region
    $region26: #{tpu_custom_call.1} parent=1 // pred_check
      _
    $region27: #{tpu_custom_call.1} parent=1 // pred_check_branch
      %90 = sbr.rel (0) target = $region29
    $region28: #{tpu_custom_call.1} parent=1 // pred_region
      %s92 = ssub.s32 16, 16
      %93 = vsyncadd [#allocation12], %s92
      %s95 = sshll.u32 [#allocation13], 4
      %s96 = int_to_ptr.vmem [resolvable:$true] %s95
      %98 = dma.hbm_to_vmem [thread:$0]  %s6, 16, %s96, [#allocation12]
    $region29: #{tpu_custom_call.1} parent=1 // pred_fallthru
      _
    // Predicated region
    $region30: #{tpu_custom_call.1} parent=1 // pred_check
      _
    $region31: #{tpu_custom_call.1} parent=1 // pred_check_branch
      %100 = sbr.rel (0) target = $region33
    $region32: #{tpu_custom_call.1} parent=1 // pred_region
      %s102 = ssub.s32 256, 256
      %103 = vsyncadd [#allocation15], %s102
      %s104 = sshll.u32 [#allocation14], 4
      %s105 = int_to_ptr.vmem [resolvable:$true] %s104
      %110 = dma.hbm_to_vmem [thread:$0]  %s7, 256, %s105, [#allocation15], 128, 128, 8
    $region33: #{tpu_custom_call.1} parent=1 // pred_fallthru
      _
    // Predicated region
    $region34: #{tpu_custom_call.1} parent=1 // pred_check
      _
    $region35: #{tpu_custom_call.1} parent=1 // pred_check_branch
      %112 = sbr.rel (0) target = $region37
    $region36: #{tpu_custom_call.1} parent=1 // pred_region
      %s114 = ssub.s32 16, 16
      %115 = vsyncadd [#allocation15], %s114
      %s117 = sshll.u32 [#allocation16], 4
      %s118 = int_to_ptr.vmem [resolvable:$true] %s117
      %120 = dma.hbm_to_vmem [thread:$0]  %s8, 16, %s118, [#allocation15]
    $region37: #{tpu_custom_call.1} parent=1 // pred_fallthru
      _
    // Predicated region
    $region38: #{tpu_custom_call.1} parent=1 // pred_check
      _
    $region39: #{tpu_custom_call.1} parent=1 // pred_check_branch
      %122 = sbr.rel (0) target = $region41
    $region40: #{tpu_custom_call.1} parent=1 // pred_region
      %s124 = ssub.s32 512, 512
      %125 = vsyncadd [#allocation18], %s124
      %s126 = sshll.u32 [#allocation17], 4
      %s127 = int_to_ptr.vmem [resolvable:$true] %s126
      %132 = dma.hbm_to_vmem [thread:$0]  %s9, 512, %s127, [#allocation18], 128, 128, 8
    $region41: #{tpu_custom_call.1} parent=1 // pred_fallthru
      _
    // Predicated region
    $region42: #{tpu_custom_call.1} parent=1 // pred_check
      _
    $region43: #{tpu_custom_call.1} parent=1 // pred_check_branch
      %134 = sbr.rel (0) target = $region45
    $region44: #{tpu_custom_call.1} parent=1 // pred_region
      %s136 = ssub.s32 16, 16
      %137 = vsyncadd [#allocation18], %s136
      %s139 = sshll.u32 [#allocation19], 4
      %s140 = int_to_ptr.vmem [resolvable:$true] %s139
      %142 = dma.hbm_to_vmem [thread:$0]  %s10, 16, %s140, [#allocation18]
    $region45: #{tpu_custom_call.1} parent=1 // pred_fallthru
      _
    // Predicated region
    $region46: #{tpu_custom_call.1} parent=1 // pred_check
      _
    $region47: #{tpu_custom_call.1} parent=1 // pred_check_branch
      %144 = sbr.rel (0) target = $region49
    $region48: #{tpu_custom_call.1} parent=1 // pred_region
      %145 = dma.done [#allocation3], 4096
    $region49: #{tpu_custom_call.1} parent=1 // pred_fallthru
      _
    // Predicated region
    $region50: #{tpu_custom_call.1} parent=1 // pred_check
      _
    $region51: #{tpu_custom_call.1} parent=1 // pred_check_branch
      %147 = sbr.rel (0) target = $region53
    $region52: #{tpu_custom_call.1} parent=1 // pred_region
      %148 = dma.done [#allocation6], 16
    $region53: #{tpu_custom_call.1} parent=1 // pred_fallthru
      _
    // Predicated region
    $region54: #{tpu_custom_call.1} parent=1 // pred_check
      _
    $region55: #{tpu_custom_call.1} parent=1 // pred_check_branch
      %150 = sbr.rel (0) target = $region57
    $region56: #{tpu_custom_call.1} parent=1 // pred_region
      %151 = dma.done [#allocation6], 16
    $region57: #{tpu_custom_call.1} parent=1 // pred_fallthru
      _
    // Predicated region
    $region58: #{tpu_custom_call.1} parent=1 // pred_check
      _
    $region59: #{tpu_custom_call.1} parent=1 // pred_check_branch
      %153 = sbr.rel (0) target = $region61
    $region60: #{tpu_custom_call.1} parent=1 // pred_region
      %154 = dma.done [#allocation9], 256
    $region61: #{tpu_custom_call.1} parent=1 // pred_fallthru
      _
    // Predicated region
    $region62: #{tpu_custom_call.1} parent=1 // pred_check
      _
    $region63: #{tpu_custom_call.1} parent=1 // pred_check_branch
      %156 = sbr.rel (0) target = $region65
    $region64: #{tpu_custom_call.1} parent=1 // pred_region
      %157 = dma.done [#allocation9], 16
    $region65: #{tpu_custom_call.1} parent=1 // pred_fallthru
      _
    // Predicated region
    $region66: #{tpu_custom_call.1} parent=1 // pred_check
      _
    $region67: #{tpu_custom_call.1} parent=1 // pred_check_branch
      %159 = sbr.rel (0) target = $region69
    $region68: #{tpu_custom_call.1} parent=1 // pred_region
      %160 = dma.done [#allocation12], 512
    $region69: #{tpu_custom_call.1} parent=1 // pred_fallthru
      _
    // Predicated region
    $region70: #{tpu_custom_call.1} parent=1 // pred_check
      _
    $region71: #{tpu_custom_call.1} parent=1 // pred_check_branch
      %162 = sbr.rel (0) target = $region73
    $region72: #{tpu_custom_call.1} parent=1 // pred_region
      %163 = dma.done [#allocation12], 16
    $region73: #{tpu_custom_call.1} parent=1 // pred_fallthru
      _
    // Predicated region
    $region74: #{tpu_custom_call.1} parent=1 // pred_check
      _
    $region75: #{tpu_custom_call.1} parent=1 // pred_check_branch
      %165 = sbr.rel (0) target = $region77
    $region76: #{tpu_custom_call.1} parent=1 // pred_region
      %166 = dma.done [#allocation15], 256
    $region77: #{tpu_custom_call.1} parent=1 // pred_fallthru
      _
    // Predicated region
    $region78: #{tpu_custom_call.1} parent=1 // pred_check
      _
    $region79: #{tpu_custom_call.1} parent=1 // pred_check_branch
      %168 = sbr.rel (0) target = $region81
    $region80: #{tpu_custom_call.1} parent=1 // pred_region
      %169 = dma.done [#allocation15], 16
    $region81: #{tpu_custom_call.1} parent=1 // pred_fallthru
      _
    // Predicated region
    $region82: #{tpu_custom_call.1} parent=1 // pred_check
      _
    $region83: #{tpu_custom_call.1} parent=1 // pred_check_branch
      %171 = sbr.rel (0) target = $region85
    $region84: #{tpu_custom_call.1} parent=1 // pred_region
      %172 = dma.done [#allocation18], 512
    $region85: #{tpu_custom_call.1} parent=1 // pred_fallthru
      _
    // Predicated region
    $region86: #{tpu_custom_call.1} parent=1 // pred_check
      _
    $region87: #{tpu_custom_call.1} parent=1 // pred_check_branch
      %174 = sbr.rel (0) target = $region89
    $region88: #{tpu_custom_call.1} parent=1 // pred_region
      %175 = dma.done [#allocation18], 16
    $region89: #{tpu_custom_call.1} parent=1 // pred_fallthru
      _
    %v176 = vld [vmem:[#allocation2] sm:$0xff]
    %v177 = vld [vmem:[#allocation2 + $0x8] sm:$0xff]
    %v178 = vld [vmem:[#allocation2 + $0x10] sm:$0xff]
    %v179 = vld [vmem:[#allocation2 + $0x18] sm:$0xff]
    %v180 = vld [vmem:[#allocation2 + $0x20] sm:$0xff]
    %v181 = vld [vmem:[#allocation2 + $0x28] sm:$0xff]
    %v182 = vld [vmem:[#allocation2 + $0x30] sm:$0xff]
    %v183 = vld [vmem:[#allocation2 + $0x38] sm:$0xff]
    %v184 = vld [vmem:[#allocation2 + $0x40] sm:$0xff]
    %v185 = vld [vmem:[#allocation2 + $0x48] sm:$0xff]
    %v186 = vld [vmem:[#allocation2 + $0x50] sm:$0xff]
    %v187 = vld [vmem:[#allocation2 + $0x58] sm:$0xff]
    %v188 = vld [vmem:[#allocation2 + $0x60] sm:$0xff]
    %v189 = vld [vmem:[#allocation2 + $0x68] sm:$0xff]
    %v190 = vld [vmem:[#allocation2 + $0x70] sm:$0xff]
    %v191 = vld [vmem:[#allocation2 + $0x78] sm:$0xff]
    %v192 = vld [vmem:[#allocation2 + $0x80] sm:$0xff]
    %v193 = vld [vmem:[#allocation2 + $0x88] sm:$0xff]
    %v194 = vld [vmem:[#allocation2 + $0x90] sm:$0xff]
    %v195 = vld [vmem:[#allocation2 + $0x98] sm:$0xff]
    %v196 = vld [vmem:[#allocation2 + $0xa0] sm:$0xff]
    %v197 = vld [vmem:[#allocation2 + $0xa8] sm:$0xff]
    %v198 = vld [vmem:[#allocation2 + $0xb0] sm:$0xff]
    %v199 = vld [vmem:[#allocation2 + $0xb8] sm:$0xff]
    %v200 = vld [vmem:[#allocation2 + $0xc0] sm:$0xff]
    %v201 = vld [vmem:[#allocation2 + $0xc8] sm:$0xff]
    %v202 = vld [vmem:[#allocation2 + $0xd0] sm:$0xff]
    %v203 = vld [vmem:[#allocation2 + $0xd8] sm:$0xff]
    %v204 = vld [vmem:[#allocation2 + $0xe0] sm:$0xff]
    %v205 = vld [vmem:[#allocation2 + $0xe8] sm:$0xff]
    %v206 = vld [vmem:[#allocation2 + $0xf0] sm:$0xff]
    %v207 = vld [vmem:[#allocation2 + $0xf8] sm:$0xff]
    %v208 = vld [vmem:[#allocation5] sm:$0x1]
    %v209 = vld [vmem:[#allocation7] sm:$0x1]
    %vm210 = vcmask 130048
    %v211 = vsel %vm210, %v176, 0.0
    %212 = vadd.xlane.f32.xlu0 %v211
    %v213 = vpop.xlane.xlu0 %212
    %v214 = vsel %vm210, %v177, 0.0
    %215 = vadd.xlane.f32.xlu0 %v214
    %v216 = vpop.xlane.xlu0 %215
    %v217 = vsel %vm210, %v178, 0.0
    %218 = vadd.xlane.f32.xlu0 %v217
    %v219 = vpop.xlane.xlu0 %218
    %v220 = vsel %vm210, %v179, 0.0
    %221 = vadd.xlane.f32.xlu0 %v220
    %v222 = vpop.xlane.xlu0 %221
    %v223 = vsel %vm210, %v180, 0.0
    %224 = vadd.xlane.f32.xlu0 %v223
    %v225 = vpop.xlane.xlu0 %224
    %v226 = vsel %vm210, %v181, 0.0
    %227 = vadd.xlane.f32.xlu0 %v226
    %v228 = vpop.xlane.xlu0 %227
    %v229 = vsel %vm210, %v182, 0.0
    %230 = vadd.xlane.f32.xlu0 %v229
    %v231 = vpop.xlane.xlu0 %230
    %v232 = vsel %vm210, %v183, 0.0
    %233 = vadd.xlane.f32.xlu0 %v232
    %v234 = vpop.xlane.xlu0 %233
    %v235 = vsel %vm210, %v184, 0.0
    %236 = vadd.xlane.f32.xlu0 %v235
    %v237 = vpop.xlane.xlu0 %236
    %v238 = vsel %vm210, %v185, 0.0
    %239 = vadd.xlane.f32.xlu0 %v238
    %v240 = vpop.xlane.xlu0 %239
    %v241 = vsel %vm210, %v186, 0.0
    %242 = vadd.xlane.f32.xlu0 %v241
    %v243 = vpop.xlane.xlu0 %242
    %v244 = vsel %vm210, %v187, 0.0
    %245 = vadd.xlane.f32.xlu0 %v244
    %v246 = vpop.xlane.xlu0 %245
    %v247 = vsel %vm210, %v188, 0.0
    %248 = vadd.xlane.f32.xlu0 %v247
    %v249 = vpop.xlane.xlu0 %248
    %v250 = vsel %vm210, %v189, 0.0
    %251 = vadd.xlane.f32.xlu0 %v250
    %v252 = vpop.xlane.xlu0 %251
    %v253 = vsel %vm210, %v190, 0.0
    %254 = vadd.xlane.f32.xlu0 %v253
    %v255 = vpop.xlane.xlu0 %254
    %v256 = vsel %vm210, %v191, 0.0
    %257 = vadd.xlane.f32.xlu0 %v256
    %v258 = vpop.xlane.xlu0 %257
    %v259 = vsel %vm210, %v192, 0.0
    %260 = vadd.xlane.f32.xlu0 %v259
    %v261 = vpop.xlane.xlu0 %260
    %v262 = vsel %vm210, %v193, 0.0
    %263 = vadd.xlane.f32.xlu0 %v262
    %v264 = vpop.xlane.xlu0 %263
    %v265 = vsel %vm210, %v194, 0.0
    %266 = vadd.xlane.f32.xlu0 %v265
    %v267 = vpop.xlane.xlu0 %266
    %v268 = vsel %vm210, %v195, 0.0
    %269 = vadd.xlane.f32.xlu0 %v268
    %v270 = vpop.xlane.xlu0 %269
    %v271 = vsel %vm210, %v196, 0.0
    %272 = vadd.xlane.f32.xlu0 %v271
    %v273 = vpop.xlane.xlu0 %272
    %v274 = vsel %vm210, %v197, 0.0
    %275 = vadd.xlane.f32.xlu0 %v274
    %v276 = vpop.xlane.xlu0 %275
    %v277 = vsel %vm210, %v198, 0.0
    %278 = vadd.xlane.f32.xlu0 %v277
    %v279 = vpop.xlane.xlu0 %278
    %v280 = vsel %vm210, %v199, 0.0
    %281 = vadd.xlane.f32.xlu0 %v280
    %v282 = vpop.xlane.xlu0 %281
    %v283 = vsel %vm210, %v200, 0.0
    %284 = vadd.xlane.f32.xlu0 %v283
    %v285 = vpop.xlane.xlu0 %284
    %v286 = vsel %vm210, %v201, 0.0
    %287 = vadd.xlane.f32.xlu0 %v286
    %v288 = vpop.xlane.xlu0 %287
    %v289 = vsel %vm210, %v202, 0.0
    %290 = vadd.xlane.f32.xlu0 %v289
    %v291 = vpop.xlane.xlu0 %290
    %v292 = vsel %vm210, %v203, 0.0
    %293 = vadd.xlane.f32.xlu0 %v292
    %v294 = vpop.xlane.xlu0 %293
    %v295 = vsel %vm210, %v204, 0.0
    %296 = vadd.xlane.f32.xlu0 %v295
    %v297 = vpop.xlane.xlu0 %296
    %v298 = vsel %vm210, %v205, 0.0
    %299 = vadd.xlane.f32.xlu0 %v298
    %v300 = vpop.xlane.xlu0 %299
    %v301 = vsel %vm210, %v206, 0.0
    %302 = vadd.xlane.f32.xlu0 %v301
    %v303 = vpop.xlane.xlu0 %302
    %v304 = vsel %vm210, %v207, 0.0
    %305 = vadd.xlane.f32.xlu0 %v304
    %v306 = vpop.xlane.xlu0 %305
    %v307 = vrcp.pop 16.0
    %v308 = vmul.f32 %v213, %v307
    %v309 = vmul.f32 %v216, %v307
    %v310 = vmul.f32 %v219, %v307
    %v311 = vmul.f32 %v222, %v307
    %v312 = vmul.f32 %v225, %v307
    %v313 = vmul.f32 %v228, %v307
    %v314 = vmul.f32 %v231, %v307
    %v315 = vmul.f32 %v234, %v307
    %v316 = vmul.f32 %v237, %v307
    %v317 = vmul.f32 %v240, %v307
    %v318 = vmul.f32 %v243, %v307
    %v319 = vmul.f32 %v246, %v307
    %v320 = vmul.f32 %v249, %v307
    %v321 = vmul.f32 %v252, %v307
    %v322 = vmul.f32 %v255, %v307
    %v323 = vmul.f32 %v258, %v307
    %v324 = vmul.f32 %v261, %v307
    %v325 = vmul.f32 %v264, %v307
    %v326 = vmul.f32 %v267, %v307
    %v327 = vmul.f32 %v270, %v307
    %v328 = vmul.f32 %v273, %v307
    %v329 = vmul.f32 %v276, %v307
    %v330 = vmul.f32 %v279, %v307
    %v331 = vmul.f32 %v282, %v307
    %v332 = vmul.f32 %v285, %v307
    %v333 = vmul.f32 %v288, %v307
    %v334 = vmul.f32 %v291, %v307
    %v335 = vmul.f32 %v294, %v307
    %v336 = vmul.f32 %v297, %v307
    %v337 = vmul.f32 %v300, %v307
    %v338 = vmul.f32 %v303, %v307
    %v339 = vmul.f32 %v306, %v307
    %v340 = vsub.f32 %v176, %v308
    %v341 = vsub.f32 %v177, %v309
    %v342 = vsub.f32 %v178, %v310
    %v343 = vsub.f32 %v179, %v311
    %v344 = vsub.f32 %v180, %v312
    %v345 = vsub.f32 %v181, %v313
    %v346 = vsub.f32 %v182, %v314
    %v347 = vsub.f32 %v183, %v315
    %v348 = vsub.f32 %v184, %v316
    %v349 = vsub.f32 %v185, %v317
    %v350 = vsub.f32 %v186, %v318
    %v351 = vsub.f32 %v187, %v319
    %v352 = vsub.f32 %v188, %v320
    %v353 = vsub.f32 %v189, %v321
    %v354 = vsub.f32 %v190, %v322
    %v355 = vsub.f32 %v191, %v323
    %v356 = vsub.f32 %v192, %v324
    %v357 = vsub.f32 %v193, %v325
    %v358 = vsub.f32 %v194, %v326
    %v359 = vsub.f32 %v195, %v327
    %v360 = vsub.f32 %v196, %v328
    %v361 = vsub.f32 %v197, %v329
    %v362 = vsub.f32 %v198, %v330
    %v363 = vsub.f32 %v199, %v331
    %v364 = vsub.f32 %v200, %v332
    %v365 = vsub.f32 %v201, %v333
    %v366 = vsub.f32 %v202, %v334
    %v367 = vsub.f32 %v203, %v335
    %v368 = vsub.f32 %v204, %v336
    %v369 = vsub.f32 %v205, %v337
    %v370 = vsub.f32 %v206, %v338
    %v371 = vsub.f32 %v207, %v339
    %v372 = vmul.f32 %v340, %v340
    %v373 = vmul.f32 %v341, %v341
    %v374 = vmul.f32 %v342, %v342
    %v375 = vmul.f32 %v343, %v343
    %v376 = vmul.f32 %v344, %v344
    %v377 = vmul.f32 %v345, %v345
    %v378 = vmul.f32 %v346, %v346
    %v379 = vmul.f32 %v347, %v347
    %v380 = vmul.f32 %v348, %v348
    %v381 = vmul.f32 %v349, %v349
    %v382 = vmul.f32 %v350, %v350
    %v383 = vmul.f32 %v351, %v351
    %v384 = vmul.f32 %v352, %v352
    %v385 = vmul.f32 %v353, %v353
    %v386 = vmul.f32 %v354, %v354
    %v387 = vmul.f32 %v355, %v355
    %v388 = vmul.f32 %v356, %v356
    %v389 = vmul.f32 %v357, %v357
    %v390 = vmul.f32 %v358, %v358
    %v391 = vmul.f32 %v359, %v359
    %v392 = vmul.f32 %v360, %v360
    %v393 = vmul.f32 %v361, %v361
    %v394 = vmul.f32 %v362, %v362
    %v395 = vmul.f32 %v363, %v363
    %v396 = vmul.f32 %v364, %v364
    %v397 = vmul.f32 %v365, %v365
    %v398 = vmul.f32 %v366, %v366
    %v399 = vmul.f32 %v367, %v367
    %v400 = vmul.f32 %v368, %v368
    %v401 = vmul.f32 %v369, %v369
    %v402 = vmul.f32 %v370, %v370
    %v403 = vmul.f32 %v371, %v371
    %v404 = vsel %vm210, %v372, 0.0
    %405 = vadd.xlane.f32.xlu0 %v404
    %v406 = vpop.xlane.xlu0 %405
    %v407 = vsel %vm210, %v373, 0.0
    %408 = vadd.xlane.f32.xlu0 %v407
    %v409 = vpop.xlane.xlu0 %408
    %v410 = vsel %vm210, %v374, 0.0
    %411 = vadd.xlane.f32.xlu0 %v410
    %v412 = vpop.xlane.xlu0 %411
    %v413 = vsel %vm210, %v375, 0.0
    %414 = vadd.xlane.f32.xlu0 %v413
    %v415 = vpop.xlane.xlu0 %414
    %v416 = vsel %vm210, %v376, 0.0
    %417 = vadd.xlane.f32.xlu0 %v416
    %v418 = vpop.xlane.xlu0 %417
    %v419 = vsel %vm210, %v377, 0.0
    %420 = vadd.xlane.f32.xlu0 %v419
    %v421 = vpop.xlane.xlu0 %420
    %v422 = vsel %vm210, %v378, 0.0
    %423 = vadd.xlane.f32.xlu0 %v422
    %v424 = vpop.xlane.xlu0 %423
    %v425 = vsel %vm210, %v379, 0.0
    %426 = vadd.xlane.f32.xlu0 %v425
    %v427 = vpop.xlane.xlu0 %426
    %v428 = vsel %vm210, %v380, 0.0
    %429 = vadd.xlane.f32.xlu0 %v428
    %v430 = vpop.xlane.xlu0 %429
    %v431 = vsel %vm210, %v381, 0.0
    %432 = vadd.xlane.f32.xlu0 %v431
    %v433 = vpop.xlane.xlu0 %432
    %v434 = vsel %vm210, %v382, 0.0
    %435 = vadd.xlane.f32.xlu0 %v434
    %v436 = vpop.xlane.xlu0 %435
    %v437 = vsel %vm210, %v383, 0.0
    %438 = vadd.xlane.f32.xlu0 %v437
    %v439 = vpop.xlane.xlu0 %438
    %v440 = vsel %vm210, %v384, 0.0
    %441 = vadd.xlane.f32.xlu0 %v440
    %v442 = vpop.xlane.xlu0 %441
    %v443 = vsel %vm210, %v385, 0.0
    %444 = vadd.xlane.f32.xlu0 %v443
    %v445 = vpop.xlane.xlu0 %444
    %v446 = vsel %vm210, %v386, 0.0
    %447 = vadd.xlane.f32.xlu0 %v446
    %v448 = vpop.xlane.xlu0 %447
    %v449 = vsel %vm210, %v387, 0.0
    %450 = vadd.xlane.f32.xlu0 %v449
    %v451 = vpop.xlane.xlu0 %450
    %v452 = vsel %vm210, %v388, 0.0
    %453 = vadd.xlane.f32.xlu0 %v452
    %v454 = vpop.xlane.xlu0 %453
    %v455 = vsel %vm210, %v389, 0.0
    %456 = vadd.xlane.f32.xlu0 %v455
    %v457 = vpop.xlane.xlu0 %456
    %v458 = vsel %vm210, %v390, 0.0
    %459 = vadd.xlane.f32.xlu0 %v458
    %v460 = vpop.xlane.xlu0 %459
    %v461 = vsel %vm210, %v391, 0.0
    %462 = vadd.xlane.f32.xlu0 %v461
    %v463 = vpop.xlane.xlu0 %462
    %v464 = vsel %vm210, %v392, 0.0
    %465 = vadd.xlane.f32.xlu0 %v464
    %v466 = vpop.xlane.xlu0 %465
    %v467 = vsel %vm210, %v393, 0.0
    %468 = vadd.xlane.f32.xlu0 %v467
    %v469 = vpop.xlane.xlu0 %468
    %v470 = vsel %vm210, %v394, 0.0
    %471 = vadd.xlane.f32.xlu0 %v470
    %v472 = vpop.xlane.xlu0 %471
    %v473 = vsel %vm210, %v395, 0.0
    %474 = vadd.xlane.f32.xlu0 %v473
    %v475 = vpop.xlane.xlu0 %474
    %v476 = vsel %vm210, %v396, 0.0
    %477 = vadd.xlane.f32.xlu0 %v476
    %v478 = vpop.xlane.xlu0 %477
    %v479 = vsel %vm210, %v397, 0.0
    %480 = vadd.xlane.f32.xlu0 %v479
    %v481 = vpop.xlane.xlu0 %480
    %v482 = vsel %vm210, %v398, 0.0
    %483 = vadd.xlane.f32.xlu0 %v482
    %v484 = vpop.xlane.xlu0 %483
    %v485 = vsel %vm210, %v399, 0.0
    %486 = vadd.xlane.f32.xlu0 %v485
    %v487 = vpop.xlane.xlu0 %486
    %v488 = vsel %vm210, %v400, 0.0
    %489 = vadd.xlane.f32.xlu0 %v488
    %v490 = vpop.xlane.xlu0 %489
    %v491 = vsel %vm210, %v401, 0.0
    %492 = vadd.xlane.f32.xlu0 %v491
    %v493 = vpop.xlane.xlu0 %492
    %v494 = vsel %vm210, %v402, 0.0
    %495 = vadd.xlane.f32.xlu0 %v494
    %v496 = vpop.xlane.xlu0 %495
    %v497 = vsel %vm210, %v403, 0.0
    %498 = vadd.xlane.f32.xlu0 %v497
    %v499 = vpop.xlane.xlu0 %498
    %v500 = vmul.f32 %v406, %v307
    %v501 = vmul.f32 %v409, %v307
    %v502 = vmul.f32 %v412, %v307
    %v503 = vmul.f32 %v415, %v307
    %v504 = vmul.f32 %v418, %v307
    %v505 = vmul.f32 %v421, %v307
    %v506 = vmul.f32 %v424, %v307
    %v507 = vmul.f32 %v427, %v307
    %v508 = vmul.f32 %v430, %v307
    %v509 = vmul.f32 %v433, %v307
    %v510 = vmul.f32 %v436, %v307
    %v511 = vmul.f32 %v439, %v307
    %v512 = vmul.f32 %v442, %v307
    %v513 = vmul.f32 %v445, %v307
    %v514 = vmul.f32 %v448, %v307
    %v515 = vmul.f32 %v451, %v307
    %v516 = vmul.f32 %v454, %v307
    %v517 = vmul.f32 %v457, %v307
    %v518 = vmul.f32 %v460, %v307
    %v519 = vmul.f32 %v463, %v307
    %v520 = vmul.f32 %v466, %v307
    %v521 = vmul.f32 %v469, %v307
    %v522 = vmul.f32 %v472, %v307
    %v523 = vmul.f32 %v475, %v307
    %v524 = vmul.f32 %v478, %v307
    %v525 = vmul.f32 %v481, %v307
    %v526 = vmul.f32 %v484, %v307
    %v527 = vmul.f32 %v487, %v307
    %v528 = vmul.f32 %v490, %v307
    %v529 = vmul.f32 %v493, %v307
    %v530 = vmul.f32 %v496, %v307
    %v531 = vmul.f32 %v499, %v307
    %v532 = vadd.f32 %v500, 1e-05
    %v533 = vadd.f32 %v501, 1e-05
    %v534 = vadd.f32 %v502, 1e-05
    %v535 = vadd.f32 %v503, 1e-05
    %v536 = vadd.f32 %v504, 1e-05
    %v537 = vadd.f32 %v505, 1e-05
    %v538 = vadd.f32 %v506, 1e-05
    %v539 = vadd.f32 %v507, 1e-05
    %v540 = vadd.f32 %v508, 1e-05
    %v541 = vadd.f32 %v509, 1e-05
    %v542 = vadd.f32 %v510, 1e-05
    %v543 = vadd.f32 %v511, 1e-05
    %v544 = vadd.f32 %v512, 1e-05
    %v545 = vadd.f32 %v513, 1e-05
    %v546 = vadd.f32 %v514, 1e-05
    %v547 = vadd.f32 %v515, 1e-05
    %v548 = vadd.f32 %v516, 1e-05
    %v549 = vadd.f32 %v517, 1e-05
    %v550 = vadd.f32 %v518, 1e-05
    %v551 = vadd.f32 %v519, 1e-05
    %v552 = vadd.f32 %v520, 1e-05
    %v553 = vadd.f32 %v521, 1e-05
    %v554 = vadd.f32 %v522, 1e-05
    %v555 = vadd.f32 %v523, 1e-05
    %v556 = vadd.f32 %v524, 1e-05
    %v557 = vadd.f32 %v525, 1e-05
    %v558 = vadd.f32 %v526, 1e-05
    %v559 = vadd.f32 %v527, 1e-05
    %v560 = vadd.f32 %v528, 1e-05
    %v561 = vadd.f32 %v529, 1e-05
    %v562 = vadd.f32 %v530, 1e-05
    %v563 = vadd.f32 %v531, 1e-05
    %v564 = vrsqrt.pop %v532
    %v565 = vrsqrt.pop %v533
    %v566 = vrsqrt.pop %v534
    %v567 = vrsqrt.pop %v535
    %v568 = vrsqrt.pop %v536
    %v569 = vrsqrt.pop %v537
    %v570 = vrsqrt.pop %v538
    %v571 = vrsqrt.pop %v539
    %v572 = vrsqrt.pop %v540
    %v573 = vrsqrt.pop %v541
    %v574 = vrsqrt.pop %v542
    %v575 = vrsqrt.pop %v543
    %v576 = vrsqrt.pop %v544
    %v577 = vrsqrt.pop %v545
    %v578 = vrsqrt.pop %v546
    %v579 = vrsqrt.pop %v547
    %v580 = vrsqrt.pop %v548
    %v581 = vrsqrt.pop %v549
    %v582 = vrsqrt.pop %v550
    %v583 = vrsqrt.pop %v551
    %v584 = vrsqrt.pop %v552
    %v585 = vrsqrt.pop %v553
    %v586 = vrsqrt.pop %v554
    %v587 = vrsqrt.pop %v555
    %v588 = vrsqrt.pop %v556
    %v589 = vrsqrt.pop %v557
    %v590 = vrsqrt.pop %v558
    %v591 = vrsqrt.pop %v559
    %v592 = vrsqrt.pop %v560
    %v593 = vrsqrt.pop %v561
    %v594 = vrsqrt.pop %v562
    %v595 = vrsqrt.pop %v563
    %v596 = vmul.f32 %v340, %v564
    %v597 = vmul.f32 %v341, %v565
    %v598 = vmul.f32 %v342, %v566
    %v599 = vmul.f32 %v343, %v567
    %v600 = vmul.f32 %v344, %v568
    %v601 = vmul.f32 %v345, %v569
    %v602 = vmul.f32 %v346, %v570
    %v603 = vmul.f32 %v347, %v571
    %v604 = vmul.f32 %v348, %v572
    %v605 = vmul.f32 %v349, %v573
    %v606 = vmul.f32 %v350, %v574
    %v607 = vmul.f32 %v351, %v575
    %v608 = vmul.f32 %v352, %v576
    %v609 = vmul.f32 %v353, %v577
    %v610 = vmul.f32 %v354, %v578
    %v611 = vmul.f32 %v355, %v579
    %v612 = vmul.f32 %v356, %v580
    %v613 = vmul.f32 %v357, %v581
    %v614 = vmul.f32 %v358, %v582
    %v615 = vmul.f32 %v359, %v583
    %v616 = vmul.f32 %v360, %v584
    %v617 = vmul.f32 %v361, %v585
    %v618 = vmul.f32 %v362, %v586
    %v619 = vmul.f32 %v363, %v587
    %v620 = vmul.f32 %v364, %v588
    %v621 = vmul.f32 %v365, %v589
    %v622 = vmul.f32 %v366, %v590
    %v623 = vmul.f32 %v367, %v591
    %v624 = vmul.f32 %v368, %v592
    %v625 = vmul.f32 %v369, %v593
    %v626 = vmul.f32 %v370, %v594
    %v627 = vmul.f32 %v371, %v595
    %v629 = vlaneseq
    %v630 = vshrl.u32 %v629, 7
    %v631 = vsub.s32 0, %v630
    %v632 = vrot.slane %v208, %v631
    %v634 = vmul.f32 %v596, %v632
    %v635 = vmul.f32 %v597, %v632
    %v636 = vmul.f32 %v598, %v632
    %v637 = vmul.f32 %v599, %v632
    %v638 = vmul.f32 %v600, %v632
    %v639 = vmul.f32 %v601, %v632
    %v640 = vmul.f32 %v602, %v632
    %v641 = vmul.f32 %v603, %v632
    %v642 = vmul.f32 %v604, %v632
    %v643 = vmul.f32 %v605, %v632
    %v644 = vmul.f32 %v606, %v632
    %v645 = vmul.f32 %v607, %v632
    %v646 = vmul.f32 %v608, %v632
    %v647 = vmul.f32 %v609, %v632
    %v648 = vmul.f32 %v610, %v632
    %v649 = vmul.f32 %v611, %v632
    %v650 = vmul.f32 %v612, %v632
    %v651 = vmul.f32 %v613, %v632
    %v652 = vmul.f32 %v614, %v632
    %v653 = vmul.f32 %v615, %v632
    %v654 = vmul.f32 %v616, %v632
    %v655 = vmul.f32 %v617, %v632
    %v656 = vmul.f32 %v618, %v632
    %v657 = vmul.f32 %v619, %v632
    %v658 = vmul.f32 %v620, %v632
    %v659 = vmul.f32 %v621, %v632
    %v660 = vmul.f32 %v622, %v632
    %v661 = vmul.f32 %v623, %v632
    %v662 = vmul.f32 %v624, %v632
    %v663 = vmul.f32 %v625, %v632
    %v664 = vmul.f32 %v626, %v632
    %v665 = vmul.f32 %v627, %v632
    %v667 = vlaneseq
    %v668 = vshrl.u32 %v667, 7
    %v669 = vsub.s32 0, %v668
    %v670 = vrot.slane %v209, %v669
    %v672 = vadd.f32 %v634, %v670
    %v673 = vadd.f32 %v635, %v670
    %v674 = vadd.f32 %v636, %v670
    %v675 = vadd.f32 %v637, %v670
    %v676 = vadd.f32 %v638, %v670
    %v677 = vadd.f32 %v639, %v670
    %v678 = vadd.f32 %v640, %v670
    %v679 = vadd.f32 %v641, %v670
    %v680 = vadd.f32 %v642, %v670
    %v681 = vadd.f32 %v643, %v670
    %v682 = vadd.f32 %v644, %v670
    %v683 = vadd.f32 %v645, %v670
    %v684 = vadd.f32 %v646, %v670
    %v685 = vadd.f32 %v647, %v670
    %v686 = vadd.f32 %v648, %v670
    %v687 = vadd.f32 %v649, %v670
    %v688 = vadd.f32 %v650, %v670
    %v689 = vadd.f32 %v651, %v670
    %v690 = vadd.f32 %v652, %v670
    %v691 = vadd.f32 %v653, %v670
    %v692 = vadd.f32 %v654, %v670
    %v693 = vadd.f32 %v655, %v670
    %v694 = vadd.f32 %v656, %v670
    %v695 = vadd.f32 %v657, %v670
    %v696 = vadd.f32 %v658, %v670
    %v697 = vadd.f32 %v659, %v670
    %v698 = vadd.f32 %v660, %v670
    %v699 = vadd.f32 %v661, %v670
    %v700 = vadd.f32 %v662, %v670
    %v701 = vadd.f32 %v663, %v670
    %v702 = vadd.f32 %v664, %v670
    %v703 = vadd.f32 %v665, %v670
    %704 = vxpose.xlu0.b32.start [1/16] %v672, 128
    %705 = vxpose.xlu0.b32.cont [2/16] %v673, 128
    %706 = vxpose.xlu0.b32.cont [3/16] 0.0, 128
    %707 = vxpose.xlu0.b32.cont [4/16] 0.0, 128
    %708 = vxpose.xlu0.b32.cont [5/16] 0.0, 128
    %709 = vxpose.xlu0.b32.cont [6/16] 0.0, 128
    %710 = vxpose.xlu0.b32.cont [7/16] 0.0, 128
    %711 = vxpose.xlu0.b32.cont [8/16] 0.0, 128
    %712 = vxpose.xlu0.b32.cont [9/16] 0.0, 128
    %713 = vxpose.xlu0.b32.cont [10/16] 0.0, 128
    %714 = vxpose.xlu0.b32.cont [11/16] 0.0, 128
    %715 = vxpose.xlu0.b32.cont [12/16] 0.0, 128
    %716 = vxpose.xlu0.b32.cont [13/16] 0.0, 128
    %717 = vxpose.xlu0.b32.cont [14/16] 0.0, 128
    %718 = vxpose.xlu0.b32.cont [15/16] 0.0, 128
    %719 = vxpose.xlu0.b32.end [16/16] 0.0, 128
    %v720 = vpop.trf.xlu0
    %v721 = vpop.trf.xlu0
    %v722 = vpop.trf.xlu0
    %v723 = vpop.trf.xlu0
    %v724 = vpop.trf.xlu0
    %v725 = vpop.trf.xlu0
    %v726 = vpop.trf.xlu0
    %v727 = vpop.trf.xlu0
    %v728 = vpop.trf.xlu0
    %v729 = vpop.trf.xlu0
    %v730 = vpop.trf.xlu0
    %v731 = vpop.trf.xlu0
    %v732 = vpop.trf.xlu0
    %v733 = vpop.trf.xlu0
    %v734 = vpop.trf.xlu0
    %v735 = vpop.trf.xlu0
    %736 = vxpose.xlu0.b32.start [1/16] %v674, 128
    %737 = vxpose.xlu0.b32.cont [2/16] %v675, 128
    %738 = vxpose.xlu0.b32.cont [3/16] 0.0, 128
    %739 = vxpose.xlu0.b32.cont [4/16] 0.0, 128
    %740 = vxpose.xlu0.b32.cont [5/16] 0.0, 128
    %741 = vxpose.xlu0.b32.cont [6/16] 0.0, 128
    %742 = vxpose.xlu0.b32.cont [7/16] 0.0, 128
    %743 = vxpose.xlu0.b32.cont [8/16] 0.0, 128
    %744 = vxpose.xlu0.b32.cont [9/16] 0.0, 128
    %745 = vxpose.xlu0.b32.cont [10/16] 0.0, 128
    %746 = vxpose.xlu0.b32.cont [11/16] 0.0, 128
    %747 = vxpose.xlu0.b32.cont [12/16] 0.0, 128
    %748 = vxpose.xlu0.b32.cont [13/16] 0.0, 128
    %749 = vxpose.xlu0.b32.cont [14/16] 0.0, 128
    %750 = vxpose.xlu0.b32.cont [15/16] 0.0, 128
    %751 = vxpose.xlu0.b32.end [16/16] 0.0, 128
    %v752 = vpop.trf.xlu0
    %v753 = vpop.trf.xlu0
    %v754 = vpop.trf.xlu0
    %v755 = vpop.trf.xlu0
    %v756 = vpop.trf.xlu0
    %v757 = vpop.trf.xlu0
    %v758 = vpop.trf.xlu0
    %v759 = vpop.trf.xlu0
    %v760 = vpop.trf.xlu0
    %v761 = vpop.trf.xlu0
    %v762 = vpop.trf.xlu0
    %v763 = vpop.trf.xlu0
    %v764 = vpop.trf.xlu0
    %v765 = vpop.trf.xlu0
    %v766 = vpop.trf.xlu0
    %v767 = vpop.trf.xlu0
    %768 = vxpose.xlu0.b32.start [1/16] %v676, 128
    %769 = vxpose.xlu0.b32.cont [2/16] %v677, 128
    %770 = vxpose.xlu0.b32.cont [3/16] 0.0, 128
    %771 = vxpose.xlu0.b32.cont [4/16] 0.0, 128
    %772 = vxpose.xlu0.b32.cont [5/16] 0.0, 128
    %773 = vxpose.xlu0.b32.cont [6/16] 0.0, 128
    %774 = vxpose.xlu0.b32.cont [7/16] 0.0, 128
    %775 = vxpose.xlu0.b32.cont [8/16] 0.0, 128
    %776 = vxpose.xlu0.b32.cont [9/16] 0.0, 128
    %777 = vxpose.xlu0.b32.cont [10/16] 0.0, 128
    %778 = vxpose.xlu0.b32.cont [11/16] 0.0, 128
    %779 = vxpose.xlu0.b32.cont [12/16] 0.0, 128
    %780 = vxpose.xlu0.b32.cont [13/16] 0.0, 128
    %781 = vxpose.xlu0.b32.cont [14/16] 0.0, 128
    %782 = vxpose.xlu0.b32.cont [15/16] 0.0, 128
    %783 = vxpose.xlu0.b32.end [16/16] 0.0, 128
    %v784 = vpop.trf.xlu0
    %v785 = vpop.trf.xlu0
    %v786 = vpop.trf.xlu0
    %v787 = vpop.trf.xlu0
    %v788 = vpop.trf.xlu0
    %v789 = vpop.trf.xlu0
    %v790 = vpop.trf.xlu0
    %v791 = vpop.trf.xlu0
    %v792 = vpop.trf.xlu0
    %v793 = vpop.trf.xlu0
    %v794 = vpop.trf.xlu0
    %v795 = vpop.trf.xlu0
    %v796 = vpop.trf.xlu0
    %v797 = vpop.trf.xlu0
    %v798 = vpop.trf.xlu0
    %v799 = vpop.trf.xlu0
    %800 = vxpose.xlu0.b32.start [1/16] %v678, 128
    %801 = vxpose.xlu0.b32.cont [2/16] %v679, 128
    %802 = vxpose.xlu0.b32.cont [3/16] 0.0, 128
    %803 = vxpose.xlu0.b32.cont [4/16] 0.0, 128
    %804 = vxpose.xlu0.b32.cont [5/16] 0.0, 128
    %805 = vxpose.xlu0.b32.cont [6/16] 0.0, 128
    %806 = vxpose.xlu0.b32.cont [7/16] 0.0, 128
    %807 = vxpose.xlu0.b32.cont [8/16] 0.0, 128
    %808 = vxpose.xlu0.b32.cont [9/16] 0.0, 128
    %809 = vxpose.xlu0.b32.cont [10/16] 0.0, 128
    %810 = vxpose.xlu0.b32.cont [11/16] 0.0, 128
    %811 = vxpose.xlu0.b32.cont [12/16] 0.0, 128
    %812 = vxpose.xlu0.b32.cont [13/16] 0.0, 128
    %813 = vxpose.xlu0.b32.cont [14/16] 0.0, 128
    %814 = vxpose.xlu0.b32.cont [15/16] 0.0, 128
    %815 = vxpose.xlu0.b32.end [16/16] 0.0, 128
    %v816 = vpop.trf.xlu0
    %v817 = vpop.trf.xlu0
    %v818 = vpop.trf.xlu0
    %v819 = vpop.trf.xlu0
    %v820 = vpop.trf.xlu0
    %v821 = vpop.trf.xlu0
    %v822 = vpop.trf.xlu0
    %v823 = vpop.trf.xlu0
    %v824 = vpop.trf.xlu0
    %v825 = vpop.trf.xlu0
    %v826 = vpop.trf.xlu0
    %v827 = vpop.trf.xlu0
    %v828 = vpop.trf.xlu0
    %v829 = vpop.trf.xlu0
    %v830 = vpop.trf.xlu0
    %v831 = vpop.trf.xlu0
    %832 = vxpose.xlu0.b32.start [1/16] %v680, 128
    %833 = vxpose.xlu0.b32.cont [2/16] %v681, 128
    %834 = vxpose.xlu0.b32.cont [3/16] 0.0, 128
    %835 = vxpose.xlu0.b32.cont [4/16] 0.0, 128
    %836 = vxpose.xlu0.b32.cont [5/16] 0.0, 128
    %837 = vxpose.xlu0.b32.cont [6/16] 0.0, 128
    %838 = vxpose.xlu0.b32.cont [7/16] 0.0, 128
    %839 = vxpose.xlu0.b32.cont [8/16] 0.0, 128
    %840 = vxpose.xlu0.b32.cont [9/16] 0.0, 128
    %841 = vxpose.xlu0.b32.cont [10/16] 0.0, 128
    %842 = vxpose.xlu0.b32.cont [11/16] 0.0, 128
    %843 = vxpose.xlu0.b32.cont [12/16] 0.0, 128
    %844 = vxpose.xlu0.b32.cont [13/16] 0.0, 128
    %845 = vxpose.xlu0.b32.cont [14/16] 0.0, 128
    %846 = vxpose.xlu0.b32.cont [15/16] 0.0, 128
    %847 = vxpose.xlu0.b32.end [16/16] 0.0, 128
    %v848 = vpop.trf.xlu0
    %v849 = vpop.trf.xlu0
    %v850 = vpop.trf.xlu0
    %v851 = vpop.trf.xlu0
    %v852 = vpop.trf.xlu0
    %v853 = vpop.trf.xlu0
    %v854 = vpop.trf.xlu0
    %v855 = vpop.trf.xlu0
    %v856 = vpop.trf.xlu0
    %v857 = vpop.trf.xlu0
    %v858 = vpop.trf.xlu0
    %v859 = vpop.trf.xlu0
    %v860 = vpop.trf.xlu0
    %v861 = vpop.trf.xlu0
    %v862 = vpop.trf.xlu0
    %v863 = vpop.trf.xlu0
    %864 = vxpose.xlu0.b32.start [1/16] %v682, 128
    %865 = vxpose.xlu0.b32.cont [2/16] %v683, 128
    %866 = vxpose.xlu0.b32.cont [3/16] 0.0, 128
    %867 = vxpose.xlu0.b32.cont [4/16] 0.0, 128
    %868 = vxpose.xlu0.b32.cont [5/16] 0.0, 128
    %869 = vxpose.xlu0.b32.cont [6/16] 0.0, 128
    %870 = vxpose.xlu0.b32.cont [7/16] 0.0, 128
    %871 = vxpose.xlu0.b32.cont [8/16] 0.0, 128
    %872 = vxpose.xlu0.b32.cont [9/16] 0.0, 128
    %873 = vxpose.xlu0.b32.cont [10/16] 0.0, 128
    %874 = vxpose.xlu0.b32.cont [11/16] 0.0, 128
    %875 = vxpose.xlu0.b32.cont [12/16] 0.0, 128
    %876 = vxpose.xlu0.b32.cont [13/16] 0.0, 128
    %877 = vxpose.xlu0.b32.cont [14/16] 0.0, 128
    %878 = vxpose.xlu0.b32.cont [15/16] 0.0, 128
    %879 = vxpose.xlu0.b32.end [16/16] 0.0, 128
    %v880 = vpop.trf.xlu0
    %v881 = vpop.trf.xlu0
    %v882 = vpop.trf.xlu0
    %v883 = vpop.trf.xlu0
    %v884 = vpop.trf.xlu0
    %v885 = vpop.trf.xlu0
    %v886 = vpop.trf.xlu0
    %v887 = vpop.trf.xlu0
    %v888 = vpop.trf.xlu0
    %v889 = vpop.trf.xlu0
    %v890 = vpop.trf.xlu0
    %v891 = vpop.trf.xlu0
    %v892 = vpop.trf.xlu0
    %v893 = vpop.trf.xlu0
    %v894 = vpop.trf.xlu0
    %v895 = vpop.trf.xlu0
    %896 = vxpose.xlu0.b32.start [1/16] %v684, 128
    %897 = vxpose.xlu0.b32.cont [2/16] %v685, 128
    %898 = vxpose.xlu0.b32.cont [3/16] 0.0, 128
    %899 = vxpose.xlu0.b32.cont [4/16] 0.0, 128
    %900 = vxpose.xlu0.b32.cont [5/16] 0.0, 128
    %901 = vxpose.xlu0.b32.cont [6/16] 0.0, 128
    %902 = vxpose.xlu0.b32.cont [7/16] 0.0, 128
    %903 = vxpose.xlu0.b32.cont [8/16] 0.0, 128
    %904 = vxpose.xlu0.b32.cont [9/16] 0.0, 128
    %905 = vxpose.xlu0.b32.cont [10/16] 0.0, 128
    %906 = vxpose.xlu0.b32.cont [11/16] 0.0, 128
    %907 = vxpose.xlu0.b32.cont [12/16] 0.0, 128
    %908 = vxpose.xlu0.b32.cont [13/16] 0.0, 128
    %909 = vxpose.xlu0.b32.cont [14/16] 0.0, 128
    %910 = vxpose.xlu0.b32.cont [15/16] 0.0, 128
    %911 = vxpose.xlu0.b32.end [16/16] 0.0, 128
    %v912 = vpop.trf.xlu0
    %v913 = vpop.trf.xlu0
    %v914 = vpop.trf.xlu0
    %v915 = vpop.trf.xlu0
    %v916 = vpop.trf.xlu0
    %v917 = vpop.trf.xlu0
    %v918 = vpop.trf.xlu0
    %v919 = vpop.trf.xlu0
    %v920 = vpop.trf.xlu0
    %v921 = vpop.trf.xlu0
    %v922 = vpop.trf.xlu0
    %v923 = vpop.trf.xlu0
    %v924 = vpop.trf.xlu0
    %v925 = vpop.trf.xlu0
    %v926 = vpop.trf.xlu0
    %v927 = vpop.trf.xlu0
    %928 = vxpose.xlu0.b32.start [1/16] %v686, 128
    %929 = vxpose.xlu0.b32.cont [2/16] %v687, 128
    %930 = vxpose.xlu0.b32.cont [3/16] 0.0, 128
    %931 = vxpose.xlu0.b32.cont [4/16] 0.0, 128
    %932 = vxpose.xlu0.b32.cont [5/16] 0.0, 128
    %933 = vxpose.xlu0.b32.cont [6/16] 0.0, 128
    %934 = vxpose.xlu0.b32.cont [7/16] 0.0, 128
    %935 = vxpose.xlu0.b32.cont [8/16] 0.0, 128
    %936 = vxpose.xlu0.b32.cont [9/16] 0.0, 128
    %937 = vxpose.xlu0.b32.cont [10/16] 0.0, 128
    %938 = vxpose.xlu0.b32.cont [11/16] 0.0, 128
    %939 = vxpose.xlu0.b32.cont [12/16] 0.0, 128
    %940 = vxpose.xlu0.b32.cont [13/16] 0.0, 128
    %941 = vxpose.xlu0.b32.cont [14/16] 0.0, 128
    %942 = vxpose.xlu0.b32.cont [15/16] 0.0, 128
    %943 = vxpose.xlu0.b32.end [16/16] 0.0, 128
    %v944 = vpop.trf.xlu0
    %v945 = vpop.trf.xlu0
    %v946 = vpop.trf.xlu0
    %v947 = vpop.trf.xlu0
    %v948 = vpop.trf.xlu0
    %v949 = vpop.trf.xlu0
    %v950 = vpop.trf.xlu0
    %v951 = vpop.trf.xlu0
    %v952 = vpop.trf.xlu0
    %v953 = vpop.trf.xlu0
    %v954 = vpop.trf.xlu0
    %v955 = vpop.trf.xlu0
    %v956 = vpop.trf.xlu0
    %v957 = vpop.trf.xlu0
    %v958 = vpop.trf.xlu0
    %v959 = vpop.trf.xlu0
    %960 = vxpose.xlu0.b32.start [1/16] %v688, 128
    %961 = vxpose.xlu0.b32.cont [2/16] %v689, 128
    %962 = vxpose.xlu0.b32.cont [3/16] 0.0, 128
    %963 = vxpose.xlu0.b32.cont [4/16] 0.0, 128
    %964 = vxpose.xlu0.b32.cont [5/16] 0.0, 128
    %965 = vxpose.xlu0.b32.cont [6/16] 0.0, 128
    %966 = vxpose.xlu0.b32.cont [7/16] 0.0, 128
    %967 = vxpose.xlu0.b32.cont [8/16] 0.0, 128
    %968 = vxpose.xlu0.b32.cont [9/16] 0.0, 128
    %969 = vxpose.xlu0.b32.cont [10/16] 0.0, 128
    %970 = vxpose.xlu0.b32.cont [11/16] 0.0, 128
    %971 = vxpose.xlu0.b32.cont [12/16] 0.0, 128
    %972 = vxpose.xlu0.b32.cont [13/16] 0.0, 128
    %973 = vxpose.xlu0.b32.cont [14/16] 0.0, 128
    %974 = vxpose.xlu0.b32.cont [15/16] 0.0, 128
    %975 = vxpose.xlu0.b32.end [16/16] 0.0, 128
    %v976 = vpop.trf.xlu0
    %v977 = vpop.trf.xlu0
    %v978 = vpop.trf.xlu0
    %v979 = vpop.trf.xlu0
    %v980 = vpop.trf.xlu0
    %v981 = vpop.trf.xlu0
    %v982 = vpop.trf.xlu0
    %v983 = vpop.trf.xlu0
    %v984 = vpop.trf.xlu0
    %v985 = vpop.trf.xlu0
    %v986 = vpop.trf.xlu0
    %v987 = vpop.trf.xlu0
    %v988 = vpop.trf.xlu0
    %v989 = vpop.trf.xlu0
    %v990 = vpop.trf.xlu0
    %v991 = vpop.trf.xlu0
    %992 = vxpose.xlu0.b32.start [1/16] %v690, 128
    %993 = vxpose.xlu0.b32.cont [2/16] %v691, 128
    %994 = vxpose.xlu0.b32.cont [3/16] 0.0, 128
    %995 = vxpose.xlu0.b32.cont [4/16] 0.0, 128
    %996 = vxpose.xlu0.b32.cont [5/16] 0.0, 128
    %997 = vxpose.xlu0.b32.cont [6/16] 0.0, 128
    %998 = vxpose.xlu0.b32.cont [7/16] 0.0, 128
    %999 = vxpose.xlu0.b32.cont [8/16] 0.0, 128
    %1000 = vxpose.xlu0.b32.cont [9/16] 0.0, 128
    %1001 = vxpose.xlu0.b32.cont [10/16] 0.0, 128
    %1002 = vxpose.xlu0.b32.cont [11/16] 0.0, 128
    %1003 = vxpose.xlu0.b32.cont [12/16] 0.0, 128
    %1004 = vxpose.xlu0.b32.cont [13/16] 0.0, 128
    %1005 = vxpose.xlu0.b32.cont [14/16] 0.0, 128
    %1006 = vxpose.xlu0.b32.cont [15/16] 0.0, 128
    %1007 = vxpose.xlu0.b32.end [16/16] 0.0, 128
    %v1008 = vpop.trf.xlu0
    %v1009 = vpop.trf.xlu0
    %v1010 = vpop.trf.xlu0
    %v1011 = vpop.trf.xlu0
    %v1012 = vpop.trf.xlu0
    %v1013 = vpop.trf.xlu0
    %v1014 = vpop.trf.xlu0
    %v1015 = vpop.trf.xlu0
    %v1016 = vpop.trf.xlu0
    %v1017 = vpop.trf.xlu0
    %v1018 = vpop.trf.xlu0
    %v1019 = vpop.trf.xlu0
    %v1020 = vpop.trf.xlu0
    %v1021 = vpop.trf.xlu0
    %v1022 = vpop.trf.xlu0
    %v1023 = vpop.trf.xlu0
    %1024 = vxpose.xlu0.b32.start [1/16] %v692, 128
    %1025 = vxpose.xlu0.b32.cont [2/16] %v693, 128
    %1026 = vxpose.xlu0.b32.cont [3/16] 0.0, 128
    %1027 = vxpose.xlu0.b32.cont [4/16] 0.0, 128
    %1028 = vxpose.xlu0.b32.cont [5/16] 0.0, 128
    %1029 = vxpose.xlu0.b32.cont [6/16] 0.0, 128
    %1030 = vxpose.xlu0.b32.cont [7/16] 0.0, 128
    %1031 = vxpose.xlu0.b32.cont [8/16] 0.0, 128
    %1032 = vxpose.xlu0.b32.cont [9/16] 0.0, 128
    %1033 = vxpose.xlu0.b32.cont [10/16] 0.0, 128
    %1034 = vxpose.xlu0.b32.cont [11/16] 0.0, 128
    %1035 = vxpose.xlu0.b32.cont [12/16] 0.0, 128
    %1036 = vxpose.xlu0.b32.cont [13/16] 0.0, 128
    %1037 = vxpose.xlu0.b32.cont [14/16] 0.0, 128
    %1038 = vxpose.xlu0.b32.cont [15/16] 0.0, 128
    %1039 = vxpose.xlu0.b32.end [16/16] 0.0, 128
    %v1040 = vpop.trf.xlu0
    %v1041 = vpop.trf.xlu0
    %v1042 = vpop.trf.xlu0
    %v1043 = vpop.trf.xlu0
    %v1044 = vpop.trf.xlu0
    %v1045 = vpop.trf.xlu0
    %v1046 = vpop.trf.xlu0
    %v1047 = vpop.trf.xlu0
    %v1048 = vpop.trf.xlu0
    %v1049 = vpop.trf.xlu0
    %v1050 = vpop.trf.xlu0
    %v1051 = vpop.trf.xlu0
    %v1052 = vpop.trf.xlu0
    %v1053 = vpop.trf.xlu0
    %v1054 = vpop.trf.xlu0
    %v1055 = vpop.trf.xlu0
    %1056 = vxpose.xlu0.b32.start [1/16] %v694, 128
    %1057 = vxpose.xlu0.b32.cont [2/16] %v695, 128
    %1058 = vxpose.xlu0.b32.cont [3/16] 0.0, 128
    %1059 = vxpose.xlu0.b32.cont [4/16] 0.0, 128
    %1060 = vxpose.xlu0.b32.cont [5/16] 0.0, 128
    %1061 = vxpose.xlu0.b32.cont [6/16] 0.0, 128
    %1062 = vxpose.xlu0.b32.cont [7/16] 0.0, 128
    %1063 = vxpose.xlu0.b32.cont [8/16] 0.0, 128
    %1064 = vxpose.xlu0.b32.cont [9/16] 0.0, 128
    %1065 = vxpose.xlu0.b32.cont [10/16] 0.0, 128
    %1066 = vxpose.xlu0.b32.cont [11/16] 0.0, 128
    %1067 = vxpose.xlu0.b32.cont [12/16] 0.0, 128
    %1068 = vxpose.xlu0.b32.cont [13/16] 0.0, 128
    %1069 = vxpose.xlu0.b32.cont [14/16] 0.0, 128
    %1070 = vxpose.xlu0.b32.cont [15/16] 0.0, 128
    %1071 = vxpose.xlu0.b32.end [16/16] 0.0, 128
    %v1072 = vpop.trf.xlu0
    %v1073 = vpop.trf.xlu0
    %v1074 = vpop.trf.xlu0
    %v1075 = vpop.trf.xlu0
    %v1076 = vpop.trf.xlu0
    %v1077 = vpop.trf.xlu0
    %v1078 = vpop.trf.xlu0
    %v1079 = vpop.trf.xlu0
    %v1080 = vpop.trf.xlu0
    %v1081 = vpop.trf.xlu0
    %v1082 = vpop.trf.xlu0
    %v1083 = vpop.trf.xlu0
    %v1084 = vpop.trf.xlu0
    %v1085 = vpop.trf.xlu0
    %v1086 = vpop.trf.xlu0
    %v1087 = vpop.trf.xlu0
    %1088 = vxpose.xlu0.b32.start [1/16] %v696, 128
    %1089 = vxpose.xlu0.b32.cont [2/16] %v697, 128
    %1090 = vxpose.xlu0.b32.cont [3/16] 0.0, 128
    %1091 = vxpose.xlu0.b32.cont [4/16] 0.0, 128
    %1092 = vxpose.xlu0.b32.cont [5/16] 0.0, 128
    %1093 = vxpose.xlu0.b32.cont [6/16] 0.0, 128
    %1094 = vxpose.xlu0.b32.cont [7/16] 0.0, 128
    %1095 = vxpose.xlu0.b32.cont [8/16] 0.0, 128
    %1096 = vxpose.xlu0.b32.cont [9/16] 0.0, 128
    %1097 = vxpose.xlu0.b32.cont [10/16] 0.0, 128
    %1098 = vxpose.xlu0.b32.cont [11/16] 0.0, 128
    %1099 = vxpose.xlu0.b32.cont [12/16] 0.0, 128
    %1100 = vxpose.xlu0.b32.cont [13/16] 0.0, 128
    %1101 = vxpose.xlu0.b32.cont [14/16] 0.0, 128
    %1102 = vxpose.xlu0.b32.cont [15/16] 0.0, 128
    %1103 = vxpose.xlu0.b32.end [16/16] 0.0, 128
    %v1104 = vpop.trf.xlu0
    %v1105 = vpop.trf.xlu0
    %v1106 = vpop.trf.xlu0
    %v1107 = vpop.trf.xlu0
    %v1108 = vpop.trf.xlu0
    %v1109 = vpop.trf.xlu0
    %v1110 = vpop.trf.xlu0
    %v1111 = vpop.trf.xlu0
    %v1112 = vpop.trf.xlu0
    %v1113 = vpop.trf.xlu0
    %v1114 = vpop.trf.xlu0
    %v1115 = vpop.trf.xlu0
    %v1116 = vpop.trf.xlu0
    %v1117 = vpop.trf.xlu0
    %v1118 = vpop.trf.xlu0
    %v1119 = vpop.trf.xlu0
    %1120 = vxpose.xlu0.b32.start [1/16] %v698, 128
    %1121 = vxpose.xlu0.b32.cont [2/16] %v699, 128
    %1122 = vxpose.xlu0.b32.cont [3/16] 0.0, 128
    %1123 = vxpose.xlu0.b32.cont [4/16] 0.0, 128
    %1124 = vxpose.xlu0.b32.cont [5/16] 0.0, 128
    %1125 = vxpose.xlu0.b32.cont [6/16] 0.0, 128
    %1126 = vxpose.xlu0.b32.cont [7/16] 0.0, 128
    %1127 = vxpose.xlu0.b32.cont [8/16] 0.0, 128
    %1128 = vxpose.xlu0.b32.cont [9/16] 0.0, 128
    %1129 = vxpose.xlu0.b32.cont [10/16] 0.0, 128
    %1130 = vxpose.xlu0.b32.cont [11/16] 0.0, 128
    %1131 = vxpose.xlu0.b32.cont [12/16] 0.0, 128
    %1132 = vxpose.xlu0.b32.cont [13/16] 0.0, 128
    %1133 = vxpose.xlu0.b32.cont [14/16] 0.0, 128
    %1134 = vxpose.xlu0.b32.cont [15/16] 0.0, 128
    %1135 = vxpose.xlu0.b32.end [16/16] 0.0, 128
    %v1136 = vpop.trf.xlu0
    %v1137 = vpop.trf.xlu0
    %v1138 = vpop.trf.xlu0
    %v1139 = vpop.trf.xlu0
    %v1140 = vpop.trf.xlu0
    %v1141 = vpop.trf.xlu0
    %v1142 = vpop.trf.xlu0
    %v1143 = vpop.trf.xlu0
    %v1144 = vpop.trf.xlu0
    %v1145 = vpop.trf.xlu0
    %v1146 = vpop.trf.xlu0
    %v1147 = vpop.trf.xlu0
    %v1148 = vpop.trf.xlu0
    %v1149 = vpop.trf.xlu0
    %v1150 = vpop.trf.xlu0
    %v1151 = vpop.trf.xlu0
    %1152 = vxpose.xlu0.b32.start [1/16] %v700, 128
    %1153 = vxpose.xlu0.b32.cont [2/16] %v701, 128
    %1154 = vxpose.xlu0.b32.cont [3/16] 0.0, 128
    %1155 = vxpose.xlu0.b32.cont [4/16] 0.0, 128
    %1156 = vxpose.xlu0.b32.cont [5/16] 0.0, 128
    %1157 = vxpose.xlu0.b32.cont [6/16] 0.0, 128
    %1158 = vxpose.xlu0.b32.cont [7/16] 0.0, 128
    %1159 = vxpose.xlu0.b32.cont [8/16] 0.0, 128
    %1160 = vxpose.xlu0.b32.cont [9/16] 0.0, 128
    %1161 = vxpose.xlu0.b32.cont [10/16] 0.0, 128
    %1162 = vxpose.xlu0.b32.cont [11/16] 0.0, 128
    %1163 = vxpose.xlu0.b32.cont [12/16] 0.0, 128
    %1164 = vxpose.xlu0.b32.cont [13/16] 0.0, 128
    %1165 = vxpose.xlu0.b32.cont [14/16] 0.0, 128
    %1166 = vxpose.xlu0.b32.cont [15/16] 0.0, 128
    %1167 = vxpose.xlu0.b32.end [16/16] 0.0, 128
    %v1168 = vpop.trf.xlu0
    %v1169 = vpop.trf.xlu0
    %v1170 = vpop.trf.xlu0
    %v1171 = vpop.trf.xlu0
    %v1172 = vpop.trf.xlu0
    %v1173 = vpop.trf.xlu0
    %v1174 = vpop.trf.xlu0
    %v1175 = vpop.trf.xlu0
    %v1176 = vpop.trf.xlu0
    %v1177 = vpop.trf.xlu0
    %v1178 = vpop.trf.xlu0
    %v1179 = vpop.trf.xlu0
    %v1180 = vpop.trf.xlu0
    %v1181 = vpop.trf.xlu0
    %v1182 = vpop.trf.xlu0
    %v1183 = vpop.trf.xlu0
    %1184 = vxpose.xlu0.b32.start [1/16] %v702, 128
    %1185 = vxpose.xlu0.b32.cont [2/16] %v703, 128
    %1186 = vxpose.xlu0.b32.cont [3/16] 0.0, 128
    %1187 = vxpose.xlu0.b32.cont [4/16] 0.0, 128
    %1188 = vxpose.xlu0.b32.cont [5/16] 0.0, 128
    %1189 = vxpose.xlu0.b32.cont [6/16] 0.0, 128
    %1190 = vxpose.xlu0.b32.cont [7/16] 0.0, 128
    %1191 = vxpose.xlu0.b32.cont [8/16] 0.0, 128
    %1192 = vxpose.xlu0.b32.cont [9/16] 0.0, 128
    %1193 = vxpose.xlu0.b32.cont [10/16] 0.0, 128
    %1194 = vxpose.xlu0.b32.cont [11/16] 0.0, 128
    %1195 = vxpose.xlu0.b32.cont [12/16] 0.0, 128
    %1196 = vxpose.xlu0.b32.cont [13/16] 0.0, 128
    %1197 = vxpose.xlu0.b32.cont [14/16] 0.0, 128
    %1198 = vxpose.xlu0.b32.cont [15/16] 0.0, 128
    %1199 = vxpose.xlu0.b32.end [16/16] 0.0, 128
    %v1200 = vpop.trf.xlu0
    %v1201 = vpop.trf.xlu0
    %v1202 = vpop.trf.xlu0
    %v1203 = vpop.trf.xlu0
    %v1204 = vpop.trf.xlu0
    %v1205 = vpop.trf.xlu0
    %v1206 = vpop.trf.xlu0
    %v1207 = vpop.trf.xlu0
    %v1208 = vpop.trf.xlu0
    %v1209 = vpop.trf.xlu0
    %v1210 = vpop.trf.xlu0
    %v1211 = vpop.trf.xlu0
    %v1212 = vpop.trf.xlu0
    %v1213 = vpop.trf.xlu0
    %v1214 = vpop.trf.xlu0
    %v1215 = vpop.trf.xlu0
    %v1216 = vld [vmem:[#allocation8] sm:$0xff]
    %v1217 = vld [vmem:[#allocation8 + $0x8] sm:$0xff]
    %v1218 = vld [vmem:[#allocation10] sm:$0x1]
    %v1220 = vlaneseq
    %v1221 = vshrl.u32 %v1220, 7
    %v1222 = vsub.s32 0, %v1221
    %v1223 = vrot.slane %v1218, %v1222
    %v1226 = vsel %vm210, %v720, 0
    %v1229 = vsel %vm210, %v721, 0
    %v1232 = vsel %vm210, %v752, 0
    %v1235 = vsel %vm210, %v753, 0
    %v1238 = vsel %vm210, %v784, 0
    %v1241 = vsel %vm210, %v785, 0
    %v1244 = vsel %vm210, %v816, 0
    %v1247 = vsel %vm210, %v817, 0
    %v1250 = vsel %vm210, %v848, 0
    %v1253 = vsel %vm210, %v849, 0
    %v1256 = vsel %vm210, %v880, 0
    %v1259 = vsel %vm210, %v881, 0
    %v1262 = vsel %vm210, %v912, 0
    %v1265 = vsel %vm210, %v913, 0
    %v1268 = vsel %vm210, %v944, 0
    %v1271 = vsel %vm210, %v945, 0
    %v1274 = vsel %vm210, %v976, 0
    %v1277 = vsel %vm210, %v977, 0
    %v1280 = vsel %vm210, %v1008, 0
    %v1283 = vsel %vm210, %v1009, 0
    %v1286 = vsel %vm210, %v1040, 0
    %v1289 = vsel %vm210, %v1041, 0
    %v1292 = vsel %vm210, %v1072, 0
    %v1295 = vsel %vm210, %v1073, 0
    %v1298 = vsel %vm210, %v1104, 0
    %v1301 = vsel %vm210, %v1105, 0
    %v1304 = vsel %vm210, %v1136, 0
    %v1307 = vsel %vm210, %v1137, 0
    %v1310 = vsel %vm210, %v1168, 0
    %v1313 = vsel %vm210, %v1169, 0
    %v1316 = vsel %vm210, %v1200, 0
    %v1319 = vsel %vm210, %v1201, 0
    %1321 = vmatprep.subr.mxu0 0.0
    %1322 = vmatpush1.msra.mxu0 %v1216
    %1323 = vmatprep.subr.mxu0 0.0
    %1324 = vmatpush1.msra.mxu0 %v1217
    %1325 = vmatprep.subr.mxu0 0.0
    %1326 = vmatpush1.msra.mxu0 0.0
    %1327 = vmatprep.subr.mxu0 0.0
    %1328 = vmatpush1.msra.mxu0 0.0
    %1329 = vmatprep.subr.mxu0 0.0
    %1330 = vmatpush1.msra.mxu0 0.0
    %1331 = vmatprep.subr.mxu0 0.0
    %1332 = vmatpush1.msra.mxu0 0.0
    %1333 = vmatprep.subr.mxu0 0.0
    %1334 = vmatpush1.msra.mxu0 0.0
    %1335 = vmatprep.subr.mxu0 0.0
    %1336 = vmatpush1.msra.mxu0 0.0
    %1337 = vmatprep.subr.mxu0 0.0
    %1338 = vmatpush1.msra.mxu0 0.0
    %1339 = vmatprep.subr.mxu0 0.0
    %1340 = vmatpush1.msra.mxu0 0.0
    %1341 = vmatprep.subr.mxu0 0.0
    %1342 = vmatpush1.msra.mxu0 0.0
    %1343 = vmatprep.subr.mxu0 0.0
    %1344 = vmatpush1.msra.mxu0 0.0
    %1345 = vmatprep.subr.mxu0 0.0
    %1346 = vmatpush1.msra.mxu0 0.0
    %1347 = vmatprep.subr.mxu0 0.0
    %1348 = vmatpush1.msra.mxu0 0.0
    %1349 = vmatprep.subr.mxu0 0.0
    %1350 = vmatpush1.msra.mxu0 0.0
    %1351 = vmatprep.subr.mxu0 0.0
    %1352 = vmatpush1.msra.mxu0 0.0
    %1353 = vmatprep.subr.mxu0 0.0
    %1354 = vmatpush1.msra.mxu0 0.0
    %1355 = vmatprep.subr.mxu0 0.0
    %1356 = vmatpush1.msra.mxu0 0.0
    %1357 = vmatprep.subr.mxu0 0.0
    %1358 = vmatpush1.msra.mxu0 0.0
    %1359 = vmatprep.subr.mxu0 0.0
    %1360 = vmatpush1.msra.mxu0 0.0
    %1361 = vmatprep.subr.mxu0 0.0
    %1362 = vmatpush1.msra.mxu0 0.0
    %1363 = vmatprep.subr.mxu0 0.0
    %1364 = vmatpush1.msra.mxu0 0.0
    %1365 = vmatprep.subr.mxu0 0.0
    %1366 = vmatpush1.msra.mxu0 0.0
    %1367 = vmatprep.subr.mxu0 0.0
    %1368 = vmatpush1.msra.mxu0 0.0
    %1369 = vmatprep.subr.mxu0 0.0
    %1370 = vmatpush1.msra.mxu0 0.0
    %1371 = vmatprep.subr.mxu0 0.0
    %1372 = vmatpush1.msra.mxu0 0.0
    %1373 = vmatprep.subr.mxu0 0.0
    %1374 = vmatpush1.msra.mxu0 0.0
    %1375 = vmatprep.subr.mxu0 0.0
    %1376 = vmatpush1.msra.mxu0 0.0
    %1377 = vmatprep.subr.mxu0 0.0
    %1378 = vmatpush1.msra.mxu0 0.0
    %1379 = vmatprep.subr.mxu0 0.0
    %1380 = vmatpush1.msra.mxu0 0.0
    %1381 = vmatprep.subr.mxu0 0.0
    %1382 = vmatpush1.msra.mxu0 0.0
    %1383 = vmatprep.subr.mxu0 0.0
    %1384 = vmatpush1.msra.mxu0 0.0
    %1385 = vmatprep.mubr.f32.mxu0 0.0
    %1386 = vmatmul.mubr.f32.gmra.mrb[0].mxu0 %v1226
    %v1387 = vpop.f32.mrb[0].mxu0
    %v1388 = vadd.f32 %v1223, %v1387
    %v1389 = vpop.f32.mrb[0].mxu0
    %1390 = vmatprep.mubr.f32.mxu0 0.0
    %1391 = vmatmul.mubr.f32.gmra.mrb[0].mxu0 %v1229
    %v1392 = vpop.f32.mrb[0].mxu0
    %v1393 = vadd.f32 %v1223, %v1392
    %v1394 = vpop.f32.mrb[0].mxu0
    %1395 = vmatprep.mubr.f32.mxu0 0.0
    %1396 = vmatmul.mubr.f32.gmra.mrb[0].mxu0 %v1232
    %v1397 = vpop.f32.mrb[0].mxu0
    %v1398 = vadd.f32 %v1223, %v1397
    %v1399 = vpop.f32.mrb[0].mxu0
    %1400 = vmatprep.mubr.f32.mxu0 0.0
    %1401 = vmatmul.mubr.f32.gmra.mrb[0].mxu0 %v1235
    %v1402 = vpop.f32.mrb[0].mxu0
    %v1403 = vadd.f32 %v1223, %v1402
    %v1404 = vpop.f32.mrb[0].mxu0
    %1405 = vmatprep.mubr.f32.mxu0 0.0
    %1406 = vmatmul.mubr.f32.gmra.mrb[0].mxu0 %v1238
    %v1407 = vpop.f32.mrb[0].mxu0
    %v1408 = vadd.f32 %v1223, %v1407
    %v1409 = vpop.f32.mrb[0].mxu0
    %1410 = vmatprep.mubr.f32.mxu0 0.0
    %1411 = vmatmul.mubr.f32.gmra.mrb[0].mxu0 %v1241
    %v1412 = vpop.f32.mrb[0].mxu0
    %v1413 = vadd.f32 %v1223, %v1412
    %v1414 = vpop.f32.mrb[0].mxu0
    %1415 = vmatprep.mubr.f32.mxu0 0.0
    %1416 = vmatmul.mubr.f32.gmra.mrb[0].mxu0 %v1244
    %v1417 = vpop.f32.mrb[0].mxu0
    %v1418 = vadd.f32 %v1223, %v1417
    %v1419 = vpop.f32.mrb[0].mxu0
    %1420 = vmatprep.mubr.f32.mxu0 0.0
    %1421 = vmatmul.mubr.f32.gmra.mrb[0].mxu0 %v1247
    %v1422 = vpop.f32.mrb[0].mxu0
    %v1423 = vadd.f32 %v1223, %v1422
    %v1424 = vpop.f32.mrb[0].mxu0
    %1425 = vmatprep.mubr.f32.mxu0 0.0
    %1426 = vmatmul.mubr.f32.gmra.mrb[0].mxu0 %v1250
    %v1427 = vpop.f32.mrb[0].mxu0
    %v1428 = vadd.f32 %v1223, %v1427
    %v1429 = vpop.f32.mrb[0].mxu0
    %1430 = vmatprep.mubr.f32.mxu0 0.0
    %1431 = vmatmul.mubr.f32.gmra.mrb[0].mxu0 %v1253
    %v1432 = vpop.f32.mrb[0].mxu0
    %v1433 = vadd.f32 %v1223, %v1432
    %v1434 = vpop.f32.mrb[0].mxu0
    %1435 = vmatprep.mubr.f32.mxu0 0.0
    %1436 = vmatmul.mubr.f32.gmra.mrb[0].mxu0 %v1256
    %v1437 = vpop.f32.mrb[0].mxu0
    %v1438 = vadd.f32 %v1223, %v1437
    %v1439 = vpop.f32.mrb[0].mxu0
    %1440 = vmatprep.mubr.f32.mxu0 0.0
    %1441 = vmatmul.mubr.f32.gmra.mrb[0].mxu0 %v1259
    %v1442 = vpop.f32.mrb[0].mxu0
    %v1443 = vadd.f32 %v1223, %v1442
    %v1444 = vpop.f32.mrb[0].mxu0
    %1445 = vmatprep.mubr.f32.mxu0 0.0
    %1446 = vmatmul.mubr.f32.gmra.mrb[0].mxu0 %v1262
    %v1447 = vpop.f32.mrb[0].mxu0
    %v1448 = vadd.f32 %v1223, %v1447
    %v1449 = vpop.f32.mrb[0].mxu0
    %1450 = vmatprep.mubr.f32.mxu0 0.0
    %1451 = vmatmul.mubr.f32.gmra.mrb[0].mxu0 %v1265
    %v1452 = vpop.f32.mrb[0].mxu0
    %v1453 = vadd.f32 %v1223, %v1452
    %v1454 = vpop.f32.mrb[0].mxu0
    %1455 = vmatprep.mubr.f32.mxu0 0.0
    %1456 = vmatmul.mubr.f32.gmra.mrb[0].mxu0 %v1268
    %v1457 = vpop.f32.mrb[0].mxu0
    %v1458 = vadd.f32 %v1223, %v1457
    %v1459 = vpop.f32.mrb[0].mxu0
    %1460 = vmatprep.mubr.f32.mxu0 0.0
    %1461 = vmatmul.mubr.f32.gmra.mrb[0].mxu0 %v1271
    %v1462 = vpop.f32.mrb[0].mxu0
    %v1463 = vadd.f32 %v1223, %v1462
    %v1464 = vpop.f32.mrb[0].mxu0
    %1465 = vmatprep.mubr.f32.mxu0 0.0
    %1466 = vmatmul.mubr.f32.gmra.mrb[0].mxu0 %v1274
    %v1467 = vpop.f32.mrb[0].mxu0
    %v1468 = vadd.f32 %v1223, %v1467
    %v1469 = vpop.f32.mrb[0].mxu0
    %1470 = vmatprep.mubr.f32.mxu0 0.0
    %1471 = vmatmul.mubr.f32.gmra.mrb[0].mxu0 %v1277
    %v1472 = vpop.f32.mrb[0].mxu0
    %v1473 = vadd.f32 %v1223, %v1472
    %v1474 = vpop.f32.mrb[0].mxu0
    %1475 = vmatprep.mubr.f32.mxu0 0.0
    %1476 = vmatmul.mubr.f32.gmra.mrb[0].mxu0 %v1280
    %v1477 = vpop.f32.mrb[0].mxu0
    %v1478 = vadd.f32 %v1223, %v1477
    %v1479 = vpop.f32.mrb[0].mxu0
    %1480 = vmatprep.mubr.f32.mxu0 0.0
    %1481 = vmatmul.mubr.f32.gmra.mrb[0].mxu0 %v1283
    %v1482 = vpop.f32.mrb[0].mxu0
    %v1483 = vadd.f32 %v1223, %v1482
    %v1484 = vpop.f32.mrb[0].mxu0
    %1485 = vmatprep.mubr.f32.mxu0 0.0
    %1486 = vmatmul.mubr.f32.gmra.mrb[0].mxu0 %v1286
    %v1487 = vpop.f32.mrb[0].mxu0
    %v1488 = vadd.f32 %v1223, %v1487
    %v1489 = vpop.f32.mrb[0].mxu0
    %1490 = vmatprep.mubr.f32.mxu0 0.0
    %1491 = vmatmul.mubr.f32.gmra.mrb[0].mxu0 %v1289
    %v1492 = vpop.f32.mrb[0].mxu0
    %v1493 = vadd.f32 %v1223, %v1492
    %v1494 = vpop.f32.mrb[0].mxu0
    %1495 = vmatprep.mubr.f32.mxu0 0.0
    %1496 = vmatmul.mubr.f32.gmra.mrb[0].mxu0 %v1292
    %v1497 = vpop.f32.mrb[0].mxu0
    %v1498 = vadd.f32 %v1223, %v1497
    %v1499 = vpop.f32.mrb[0].mxu0
    %1500 = vmatprep.mubr.f32.mxu0 0.0
    %1501 = vmatmul.mubr.f32.gmra.mrb[0].mxu0 %v1295
    %v1502 = vpop.f32.mrb[0].mxu0
    %v1503 = vadd.f32 %v1223, %v1502
    %v1504 = vpop.f32.mrb[0].mxu0
    %1505 = vmatprep.mubr.f32.mxu0 0.0
    %1506 = vmatmul.mubr.f32.gmra.mrb[0].mxu0 %v1298
    %v1507 = vpop.f32.mrb[0].mxu0
    %v1508 = vadd.f32 %v1223, %v1507
    %v1509 = vpop.f32.mrb[0].mxu0
    %1510 = vmatprep.mubr.f32.mxu0 0.0
    %1511 = vmatmul.mubr.f32.gmra.mrb[0].mxu0 %v1301
    %v1512 = vpop.f32.mrb[0].mxu0
    %v1513 = vadd.f32 %v1223, %v1512
    %v1514 = vpop.f32.mrb[0].mxu0
    %1515 = vmatprep.mubr.f32.mxu0 0.0
    %1516 = vmatmul.mubr.f32.gmra.mrb[0].mxu0 %v1304
    %v1517 = vpop.f32.mrb[0].mxu0
    %v1518 = vadd.f32 %v1223, %v1517
    %v1519 = vpop.f32.mrb[0].mxu0
    %1520 = vmatprep.mubr.f32.mxu0 0.0
    %1521 = vmatmul.mubr.f32.gmra.mrb[0].mxu0 %v1307
    %v1522 = vpop.f32.mrb[0].mxu0
    %v1523 = vadd.f32 %v1223, %v1522
    %v1524 = vpop.f32.mrb[0].mxu0
    %1525 = vmatprep.mubr.f32.mxu0 0.0
    %1526 = vmatmul.mubr.f32.gmra.mrb[0].mxu0 %v1310
    %v1527 = vpop.f32.mrb[0].mxu0
    %v1528 = vadd.f32 %v1223, %v1527
    %v1529 = vpop.f32.mrb[0].mxu0
    %1530 = vmatprep.mubr.f32.mxu0 0.0
    %1531 = vmatmul.mubr.f32.gmra.mrb[0].mxu0 %v1313
    %v1532 = vpop.f32.mrb[0].mxu0
    %v1533 = vadd.f32 %v1223, %v1532
    %v1534 = vpop.f32.mrb[0].mxu0
    %1535 = vmatprep.mubr.f32.mxu0 0.0
    %1536 = vmatmul.mubr.f32.gmra.mrb[0].mxu0 %v1316
    %v1537 = vpop.f32.mrb[0].mxu0
    %v1538 = vadd.f32 %v1223, %v1537
    %v1539 = vpop.f32.mrb[0].mxu0
    %1540 = vmatprep.mubr.f32.mxu0 0.0
    %1541 = vmatmul.mubr.f32.gmra.mrb[0].mxu0 %v1319
    %v1542 = vpop.f32.mrb[0].mxu0
    %v1543 = vadd.f32 %v1223, %v1542
    %v1544 = vpop.f32.mrb[0].mxu0
    %1545 = vdwg.mxu0
    %v1546 = vmul.f32 %v1388, 0.5
    %v1547 = vmul.f32 %v1393, 0.5
    %v1548 = vmul.f32 %v1398, 0.5
    %v1549 = vmul.f32 %v1403, 0.5
    %v1550 = vmul.f32 %v1408, 0.5
    %v1551 = vmul.f32 %v1413, 0.5
    %v1552 = vmul.f32 %v1418, 0.5
    %v1553 = vmul.f32 %v1423, 0.5
    %v1554 = vmul.f32 %v1428, 0.5
    %v1555 = vmul.f32 %v1433, 0.5
    %v1556 = vmul.f32 %v1438, 0.5
    %v1557 = vmul.f32 %v1443, 0.5
    %v1558 = vmul.f32 %v1448, 0.5
    %v1559 = vmul.f32 %v1453, 0.5
    %v1560 = vmul.f32 %v1458, 0.5
    %v1561 = vmul.f32 %v1463, 0.5
    %v1562 = vmul.f32 %v1468, 0.5
    %v1563 = vmul.f32 %v1473, 0.5
    %v1564 = vmul.f32 %v1478, 0.5
    %v1565 = vmul.f32 %v1483, 0.5
    %v1566 = vmul.f32 %v1488, 0.5
    %v1567 = vmul.f32 %v1493, 0.5
    %v1568 = vmul.f32 %v1498, 0.5
    %v1569 = vmul.f32 %v1503, 0.5
    %v1570 = vmul.f32 %v1508, 0.5
    %v1571 = vmul.f32 %v1513, 0.5
    %v1572 = vmul.f32 %v1518, 0.5
    %v1573 = vmul.f32 %v1523, 0.5
    %v1574 = vmul.f32 %v1528, 0.5
    %v1575 = vmul.f32 %v1533, 0.5
    %v1576 = vmul.f32 %v1538, 0.5
    %v1577 = vmul.f32 %v1543, 0.5
    %v1578 = vmul.f32 %v1388, 0.70710677
    %v1579 = vmul.f32 %v1393, 0.70710677
    %v1580 = vmul.f32 %v1398, 0.70710677
    %v1581 = vmul.f32 %v1403, 0.70710677
    %v1582 = vmul.f32 %v1408, 0.70710677
    %v1583 = vmul.f32 %v1413, 0.70710677
    %v1584 = vmul.f32 %v1418, 0.70710677
    %v1585 = vmul.f32 %v1423, 0.70710677
    %v1586 = vmul.f32 %v1428, 0.70710677
    %v1587 = vmul.f32 %v1433, 0.70710677
    %v1588 = vmul.f32 %v1438, 0.70710677
    %v1589 = vmul.f32 %v1443, 0.70710677
    %v1590 = vmul.f32 %v1448, 0.70710677
    %v1591 = vmul.f32 %v1453, 0.70710677
    %v1592 = vmul.f32 %v1458, 0.70710677
    %v1593 = vmul.f32 %v1463, 0.70710677
    %v1594 = vmul.f32 %v1468, 0.70710677
    %v1595 = vmul.f32 %v1473, 0.70710677
    %v1596 = vmul.f32 %v1478, 0.70710677
    %v1597 = vmul.f32 %v1483, 0.70710677
    %v1598 = vmul.f32 %v1488, 0.70710677
    %v1599 = vmul.f32 %v1493, 0.70710677
    %v1600 = vmul.f32 %v1498, 0.70710677
    %v1601 = vmul.f32 %v1503, 0.70710677
    %v1602 = vmul.f32 %v1508, 0.70710677
    %v1603 = vmul.f32 %v1513, 0.70710677
    %v1604 = vmul.f32 %v1518, 0.70710677
    %v1605 = vmul.f32 %v1523, 0.70710677
    %v1606 = vmul.f32 %v1528, 0.70710677
    %v1607 = vmul.f32 %v1533, 0.70710677
    %v1608 = vmul.f32 %v1538, 0.70710677
    %v1609 = vmul.f32 %v1543, 0.70710677
    %v1610 = verf.f32.pop %v1578
    %v1611 = verf.f32.pop %v1579
    %v1612 = verf.f32.pop %v1580
    %v1613 = verf.f32.pop %v1581
    %v1614 = verf.f32.pop %v1582
    %v1615 = verf.f32.pop %v1583
    %v1616 = verf.f32.pop %v1584
    %v1617 = verf.f32.pop %v1585
    %v1618 = verf.f32.pop %v1586
    %v1619 = verf.f32.pop %v1587
    %v1620 = verf.f32.pop %v1588
    %v1621 = verf.f32.pop %v1589
    %v1622 = verf.f32.pop %v1590
    %v1623 = verf.f32.pop %v1591
    %v1624 = verf.f32.pop %v1592
    %v1625 = verf.f32.pop %v1593
    %v1626 = verf.f32.pop %v1594
    %v1627 = verf.f32.pop %v1595
    %v1628 = verf.f32.pop %v1596
    %v1629 = verf.f32.pop %v1597
    %v1630 = verf.f32.pop %v1598
    %v1631 = verf.f32.pop %v1599
    %v1632 = verf.f32.pop %v1600
    %v1633 = verf.f32.pop %v1601
    %v1634 = verf.f32.pop %v1602
    %v1635 = verf.f32.pop %v1603
    %v1636 = verf.f32.pop %v1604
    %v1637 = verf.f32.pop %v1605
    %v1638 = verf.f32.pop %v1606
    %v1639 = verf.f32.pop %v1607
    %v1640 = verf.f32.pop %v1608
    %v1641 = verf.f32.pop %v1609
    %v1642 = vadd.f32 %v1610, 1.0
    %v1643 = vadd.f32 %v1611, 1.0
    %v1644 = vadd.f32 %v1612, 1.0
    %v1645 = vadd.f32 %v1613, 1.0
    %v1646 = vadd.f32 %v1614, 1.0
    %v1647 = vadd.f32 %v1615, 1.0
    %v1648 = vadd.f32 %v1616, 1.0
    %v1649 = vadd.f32 %v1617, 1.0
    %v1650 = vadd.f32 %v1618, 1.0
    %v1651 = vadd.f32 %v1619, 1.0
    %v1652 = vadd.f32 %v1620, 1.0
    %v1653 = vadd.f32 %v1621, 1.0
    %v1654 = vadd.f32 %v1622, 1.0
    %v1655 = vadd.f32 %v1623, 1.0
    %v1656 = vadd.f32 %v1624, 1.0
    %v1657 = vadd.f32 %v1625, 1.0
    %v1658 = vadd.f32 %v1626, 1.0
    %v1659 = vadd.f32 %v1627, 1.0
    %v1660 = vadd.f32 %v1628, 1.0
    %v1661 = vadd.f32 %v1629, 1.0
    %v1662 = vadd.f32 %v1630, 1.0
    %v1663 = vadd.f32 %v1631, 1.0
    %v1664 = vadd.f32 %v1632, 1.0
    %v1665 = vadd.f32 %v1633, 1.0
    %v1666 = vadd.f32 %v1634, 1.0
    %v1667 = vadd.f32 %v1635, 1.0
    %v1668 = vadd.f32 %v1636, 1.0
    %v1669 = vadd.f32 %v1637, 1.0
    %v1670 = vadd.f32 %v1638, 1.0
    %v1671 = vadd.f32 %v1639, 1.0
    %v1672 = vadd.f32 %v1640, 1.0
    %v1673 = vadd.f32 %v1641, 1.0
    %v1674 = vmul.f32 %v1546, %v1642
    %v1675 = vmul.f32 %v1547, %v1643
    %v1676 = vmul.f32 %v1548, %v1644
    %v1677 = vmul.f32 %v1549, %v1645
    %v1678 = vmul.f32 %v1550, %v1646
    %v1679 = vmul.f32 %v1551, %v1647
    %v1680 = vmul.f32 %v1552, %v1648
    %v1681 = vmul.f32 %v1553, %v1649
    %v1682 = vmul.f32 %v1554, %v1650
    %v1683 = vmul.f32 %v1555, %v1651
    %v1684 = vmul.f32 %v1556, %v1652
    %v1685 = vmul.f32 %v1557, %v1653
    %v1686 = vmul.f32 %v1558, %v1654
    %v1687 = vmul.f32 %v1559, %v1655
    %v1688 = vmul.f32 %v1560, %v1656
    %v1689 = vmul.f32 %v1561, %v1657
    %v1690 = vmul.f32 %v1562, %v1658
    %v1691 = vmul.f32 %v1563, %v1659
    %v1692 = vmul.f32 %v1564, %v1660
    %v1693 = vmul.f32 %v1565, %v1661
    %v1694 = vmul.f32 %v1566, %v1662
    %v1695 = vmul.f32 %v1567, %v1663
    %v1696 = vmul.f32 %v1568, %v1664
    %v1697 = vmul.f32 %v1569, %v1665
    %v1698 = vmul.f32 %v1570, %v1666
    %v1699 = vmul.f32 %v1571, %v1667
    %v1700 = vmul.f32 %v1572, %v1668
    %v1701 = vmul.f32 %v1573, %v1669
    %v1702 = vmul.f32 %v1574, %v1670
    %v1703 = vmul.f32 %v1575, %v1671
    %v1704 = vmul.f32 %v1576, %v1672
    %v1705 = vmul.f32 %v1577, %v1673
    %v1706 = vld [vmem:[#allocation11] sm:$0xff]
    %v1707 = vld [vmem:[#allocation11 + $0x8] sm:$0xff]
    %v1708 = vld [vmem:[#allocation11 + $0x10] sm:$0xff]
    %v1709 = vld [vmem:[#allocation11 + $0x18] sm:$0xff]
    %v1710 = vld [vmem:[#allocation13] sm:$0x1]
    %v1712 = vlaneseq
    %v1713 = vshrl.u32 %v1712, 7
    %v1714 = vsub.s32 0, %v1713
    %v1715 = vrot.slane %v1710, %v1714
    %vm1717 = vcmask 261120
    %v1719 = vsel %vm1717, %v1674, 0
    %v1722 = vsel %vm1717, %v1675, 0
    %v1725 = vsel %vm1717, %v1676, 0
    %v1728 = vsel %vm1717, %v1677, 0
    %v1731 = vsel %vm1717, %v1678, 0
    %v1734 = vsel %vm1717, %v1679, 0
    %v1737 = vsel %vm1717, %v1680, 0
    %v1740 = vsel %vm1717, %v1681, 0
    %v1743 = vsel %vm1717, %v1682, 0
    %v1746 = vsel %vm1717, %v1683, 0
    %v1749 = vsel %vm1717, %v1684, 0
    %v1752 = vsel %vm1717, %v1685, 0
    %v1755 = vsel %vm1717, %v1686, 0
    %v1758 = vsel %vm1717, %v1687, 0
    %v1761 = vsel %vm1717, %v1688, 0
    %v1764 = vsel %vm1717, %v1689, 0
    %v1767 = vsel %vm1717, %v1690, 0
    %v1770 = vsel %vm1717, %v1691, 0
    %v1773 = vsel %vm1717, %v1692, 0
    %v1776 = vsel %vm1717, %v1693, 0
    %v1779 = vsel %vm1717, %v1694, 0
    %v1782 = vsel %vm1717, %v1695, 0
    %v1785 = vsel %vm1717, %v1696, 0
    %v1788 = vsel %vm1717, %v1697, 0
    %v1791 = vsel %vm1717, %v1698, 0
    %v1794 = vsel %vm1717, %v1699, 0
    %v1797 = vsel %vm1717, %v1700, 0
    %v1800 = vsel %vm1717, %v1701, 0
    %v1803 = vsel %vm1717, %v1702, 0
    %v1806 = vsel %vm1717, %v1703, 0
    %v1809 = vsel %vm1717, %v1704, 0
    %v1812 = vsel %vm1717, %v1705, 0
    %1814 = vmatprep.subr.mxu0 0.0
    %1815 = vmatpush1.msra.mxu0 %v1706
    %1816 = vmatprep.subr.mxu0 0.0
    %1817 = vmatpush1.msra.mxu0 %v1707
    %1818 = vmatprep.subr.mxu0 0.0
    %1819 = vmatpush1.msra.mxu0 %v1708
    %1820 = vmatprep.subr.mxu0 0.0
    %1821 = vmatpush1.msra.mxu0 %v1709
    %1822 = vmatprep.subr.mxu0 0.0
    %1823 = vmatpush1.msra.mxu0 0.0
    %1824 = vmatprep.subr.mxu0 0.0
    %1825 = vmatpush1.msra.mxu0 0.0
    %1826 = vmatprep.subr.mxu0 0.0
    %1827 = vmatpush1.msra.mxu0 0.0
    %1828 = vmatprep.subr.mxu0 0.0
    %1829 = vmatpush1.msra.mxu0 0.0
    %1830 = vmatprep.subr.mxu0 0.0
    %1831 = vmatpush1.msra.mxu0 0.0
    %1832 = vmatprep.subr.mxu0 0.0
    %1833 = vmatpush1.msra.mxu0 0.0
    %1834 = vmatprep.subr.mxu0 0.0
    %1835 = vmatpush1.msra.mxu0 0.0
    %1836 = vmatprep.subr.mxu0 0.0
    %1837 = vmatpush1.msra.mxu0 0.0
    %1838 = vmatprep.subr.mxu0 0.0
    %1839 = vmatpush1.msra.mxu0 0.0
    %1840 = vmatprep.subr.mxu0 0.0
    %1841 = vmatpush1.msra.mxu0 0.0
    %1842 = vmatprep.subr.mxu0 0.0
    %1843 = vmatpush1.msra.mxu0 0.0
    %1844 = vmatprep.subr.mxu0 0.0
    %1845 = vmatpush1.msra.mxu0 0.0
    %1846 = vmatprep.subr.mxu0 0.0
    %1847 = vmatpush1.msra.mxu0 0.0
    %1848 = vmatprep.subr.mxu0 0.0
    %1849 = vmatpush1.msra.mxu0 0.0
    %1850 = vmatprep.subr.mxu0 0.0
    %1851 = vmatpush1.msra.mxu0 0.0
    %1852 = vmatprep.subr.mxu0 0.0
    %1853 = vmatpush1.msra.mxu0 0.0
    %1854 = vmatprep.subr.mxu0 0.0
    %1855 = vmatpush1.msra.mxu0 0.0
    %1856 = vmatprep.subr.mxu0 0.0
    %1857 = vmatpush1.msra.mxu0 0.0
    %1858 = vmatprep.subr.mxu0 0.0
    %1859 = vmatpush1.msra.mxu0 0.0
    %1860 = vmatprep.subr.mxu0 0.0
    %1861 = vmatpush1.msra.mxu0 0.0
    %1862 = vmatprep.subr.mxu0 0.0
    %1863 = vmatpush1.msra.mxu0 0.0
    %1864 = vmatprep.subr.mxu0 0.0
    %1865 = vmatpush1.msra.mxu0 0.0
    %1866 = vmatprep.subr.mxu0 0.0
    %1867 = vmatpush1.msra.mxu0 0.0
    %1868 = vmatprep.subr.mxu0 0.0
    %1869 = vmatpush1.msra.mxu0 0.0
    %1870 = vmatprep.subr.mxu0 0.0
    %1871 = vmatpush1.msra.mxu0 0.0
    %1872 = vmatprep.subr.mxu0 0.0
    %1873 = vmatpush1.msra.mxu0 0.0
    %1874 = vmatprep.subr.mxu0 0.0
    %1875 = vmatpush1.msra.mxu0 0.0
    %1876 = vmatprep.subr.mxu0 0.0
    %1877 = vmatpush1.msra.mxu0 0.0
    %1878 = vmatprep.mubr.f32.mxu0 0.0
    %1879 = vmatmul.mubr.f32.gmra.mrb[0].mxu0 %v1719
    %v1880 = vpop.f32.mrb[0].mxu0
    %v1881 = vadd.f32 %v1715, %v1880
    %v1882 = vpop.f32.mrb[0].mxu0
    %1883 = vmatprep.mubr.f32.mxu0 0.0
    %1884 = vmatmul.mubr.f32.gmra.mrb[0].mxu0 %v1722
    %v1885 = vpop.f32.mrb[0].mxu0
    %v1886 = vadd.f32 %v1715, %v1885
    %v1887 = vpop.f32.mrb[0].mxu0
    %1888 = vmatprep.mubr.f32.mxu0 0.0
    %1889 = vmatmul.mubr.f32.gmra.mrb[0].mxu0 %v1725
    %v1890 = vpop.f32.mrb[0].mxu0
    %v1891 = vadd.f32 %v1715, %v1890
    %v1892 = vpop.f32.mrb[0].mxu0
    %1893 = vmatprep.mubr.f32.mxu0 0.0
    %1894 = vmatmul.mubr.f32.gmra.mrb[0].mxu0 %v1728
    %v1895 = vpop.f32.mrb[0].mxu0
    %v1896 = vadd.f32 %v1715, %v1895
    %v1897 = vpop.f32.mrb[0].mxu0
    %1898 = vmatprep.mubr.f32.mxu0 0.0
    %1899 = vmatmul.mubr.f32.gmra.mrb[0].mxu0 %v1731
    %v1900 = vpop.f32.mrb[0].mxu0
    %v1901 = vadd.f32 %v1715, %v1900
    %v1902 = vpop.f32.mrb[0].mxu0
    %1903 = vmatprep.mubr.f32.mxu0 0.0
    %1904 = vmatmul.mubr.f32.gmra.mrb[0].mxu0 %v1734
    %v1905 = vpop.f32.mrb[0].mxu0
    %v1906 = vadd.f32 %v1715, %v1905
    %v1907 = vpop.f32.mrb[0].mxu0
    %1908 = vmatprep.mubr.f32.mxu0 0.0
    %1909 = vmatmul.mubr.f32.gmra.mrb[0].mxu0 %v1737
    %v1910 = vpop.f32.mrb[0].mxu0
    %v1911 = vadd.f32 %v1715, %v1910
    %v1912 = vpop.f32.mrb[0].mxu0
    %1913 = vmatprep.mubr.f32.mxu0 0.0
    %1914 = vmatmul.mubr.f32.gmra.mrb[0].mxu0 %v1740
    %v1915 = vpop.f32.mrb[0].mxu0
    %v1916 = vadd.f32 %v1715, %v1915
    %v1917 = vpop.f32.mrb[0].mxu0
    %1918 = vmatprep.mubr.f32.mxu0 0.0
    %1919 = vmatmul.mubr.f32.gmra.mrb[0].mxu0 %v1743
    %v1920 = vpop.f32.mrb[0].mxu0
    %v1921 = vadd.f32 %v1715, %v1920
    %v1922 = vpop.f32.mrb[0].mxu0
    %1923 = vmatprep.mubr.f32.mxu0 0.0
    %1924 = vmatmul.mubr.f32.gmra.mrb[0].mxu0 %v1746
    %v1925 = vpop.f32.mrb[0].mxu0
    %v1926 = vadd.f32 %v1715, %v1925
    %v1927 = vpop.f32.mrb[0].mxu0
    %1928 = vmatprep.mubr.f32.mxu0 0.0
    %1929 = vmatmul.mubr.f32.gmra.mrb[0].mxu0 %v1749
    %v1930 = vpop.f32.mrb[0].mxu0
    %v1931 = vadd.f32 %v1715, %v1930
    %v1932 = vpop.f32.mrb[0].mxu0
    %1933 = vmatprep.mubr.f32.mxu0 0.0
    %1934 = vmatmul.mubr.f32.gmra.mrb[0].mxu0 %v1752
    %v1935 = vpop.f32.mrb[0].mxu0
    %v1936 = vadd.f32 %v1715, %v1935
    %v1937 = vpop.f32.mrb[0].mxu0
    %1938 = vmatprep.mubr.f32.mxu0 0.0
    %1939 = vmatmul.mubr.f32.gmra.mrb[0].mxu0 %v1755
    %v1940 = vpop.f32.mrb[0].mxu0
    %v1941 = vadd.f32 %v1715, %v1940
    %v1942 = vpop.f32.mrb[0].mxu0
    %1943 = vmatprep.mubr.f32.mxu0 0.0
    %1944 = vmatmul.mubr.f32.gmra.mrb[0].mxu0 %v1758
    %v1945 = vpop.f32.mrb[0].mxu0
    %v1946 = vadd.f32 %v1715, %v1945
    %v1947 = vpop.f32.mrb[0].mxu0
    %1948 = vmatprep.mubr.f32.mxu0 0.0
    %1949 = vmatmul.mubr.f32.gmra.mrb[0].mxu0 %v1761
    %v1950 = vpop.f32.mrb[0].mxu0
    %v1951 = vadd.f32 %v1715, %v1950
    %v1952 = vpop.f32.mrb[0].mxu0
    %1953 = vmatprep.mubr.f32.mxu0 0.0
    %1954 = vmatmul.mubr.f32.gmra.mrb[0].mxu0 %v1764
    %v1955 = vpop.f32.mrb[0].mxu0
    %v1956 = vadd.f32 %v1715, %v1955
    %v1957 = vpop.f32.mrb[0].mxu0
    %1958 = vmatprep.mubr.f32.mxu0 0.0
    %1959 = vmatmul.mubr.f32.gmra.mrb[0].mxu0 %v1767
    %v1960 = vpop.f32.mrb[0].mxu0
    %v1961 = vadd.f32 %v1715, %v1960
    %v1962 = vpop.f32.mrb[0].mxu0
    %1963 = vmatprep.mubr.f32.mxu0 0.0
    %1964 = vmatmul.mubr.f32.gmra.mrb[0].mxu0 %v1770
    %v1965 = vpop.f32.mrb[0].mxu0
    %v1966 = vadd.f32 %v1715, %v1965
    %v1967 = vpop.f32.mrb[0].mxu0
    %1968 = vmatprep.mubr.f32.mxu0 0.0
    %1969 = vmatmul.mubr.f32.gmra.mrb[0].mxu0 %v1773
    %v1970 = vpop.f32.mrb[0].mxu0
    %v1971 = vadd.f32 %v1715, %v1970
    %v1972 = vpop.f32.mrb[0].mxu0
    %1973 = vmatprep.mubr.f32.mxu0 0.0
    %1974 = vmatmul.mubr.f32.gmra.mrb[0].mxu0 %v1776
    %v1975 = vpop.f32.mrb[0].mxu0
    %v1976 = vadd.f32 %v1715, %v1975
    %v1977 = vpop.f32.mrb[0].mxu0
    %1978 = vmatprep.mubr.f32.mxu0 0.0
    %1979 = vmatmul.mubr.f32.gmra.mrb[0].mxu0 %v1779
    %v1980 = vpop.f32.mrb[0].mxu0
    %v1981 = vadd.f32 %v1715, %v1980
    %v1982 = vpop.f32.mrb[0].mxu0
    %1983 = vmatprep.mubr.f32.mxu0 0.0
    %1984 = vmatmul.mubr.f32.gmra.mrb[0].mxu0 %v1782
    %v1985 = vpop.f32.mrb[0].mxu0
    %v1986 = vadd.f32 %v1715, %v1985
    %v1987 = vpop.f32.mrb[0].mxu0
    %1988 = vmatprep.mubr.f32.mxu0 0.0
    %1989 = vmatmul.mubr.f32.gmra.mrb[0].mxu0 %v1785
    %v1990 = vpop.f32.mrb[0].mxu0
    %v1991 = vadd.f32 %v1715, %v1990
    %v1992 = vpop.f32.mrb[0].mxu0
    %1993 = vmatprep.mubr.f32.mxu0 0.0
    %1994 = vmatmul.mubr.f32.gmra.mrb[0].mxu0 %v1788
    %v1995 = vpop.f32.mrb[0].mxu0
    %v1996 = vadd.f32 %v1715, %v1995
    %v1997 = vpop.f32.mrb[0].mxu0
    %1998 = vmatprep.mubr.f32.mxu0 0.0
    %1999 = vmatmul.mubr.f32.gmra.mrb[0].mxu0 %v1791
    %v2000 = vpop.f32.mrb[0].mxu0
    %v2001 = vadd.f32 %v1715, %v2000
    %v2002 = vpop.f32.mrb[0].mxu0
    %2003 = vmatprep.mubr.f32.mxu0 0.0
    %2004 = vmatmul.mubr.f32.gmra.mrb[0].mxu0 %v1794
    %v2005 = vpop.f32.mrb[0].mxu0
    %v2006 = vadd.f32 %v1715, %v2005
    %v2007 = vpop.f32.mrb[0].mxu0
    %2008 = vmatprep.mubr.f32.mxu0 0.0
    %2009 = vmatmul.mubr.f32.gmra.mrb[0].mxu0 %v1797
    %v2010 = vpop.f32.mrb[0].mxu0
    %v2011 = vadd.f32 %v1715, %v2010
    %v2012 = vpop.f32.mrb[0].mxu0
    %2013 = vmatprep.mubr.f32.mxu0 0.0
    %2014 = vmatmul.mubr.f32.gmra.mrb[0].mxu0 %v1800
    %v2015 = vpop.f32.mrb[0].mxu0
    %v2016 = vadd.f32 %v1715, %v2015
    %v2017 = vpop.f32.mrb[0].mxu0
    %2018 = vmatprep.mubr.f32.mxu0 0.0
    %2019 = vmatmul.mubr.f32.gmra.mrb[0].mxu0 %v1803
    %v2020 = vpop.f32.mrb[0].mxu0
    %v2021 = vadd.f32 %v1715, %v2020
    %v2022 = vpop.f32.mrb[0].mxu0
    %2023 = vmatprep.mubr.f32.mxu0 0.0
    %2024 = vmatmul.mubr.f32.gmra.mrb[0].mxu0 %v1806
    %v2025 = vpop.f32.mrb[0].mxu0
    %v2026 = vadd.f32 %v1715, %v2025
    %v2027 = vpop.f32.mrb[0].mxu0
    %2028 = vmatprep.mubr.f32.mxu0 0.0
    %2029 = vmatmul.mubr.f32.gmra.mrb[0].mxu0 %v1809
    %v2030 = vpop.f32.mrb[0].mxu0
    %v2031 = vadd.f32 %v1715, %v2030
    %v2032 = vpop.f32.mrb[0].mxu0
    %2033 = vmatprep.mubr.f32.mxu0 0.0
    %2034 = vmatmul.mubr.f32.gmra.mrb[0].mxu0 %v1812
    %v2035 = vpop.f32.mrb[0].mxu0
    %v2036 = vadd.f32 %v1715, %v2035
    %v2037 = vpop.f32.mrb[0].mxu0
    %2038 = vdwg.mxu0
    %2039 = vxpose.xlu0.b32.start [1/16] %v1881, 128
    %2040 = vxpose.xlu0.b32.cont [2/16] %v1886, 128
    %2041 = vxpose.xlu0.b32.cont [3/16] 0.0, 128
    %2042 = vxpose.xlu0.b32.cont [4/16] 0.0, 128
    %2043 = vxpose.xlu0.b32.cont [5/16] 0.0, 128
    %2044 = vxpose.xlu0.b32.cont [6/16] 0.0, 128
    %2045 = vxpose.xlu0.b32.cont [7/16] 0.0, 128
    %2046 = vxpose.xlu0.b32.cont [8/16] 0.0, 128
    %2047 = vxpose.xlu0.b32.cont [9/16] 0.0, 128
    %2048 = vxpose.xlu0.b32.cont [10/16] 0.0, 128
    %2049 = vxpose.xlu0.b32.cont [11/16] 0.0, 128
    %2050 = vxpose.xlu0.b32.cont [12/16] 0.0, 128
    %2051 = vxpose.xlu0.b32.cont [13/16] 0.0, 128
    %2052 = vxpose.xlu0.b32.cont [14/16] 0.0, 128
    %2053 = vxpose.xlu0.b32.cont [15/16] 0.0, 128
    %2054 = vxpose.xlu0.b32.end [16/16] 0.0, 128
    %v2055 = vpop.trf.xlu0
    %v2056 = vpop.trf.xlu0
    %v2057 = vpop.trf.xlu0
    %v2058 = vpop.trf.xlu0
    %v2059 = vpop.trf.xlu0
    %v2060 = vpop.trf.xlu0
    %v2061 = vpop.trf.xlu0
    %v2062 = vpop.trf.xlu0
    %v2063 = vpop.trf.xlu0
    %v2064 = vpop.trf.xlu0
    %v2065 = vpop.trf.xlu0
    %v2066 = vpop.trf.xlu0
    %v2067 = vpop.trf.xlu0
    %v2068 = vpop.trf.xlu0
    %v2069 = vpop.trf.xlu0
    %v2070 = vpop.trf.xlu0
    %2071 = vxpose.xlu0.b32.start [1/16] %v1891, 128
    %2072 = vxpose.xlu0.b32.cont [2/16] %v1896, 128
    %2073 = vxpose.xlu0.b32.cont [3/16] 0.0, 128
    %2074 = vxpose.xlu0.b32.cont [4/16] 0.0, 128
    %2075 = vxpose.xlu0.b32.cont [5/16] 0.0, 128
    %2076 = vxpose.xlu0.b32.cont [6/16] 0.0, 128
    %2077 = vxpose.xlu0.b32.cont [7/16] 0.0, 128
    %2078 = vxpose.xlu0.b32.cont [8/16] 0.0, 128
    %2079 = vxpose.xlu0.b32.cont [9/16] 0.0, 128
    %2080 = vxpose.xlu0.b32.cont [10/16] 0.0, 128
    %2081 = vxpose.xlu0.b32.cont [11/16] 0.0, 128
    %2082 = vxpose.xlu0.b32.cont [12/16] 0.0, 128
    %2083 = vxpose.xlu0.b32.cont [13/16] 0.0, 128
    %2084 = vxpose.xlu0.b32.cont [14/16] 0.0, 128
    %2085 = vxpose.xlu0.b32.cont [15/16] 0.0, 128
    %2086 = vxpose.xlu0.b32.end [16/16] 0.0, 128
    %v2087 = vpop.trf.xlu0
    %v2088 = vpop.trf.xlu0
    %v2089 = vpop.trf.xlu0
    %v2090 = vpop.trf.xlu0
    %v2091 = vpop.trf.xlu0
    %v2092 = vpop.trf.xlu0
    %v2093 = vpop.trf.xlu0
    %v2094 = vpop.trf.xlu0
    %v2095 = vpop.trf.xlu0
    %v2096 = vpop.trf.xlu0
    %v2097 = vpop.trf.xlu0
    %v2098 = vpop.trf.xlu0
    %v2099 = vpop.trf.xlu0
    %v2100 = vpop.trf.xlu0
    %v2101 = vpop.trf.xlu0
    %v2102 = vpop.trf.xlu0
    %2103 = vxpose.xlu0.b32.start [1/16] %v1901, 128
    %2104 = vxpose.xlu0.b32.cont [2/16] %v1906, 128
    %2105 = vxpose.xlu0.b32.cont [3/16] 0.0, 128
    %2106 = vxpose.xlu0.b32.cont [4/16] 0.0, 128
    %2107 = vxpose.xlu0.b32.cont [5/16] 0.0, 128
    %2108 = vxpose.xlu0.b32.cont [6/16] 0.0, 128
    %2109 = vxpose.xlu0.b32.cont [7/16] 0.0, 128
    %2110 = vxpose.xlu0.b32.cont [8/16] 0.0, 128
    %2111 = vxpose.xlu0.b32.cont [9/16] 0.0, 128
    %2112 = vxpose.xlu0.b32.cont [10/16] 0.0, 128
    %2113 = vxpose.xlu0.b32.cont [11/16] 0.0, 128
    %2114 = vxpose.xlu0.b32.cont [12/16] 0.0, 128
    %2115 = vxpose.xlu0.b32.cont [13/16] 0.0, 128
    %2116 = vxpose.xlu0.b32.cont [14/16] 0.0, 128
    %2117 = vxpose.xlu0.b32.cont [15/16] 0.0, 128
    %2118 = vxpose.xlu0.b32.end [16/16] 0.0, 128
    %v2119 = vpop.trf.xlu0
    %v2120 = vpop.trf.xlu0
    %v2121 = vpop.trf.xlu0
    %v2122 = vpop.trf.xlu0
    %v2123 = vpop.trf.xlu0
    %v2124 = vpop.trf.xlu0
    %v2125 = vpop.trf.xlu0
    %v2126 = vpop.trf.xlu0
    %v2127 = vpop.trf.xlu0
    %v2128 = vpop.trf.xlu0
    %v2129 = vpop.trf.xlu0
    %v2130 = vpop.trf.xlu0
    %v2131 = vpop.trf.xlu0
    %v2132 = vpop.trf.xlu0
    %v2133 = vpop.trf.xlu0
    %v2134 = vpop.trf.xlu0
    %2135 = vxpose.xlu0.b32.start [1/16] %v1911, 128
    %2136 = vxpose.xlu0.b32.cont [2/16] %v1916, 128
    %2137 = vxpose.xlu0.b32.cont [3/16] 0.0, 128
    %2138 = vxpose.xlu0.b32.cont [4/16] 0.0, 128
    %2139 = vxpose.xlu0.b32.cont [5/16] 0.0, 128
    %2140 = vxpose.xlu0.b32.cont [6/16] 0.0, 128
    %2141 = vxpose.xlu0.b32.cont [7/16] 0.0, 128
    %2142 = vxpose.xlu0.b32.cont [8/16] 0.0, 128
    %2143 = vxpose.xlu0.b32.cont [9/16] 0.0, 128
    %2144 = vxpose.xlu0.b32.cont [10/16] 0.0, 128
    %2145 = vxpose.xlu0.b32.cont [11/16] 0.0, 128
    %2146 = vxpose.xlu0.b32.cont [12/16] 0.0, 128
    %2147 = vxpose.xlu0.b32.cont [13/16] 0.0, 128
    %2148 = vxpose.xlu0.b32.cont [14/16] 0.0, 128
    %2149 = vxpose.xlu0.b32.cont [15/16] 0.0, 128
    %2150 = vxpose.xlu0.b32.end [16/16] 0.0, 128
    %v2151 = vpop.trf.xlu0
    %v2152 = vpop.trf.xlu0
    %v2153 = vpop.trf.xlu0
    %v2154 = vpop.trf.xlu0
    %v2155 = vpop.trf.xlu0
    %v2156 = vpop.trf.xlu0
    %v2157 = vpop.trf.xlu0
    %v2158 = vpop.trf.xlu0
    %v2159 = vpop.trf.xlu0
    %v2160 = vpop.trf.xlu0
    %v2161 = vpop.trf.xlu0
    %v2162 = vpop.trf.xlu0
    %v2163 = vpop.trf.xlu0
    %v2164 = vpop.trf.xlu0
    %v2165 = vpop.trf.xlu0
    %v2166 = vpop.trf.xlu0
    %2167 = vxpose.xlu0.b32.start [1/16] %v1921, 128
    %2168 = vxpose.xlu0.b32.cont [2/16] %v1926, 128
    %2169 = vxpose.xlu0.b32.cont [3/16] 0.0, 128
    %2170 = vxpose.xlu0.b32.cont [4/16] 0.0, 128
    %2171 = vxpose.xlu0.b32.cont [5/16] 0.0, 128
    %2172 = vxpose.xlu0.b32.cont [6/16] 0.0, 128
    %2173 = vxpose.xlu0.b32.cont [7/16] 0.0, 128
    %2174 = vxpose.xlu0.b32.cont [8/16] 0.0, 128
    %2175 = vxpose.xlu0.b32.cont [9/16] 0.0, 128
    %2176 = vxpose.xlu0.b32.cont [10/16] 0.0, 128
    %2177 = vxpose.xlu0.b32.cont [11/16] 0.0, 128
    %2178 = vxpose.xlu0.b32.cont [12/16] 0.0, 128
    %2179 = vxpose.xlu0.b32.cont [13/16] 0.0, 128
    %2180 = vxpose.xlu0.b32.cont [14/16] 0.0, 128
    %2181 = vxpose.xlu0.b32.cont [15/16] 0.0, 128
    %2182 = vxpose.xlu0.b32.end [16/16] 0.0, 128
    %v2183 = vpop.trf.xlu0
    %v2184 = vpop.trf.xlu0
    %v2185 = vpop.trf.xlu0
    %v2186 = vpop.trf.xlu0
    %v2187 = vpop.trf.xlu0
    %v2188 = vpop.trf.xlu0
    %v2189 = vpop.trf.xlu0
    %v2190 = vpop.trf.xlu0
    %v2191 = vpop.trf.xlu0
    %v2192 = vpop.trf.xlu0
    %v2193 = vpop.trf.xlu0
    %v2194 = vpop.trf.xlu0
    %v2195 = vpop.trf.xlu0
    %v2196 = vpop.trf.xlu0
    %v2197 = vpop.trf.xlu0
    %v2198 = vpop.trf.xlu0
    %2199 = vxpose.xlu0.b32.start [1/16] %v1931, 128
    %2200 = vxpose.xlu0.b32.cont [2/16] %v1936, 128
    %2201 = vxpose.xlu0.b32.cont [3/16] 0.0, 128
    %2202 = vxpose.xlu0.b32.cont [4/16] 0.0, 128
    %2203 = vxpose.xlu0.b32.cont [5/16] 0.0, 128
    %2204 = vxpose.xlu0.b32.cont [6/16] 0.0, 128
    %2205 = vxpose.xlu0.b32.cont [7/16] 0.0, 128
    %2206 = vxpose.xlu0.b32.cont [8/16] 0.0, 128
    %2207 = vxpose.xlu0.b32.cont [9/16] 0.0, 128
    %2208 = vxpose.xlu0.b32.cont [10/16] 0.0, 128
    %2209 = vxpose.xlu0.b32.cont [11/16] 0.0, 128
    %2210 = vxpose.xlu0.b32.cont [12/16] 0.0, 128
    %2211 = vxpose.xlu0.b32.cont [13/16] 0.0, 128
    %2212 = vxpose.xlu0.b32.cont [14/16] 0.0, 128
    %2213 = vxpose.xlu0.b32.cont [15/16] 0.0, 128
    %2214 = vxpose.xlu0.b32.end [16/16] 0.0, 128
    %v2215 = vpop.trf.xlu0
    %v2216 = vpop.trf.xlu0
    %v2217 = vpop.trf.xlu0
    %v2218 = vpop.trf.xlu0
    %v2219 = vpop.trf.xlu0
    %v2220 = vpop.trf.xlu0
    %v2221 = vpop.trf.xlu0
    %v2222 = vpop.trf.xlu0
    %v2223 = vpop.trf.xlu0
    %v2224 = vpop.trf.xlu0
    %v2225 = vpop.trf.xlu0
    %v2226 = vpop.trf.xlu0
    %v2227 = vpop.trf.xlu0
    %v2228 = vpop.trf.xlu0
    %v2229 = vpop.trf.xlu0
    %v2230 = vpop.trf.xlu0
    %2231 = vxpose.xlu0.b32.start [1/16] %v1941, 128
    %2232 = vxpose.xlu0.b32.cont [2/16] %v1946, 128
    %2233 = vxpose.xlu0.b32.cont [3/16] 0.0, 128
    %2234 = vxpose.xlu0.b32.cont [4/16] 0.0, 128
    %2235 = vxpose.xlu0.b32.cont [5/16] 0.0, 128
    %2236 = vxpose.xlu0.b32.cont [6/16] 0.0, 128
    %2237 = vxpose.xlu0.b32.cont [7/16] 0.0, 128
    %2238 = vxpose.xlu0.b32.cont [8/16] 0.0, 128
    %2239 = vxpose.xlu0.b32.cont [9/16] 0.0, 128
    %2240 = vxpose.xlu0.b32.cont [10/16] 0.0, 128
    %2241 = vxpose.xlu0.b32.cont [11/16] 0.0, 128
    %2242 = vxpose.xlu0.b32.cont [12/16] 0.0, 128
    %2243 = vxpose.xlu0.b32.cont [13/16] 0.0, 128
    %2244 = vxpose.xlu0.b32.cont [14/16] 0.0, 128
    %2245 = vxpose.xlu0.b32.cont [15/16] 0.0, 128
    %2246 = vxpose.xlu0.b32.end [16/16] 0.0, 128
    %v2247 = vpop.trf.xlu0
    %v2248 = vpop.trf.xlu0
    %v2249 = vpop.trf.xlu0
    %v2250 = vpop.trf.xlu0
    %v2251 = vpop.trf.xlu0
    %v2252 = vpop.trf.xlu0
    %v2253 = vpop.trf.xlu0
    %v2254 = vpop.trf.xlu0
    %v2255 = vpop.trf.xlu0
    %v2256 = vpop.trf.xlu0
    %v2257 = vpop.trf.xlu0
    %v2258 = vpop.trf.xlu0
    %v2259 = vpop.trf.xlu0
    %v2260 = vpop.trf.xlu0
    %v2261 = vpop.trf.xlu0
    %v2262 = vpop.trf.xlu0
    %2263 = vxpose.xlu0.b32.start [1/16] %v1951, 128
    %2264 = vxpose.xlu0.b32.cont [2/16] %v1956, 128
    %2265 = vxpose.xlu0.b32.cont [3/16] 0.0, 128
    %2266 = vxpose.xlu0.b32.cont [4/16] 0.0, 128
    %2267 = vxpose.xlu0.b32.cont [5/16] 0.0, 128
    %2268 = vxpose.xlu0.b32.cont [6/16] 0.0, 128
    %2269 = vxpose.xlu0.b32.cont [7/16] 0.0, 128
    %2270 = vxpose.xlu0.b32.cont [8/16] 0.0, 128
    %2271 = vxpose.xlu0.b32.cont [9/16] 0.0, 128
    %2272 = vxpose.xlu0.b32.cont [10/16] 0.0, 128
    %2273 = vxpose.xlu0.b32.cont [11/16] 0.0, 128
    %2274 = vxpose.xlu0.b32.cont [12/16] 0.0, 128
    %2275 = vxpose.xlu0.b32.cont [13/16] 0.0, 128
    %2276 = vxpose.xlu0.b32.cont [14/16] 0.0, 128
    %2277 = vxpose.xlu0.b32.cont [15/16] 0.0, 128
    %2278 = vxpose.xlu0.b32.end [16/16] 0.0, 128
    %v2279 = vpop.trf.xlu0
    %v2280 = vpop.trf.xlu0
    %v2281 = vpop.trf.xlu0
    %v2282 = vpop.trf.xlu0
    %v2283 = vpop.trf.xlu0
    %v2284 = vpop.trf.xlu0
    %v2285 = vpop.trf.xlu0
    %v2286 = vpop.trf.xlu0
    %v2287 = vpop.trf.xlu0
    %v2288 = vpop.trf.xlu0
    %v2289 = vpop.trf.xlu0
    %v2290 = vpop.trf.xlu0
    %v2291 = vpop.trf.xlu0
    %v2292 = vpop.trf.xlu0
    %v2293 = vpop.trf.xlu0
    %v2294 = vpop.trf.xlu0
    %2295 = vxpose.xlu0.b32.start [1/16] %v1961, 128
    %2296 = vxpose.xlu0.b32.cont [2/16] %v1966, 128
    %2297 = vxpose.xlu0.b32.cont [3/16] 0.0, 128
    %2298 = vxpose.xlu0.b32.cont [4/16] 0.0, 128
    %2299 = vxpose.xlu0.b32.cont [5/16] 0.0, 128
    %2300 = vxpose.xlu0.b32.cont [6/16] 0.0, 128
    %2301 = vxpose.xlu0.b32.cont [7/16] 0.0, 128
    %2302 = vxpose.xlu0.b32.cont [8/16] 0.0, 128
    %2303 = vxpose.xlu0.b32.cont [9/16] 0.0, 128
    %2304 = vxpose.xlu0.b32.cont [10/16] 0.0, 128
    %2305 = vxpose.xlu0.b32.cont [11/16] 0.0, 128
    %2306 = vxpose.xlu0.b32.cont [12/16] 0.0, 128
    %2307 = vxpose.xlu0.b32.cont [13/16] 0.0, 128
    %2308 = vxpose.xlu0.b32.cont [14/16] 0.0, 128
    %2309 = vxpose.xlu0.b32.cont [15/16] 0.0, 128
    %2310 = vxpose.xlu0.b32.end [16/16] 0.0, 128
    %v2311 = vpop.trf.xlu0
    %v2312 = vpop.trf.xlu0
    %v2313 = vpop.trf.xlu0
    %v2314 = vpop.trf.xlu0
    %v2315 = vpop.trf.xlu0
    %v2316 = vpop.trf.xlu0
    %v2317 = vpop.trf.xlu0
    %v2318 = vpop.trf.xlu0
    %v2319 = vpop.trf.xlu0
    %v2320 = vpop.trf.xlu0
    %v2321 = vpop.trf.xlu0
    %v2322 = vpop.trf.xlu0
    %v2323 = vpop.trf.xlu0
    %v2324 = vpop.trf.xlu0
    %v2325 = vpop.trf.xlu0
    %v2326 = vpop.trf.xlu0
    %2327 = vxpose.xlu0.b32.start [1/16] %v1971, 128
    %2328 = vxpose.xlu0.b32.cont [2/16] %v1976, 128
    %2329 = vxpose.xlu0.b32.cont [3/16] 0.0, 128
    %2330 = vxpose.xlu0.b32.cont [4/16] 0.0, 128
    %2331 = vxpose.xlu0.b32.cont [5/16] 0.0, 128
    %2332 = vxpose.xlu0.b32.cont [6/16] 0.0, 128
    %2333 = vxpose.xlu0.b32.cont [7/16] 0.0, 128
    %2334 = vxpose.xlu0.b32.cont [8/16] 0.0, 128
    %2335 = vxpose.xlu0.b32.cont [9/16] 0.0, 128
    %2336 = vxpose.xlu0.b32.cont [10/16] 0.0, 128
    %2337 = vxpose.xlu0.b32.cont [11/16] 0.0, 128
    %2338 = vxpose.xlu0.b32.cont [12/16] 0.0, 128
    %2339 = vxpose.xlu0.b32.cont [13/16] 0.0, 128
    %2340 = vxpose.xlu0.b32.cont [14/16] 0.0, 128
    %2341 = vxpose.xlu0.b32.cont [15/16] 0.0, 128
    %2342 = vxpose.xlu0.b32.end [16/16] 0.0, 128
    %v2343 = vpop.trf.xlu0
    %v2344 = vpop.trf.xlu0
    %v2345 = vpop.trf.xlu0
    %v2346 = vpop.trf.xlu0
    %v2347 = vpop.trf.xlu0
    %v2348 = vpop.trf.xlu0
    %v2349 = vpop.trf.xlu0
    %v2350 = vpop.trf.xlu0
    %v2351 = vpop.trf.xlu0
    %v2352 = vpop.trf.xlu0
    %v2353 = vpop.trf.xlu0
    %v2354 = vpop.trf.xlu0
    %v2355 = vpop.trf.xlu0
    %v2356 = vpop.trf.xlu0
    %v2357 = vpop.trf.xlu0
    %v2358 = vpop.trf.xlu0
    %2359 = vxpose.xlu0.b32.start [1/16] %v1981, 128
    %2360 = vxpose.xlu0.b32.cont [2/16] %v1986, 128
    %2361 = vxpose.xlu0.b32.cont [3/16] 0.0, 128
    %2362 = vxpose.xlu0.b32.cont [4/16] 0.0, 128
    %2363 = vxpose.xlu0.b32.cont [5/16] 0.0, 128
    %2364 = vxpose.xlu0.b32.cont [6/16] 0.0, 128
    %2365 = vxpose.xlu0.b32.cont [7/16] 0.0, 128
    %2366 = vxpose.xlu0.b32.cont [8/16] 0.0, 128
    %2367 = vxpose.xlu0.b32.cont [9/16] 0.0, 128
    %2368 = vxpose.xlu0.b32.cont [10/16] 0.0, 128
    %2369 = vxpose.xlu0.b32.cont [11/16] 0.0, 128
    %2370 = vxpose.xlu0.b32.cont [12/16] 0.0, 128
    %2371 = vxpose.xlu0.b32.cont [13/16] 0.0, 128
    %2372 = vxpose.xlu0.b32.cont [14/16] 0.0, 128
    %2373 = vxpose.xlu0.b32.cont [15/16] 0.0, 128
    %2374 = vxpose.xlu0.b32.end [16/16] 0.0, 128
    %v2375 = vpop.trf.xlu0
    %v2376 = vpop.trf.xlu0
    %v2377 = vpop.trf.xlu0
    %v2378 = vpop.trf.xlu0
    %v2379 = vpop.trf.xlu0
    %v2380 = vpop.trf.xlu0
    %v2381 = vpop.trf.xlu0
    %v2382 = vpop.trf.xlu0
    %v2383 = vpop.trf.xlu0
    %v2384 = vpop.trf.xlu0
    %v2385 = vpop.trf.xlu0
    %v2386 = vpop.trf.xlu0
    %v2387 = vpop.trf.xlu0
    %v2388 = vpop.trf.xlu0
    %v2389 = vpop.trf.xlu0
    %v2390 = vpop.trf.xlu0
    %2391 = vxpose.xlu0.b32.start [1/16] %v1991, 128
    %2392 = vxpose.xlu0.b32.cont [2/16] %v1996, 128
    %2393 = vxpose.xlu0.b32.cont [3/16] 0.0, 128
    %2394 = vxpose.xlu0.b32.cont [4/16] 0.0, 128
    %2395 = vxpose.xlu0.b32.cont [5/16] 0.0, 128
    %2396 = vxpose.xlu0.b32.cont [6/16] 0.0, 128
    %2397 = vxpose.xlu0.b32.cont [7/16] 0.0, 128
    %2398 = vxpose.xlu0.b32.cont [8/16] 0.0, 128
    %2399 = vxpose.xlu0.b32.cont [9/16] 0.0, 128
    %2400 = vxpose.xlu0.b32.cont [10/16] 0.0, 128
    %2401 = vxpose.xlu0.b32.cont [11/16] 0.0, 128
    %2402 = vxpose.xlu0.b32.cont [12/16] 0.0, 128
    %2403 = vxpose.xlu0.b32.cont [13/16] 0.0, 128
    %2404 = vxpose.xlu0.b32.cont [14/16] 0.0, 128
    %2405 = vxpose.xlu0.b32.cont [15/16] 0.0, 128
    %2406 = vxpose.xlu0.b32.end [16/16] 0.0, 128
    %v2407 = vpop.trf.xlu0
    %v2408 = vpop.trf.xlu0
    %v2409 = vpop.trf.xlu0
    %v2410 = vpop.trf.xlu0
    %v2411 = vpop.trf.xlu0
    %v2412 = vpop.trf.xlu0
    %v2413 = vpop.trf.xlu0
    %v2414 = vpop.trf.xlu0
    %v2415 = vpop.trf.xlu0
    %v2416 = vpop.trf.xlu0
    %v2417 = vpop.trf.xlu0
    %v2418 = vpop.trf.xlu0
    %v2419 = vpop.trf.xlu0
    %v2420 = vpop.trf.xlu0
    %v2421 = vpop.trf.xlu0
    %v2422 = vpop.trf.xlu0
    %2423 = vxpose.xlu0.b32.start [1/16] %v2001, 128
    %2424 = vxpose.xlu0.b32.cont [2/16] %v2006, 128
    %2425 = vxpose.xlu0.b32.cont [3/16] 0.0, 128
    %2426 = vxpose.xlu0.b32.cont [4/16] 0.0, 128
    %2427 = vxpose.xlu0.b32.cont [5/16] 0.0, 128
    %2428 = vxpose.xlu0.b32.cont [6/16] 0.0, 128
    %2429 = vxpose.xlu0.b32.cont [7/16] 0.0, 128
    %2430 = vxpose.xlu0.b32.cont [8/16] 0.0, 128
    %2431 = vxpose.xlu0.b32.cont [9/16] 0.0, 128
    %2432 = vxpose.xlu0.b32.cont [10/16] 0.0, 128
    %2433 = vxpose.xlu0.b32.cont [11/16] 0.0, 128
    %2434 = vxpose.xlu0.b32.cont [12/16] 0.0, 128
    %2435 = vxpose.xlu0.b32.cont [13/16] 0.0, 128
    %2436 = vxpose.xlu0.b32.cont [14/16] 0.0, 128
    %2437 = vxpose.xlu0.b32.cont [15/16] 0.0, 128
    %2438 = vxpose.xlu0.b32.end [16/16] 0.0, 128
    %v2439 = vpop.trf.xlu0
    %v2440 = vpop.trf.xlu0
    %v2441 = vpop.trf.xlu0
    %v2442 = vpop.trf.xlu0
    %v2443 = vpop.trf.xlu0
    %v2444 = vpop.trf.xlu0
    %v2445 = vpop.trf.xlu0
    %v2446 = vpop.trf.xlu0
    %v2447 = vpop.trf.xlu0
    %v2448 = vpop.trf.xlu0
    %v2449 = vpop.trf.xlu0
    %v2450 = vpop.trf.xlu0
    %v2451 = vpop.trf.xlu0
    %v2452 = vpop.trf.xlu0
    %v2453 = vpop.trf.xlu0
    %v2454 = vpop.trf.xlu0
    %2455 = vxpose.xlu0.b32.start [1/16] %v2011, 128
    %2456 = vxpose.xlu0.b32.cont [2/16] %v2016, 128
    %2457 = vxpose.xlu0.b32.cont [3/16] 0.0, 128
    %2458 = vxpose.xlu0.b32.cont [4/16] 0.0, 128
    %2459 = vxpose.xlu0.b32.cont [5/16] 0.0, 128
    %2460 = vxpose.xlu0.b32.cont [6/16] 0.0, 128
    %2461 = vxpose.xlu0.b32.cont [7/16] 0.0, 128
    %2462 = vxpose.xlu0.b32.cont [8/16] 0.0, 128
    %2463 = vxpose.xlu0.b32.cont [9/16] 0.0, 128
    %2464 = vxpose.xlu0.b32.cont [10/16] 0.0, 128
    %2465 = vxpose.xlu0.b32.cont [11/16] 0.0, 128
    %2466 = vxpose.xlu0.b32.cont [12/16] 0.0, 128
    %2467 = vxpose.xlu0.b32.cont [13/16] 0.0, 128
    %2468 = vxpose.xlu0.b32.cont [14/16] 0.0, 128
    %2469 = vxpose.xlu0.b32.cont [15/16] 0.0, 128
    %2470 = vxpose.xlu0.b32.end [16/16] 0.0, 128
    %v2471 = vpop.trf.xlu0
    %v2472 = vpop.trf.xlu0
    %v2473 = vpop.trf.xlu0
    %v2474 = vpop.trf.xlu0
    %v2475 = vpop.trf.xlu0
    %v2476 = vpop.trf.xlu0
    %v2477 = vpop.trf.xlu0
    %v2478 = vpop.trf.xlu0
    %v2479 = vpop.trf.xlu0
    %v2480 = vpop.trf.xlu0
    %v2481 = vpop.trf.xlu0
    %v2482 = vpop.trf.xlu0
    %v2483 = vpop.trf.xlu0
    %v2484 = vpop.trf.xlu0
    %v2485 = vpop.trf.xlu0
    %v2486 = vpop.trf.xlu0
    %2487 = vxpose.xlu0.b32.start [1/16] %v2021, 128
    %2488 = vxpose.xlu0.b32.cont [2/16] %v2026, 128
    %2489 = vxpose.xlu0.b32.cont [3/16] 0.0, 128
    %2490 = vxpose.xlu0.b32.cont [4/16] 0.0, 128
    %2491 = vxpose.xlu0.b32.cont [5/16] 0.0, 128
    %2492 = vxpose.xlu0.b32.cont [6/16] 0.0, 128
    %2493 = vxpose.xlu0.b32.cont [7/16] 0.0, 128
    %2494 = vxpose.xlu0.b32.cont [8/16] 0.0, 128
    %2495 = vxpose.xlu0.b32.cont [9/16] 0.0, 128
    %2496 = vxpose.xlu0.b32.cont [10/16] 0.0, 128
    %2497 = vxpose.xlu0.b32.cont [11/16] 0.0, 128
    %2498 = vxpose.xlu0.b32.cont [12/16] 0.0, 128
    %2499 = vxpose.xlu0.b32.cont [13/16] 0.0, 128
    %2500 = vxpose.xlu0.b32.cont [14/16] 0.0, 128
    %2501 = vxpose.xlu0.b32.cont [15/16] 0.0, 128
    %2502 = vxpose.xlu0.b32.end [16/16] 0.0, 128
    %v2503 = vpop.trf.xlu0
    %v2504 = vpop.trf.xlu0
    %v2505 = vpop.trf.xlu0
    %v2506 = vpop.trf.xlu0
    %v2507 = vpop.trf.xlu0
    %v2508 = vpop.trf.xlu0
    %v2509 = vpop.trf.xlu0
    %v2510 = vpop.trf.xlu0
    %v2511 = vpop.trf.xlu0
    %v2512 = vpop.trf.xlu0
    %v2513 = vpop.trf.xlu0
    %v2514 = vpop.trf.xlu0
    %v2515 = vpop.trf.xlu0
    %v2516 = vpop.trf.xlu0
    %v2517 = vpop.trf.xlu0
    %v2518 = vpop.trf.xlu0
    %2519 = vxpose.xlu0.b32.start [1/16] %v2031, 128
    %2520 = vxpose.xlu0.b32.cont [2/16] %v2036, 128
    %2521 = vxpose.xlu0.b32.cont [3/16] 0.0, 128
    %2522 = vxpose.xlu0.b32.cont [4/16] 0.0, 128
    %2523 = vxpose.xlu0.b32.cont [5/16] 0.0, 128
    %2524 = vxpose.xlu0.b32.cont [6/16] 0.0, 128
    %2525 = vxpose.xlu0.b32.cont [7/16] 0.0, 128
    %2526 = vxpose.xlu0.b32.cont [8/16] 0.0, 128
    %2527 = vxpose.xlu0.b32.cont [9/16] 0.0, 128
    %2528 = vxpose.xlu0.b32.cont [10/16] 0.0, 128
    %2529 = vxpose.xlu0.b32.cont [11/16] 0.0, 128
    %2530 = vxpose.xlu0.b32.cont [12/16] 0.0, 128
    %2531 = vxpose.xlu0.b32.cont [13/16] 0.0, 128
    %2532 = vxpose.xlu0.b32.cont [14/16] 0.0, 128
    %2533 = vxpose.xlu0.b32.cont [15/16] 0.0, 128
    %2534 = vxpose.xlu0.b32.end [16/16] 0.0, 128
    %v2535 = vpop.trf.xlu0
    %v2536 = vpop.trf.xlu0
    %v2537 = vpop.trf.xlu0
    %v2538 = vpop.trf.xlu0
    %v2539 = vpop.trf.xlu0
    %v2540 = vpop.trf.xlu0
    %v2541 = vpop.trf.xlu0
    %v2542 = vpop.trf.xlu0
    %v2543 = vpop.trf.xlu0
    %v2544 = vpop.trf.xlu0
    %v2545 = vpop.trf.xlu0
    %v2546 = vpop.trf.xlu0
    %v2547 = vpop.trf.xlu0
    %v2548 = vpop.trf.xlu0
    %v2549 = vpop.trf.xlu0
    %v2550 = vpop.trf.xlu0
    %v2551 = vadd.f32 %v176, %v2055
    %v2552 = vadd.f32 %v177, %v2056
    %v2553 = vadd.f32 %v178, %v2087
    %v2554 = vadd.f32 %v179, %v2088
    %v2555 = vadd.f32 %v180, %v2119
    %v2556 = vadd.f32 %v181, %v2120
    %v2557 = vadd.f32 %v182, %v2151
    %v2558 = vadd.f32 %v183, %v2152
    %v2559 = vadd.f32 %v184, %v2183
    %v2560 = vadd.f32 %v185, %v2184
    %v2561 = vadd.f32 %v186, %v2215
    %v2562 = vadd.f32 %v187, %v2216
    %v2563 = vadd.f32 %v188, %v2247
    %v2564 = vadd.f32 %v189, %v2248
    %v2565 = vadd.f32 %v190, %v2279
    %v2566 = vadd.f32 %v191, %v2280
    %v2567 = vadd.f32 %v192, %v2311
    %v2568 = vadd.f32 %v193, %v2312
    %v2569 = vadd.f32 %v194, %v2343
    %v2570 = vadd.f32 %v195, %v2344
    %v2571 = vadd.f32 %v196, %v2375
    %v2572 = vadd.f32 %v197, %v2376
    %v2573 = vadd.f32 %v198, %v2407
    %v2574 = vadd.f32 %v199, %v2408
    %v2575 = vadd.f32 %v200, %v2439
    %v2576 = vadd.f32 %v201, %v2440
    %v2577 = vadd.f32 %v202, %v2471
    %v2578 = vadd.f32 %v203, %v2472
    %v2579 = vadd.f32 %v204, %v2503
    %v2580 = vadd.f32 %v205, %v2504
    %v2581 = vadd.f32 %v206, %v2535
    %v2582 = vadd.f32 %v207, %v2536
    %v2583 = vsel %vm210, %v2551, 0.0
    %2584 = vadd.xlane.f32.xlu0 %v2583
    %v2585 = vpop.xlane.xlu0 %2584
    %v2586 = vsel %vm210, %v2552, 0.0
    %2587 = vadd.xlane.f32.xlu0 %v2586
    %v2588 = vpop.xlane.xlu0 %2587
    %v2589 = vsel %vm210, %v2553, 0.0
    %2590 = vadd.xlane.f32.xlu0 %v2589
    %v2591 = vpop.xlane.xlu0 %2590
    %v2592 = vsel %vm210, %v2554, 0.0
    %2593 = vadd.xlane.f32.xlu0 %v2592
    %v2594 = vpop.xlane.xlu0 %2593
    %v2595 = vsel %vm210, %v2555, 0.0
    %2596 = vadd.xlane.f32.xlu0 %v2595
    %v2597 = vpop.xlane.xlu0 %2596
    %v2598 = vsel %vm210, %v2556, 0.0
    %2599 = vadd.xlane.f32.xlu0 %v2598
    %v2600 = vpop.xlane.xlu0 %2599
    %v2601 = vsel %vm210, %v2557, 0.0
    %2602 = vadd.xlane.f32.xlu0 %v2601
    %v2603 = vpop.xlane.xlu0 %2602
    %v2604 = vsel %vm210, %v2558, 0.0
    %2605 = vadd.xlane.f32.xlu0 %v2604
    %v2606 = vpop.xlane.xlu0 %2605
    %v2607 = vsel %vm210, %v2559, 0.0
    %2608 = vadd.xlane.f32.xlu0 %v2607
    %v2609 = vpop.xlane.xlu0 %2608
    %v2610 = vsel %vm210, %v2560, 0.0
    %2611 = vadd.xlane.f32.xlu0 %v2610
    %v2612 = vpop.xlane.xlu0 %2611
    %v2613 = vsel %vm210, %v2561, 0.0
    %2614 = vadd.xlane.f32.xlu0 %v2613
    %v2615 = vpop.xlane.xlu0 %2614
    %v2616 = vsel %vm210, %v2562, 0.0
    %2617 = vadd.xlane.f32.xlu0 %v2616
    %v2618 = vpop.xlane.xlu0 %2617
    %v2619 = vsel %vm210, %v2563, 0.0
    %2620 = vadd.xlane.f32.xlu0 %v2619
    %v2621 = vpop.xlane.xlu0 %2620
    %v2622 = vsel %vm210, %v2564, 0.0
    %2623 = vadd.xlane.f32.xlu0 %v2622
    %v2624 = vpop.xlane.xlu0 %2623
    %v2625 = vsel %vm210, %v2565, 0.0
    %2626 = vadd.xlane.f32.xlu0 %v2625
    %v2627 = vpop.xlane.xlu0 %2626
    %v2628 = vsel %vm210, %v2566, 0.0
    %2629 = vadd.xlane.f32.xlu0 %v2628
    %v2630 = vpop.xlane.xlu0 %2629
    %v2631 = vsel %vm210, %v2567, 0.0
    %2632 = vadd.xlane.f32.xlu0 %v2631
    %v2633 = vpop.xlane.xlu0 %2632
    %v2634 = vsel %vm210, %v2568, 0.0
    %2635 = vadd.xlane.f32.xlu0 %v2634
    %v2636 = vpop.xlane.xlu0 %2635
    %v2637 = vsel %vm210, %v2569, 0.0
    %2638 = vadd.xlane.f32.xlu0 %v2637
    %v2639 = vpop.xlane.xlu0 %2638
    %v2640 = vsel %vm210, %v2570, 0.0
    %2641 = vadd.xlane.f32.xlu0 %v2640
    %v2642 = vpop.xlane.xlu0 %2641
    %v2643 = vsel %vm210, %v2571, 0.0
    %2644 = vadd.xlane.f32.xlu0 %v2643
    %v2645 = vpop.xlane.xlu0 %2644
    %v2646 = vsel %vm210, %v2572, 0.0
    %2647 = vadd.xlane.f32.xlu0 %v2646
    %v2648 = vpop.xlane.xlu0 %2647
    %v2649 = vsel %vm210, %v2573, 0.0
    %2650 = vadd.xlane.f32.xlu0 %v2649
    %v2651 = vpop.xlane.xlu0 %2650
    %v2652 = vsel %vm210, %v2574, 0.0
    %2653 = vadd.xlane.f32.xlu0 %v2652
    %v2654 = vpop.xlane.xlu0 %2653
    %v2655 = vsel %vm210, %v2575, 0.0
    %2656 = vadd.xlane.f32.xlu0 %v2655
    %v2657 = vpop.xlane.xlu0 %2656
    %v2658 = vsel %vm210, %v2576, 0.0
    %2659 = vadd.xlane.f32.xlu0 %v2658
    %v2660 = vpop.xlane.xlu0 %2659
    %v2661 = vsel %vm210, %v2577, 0.0
    %2662 = vadd.xlane.f32.xlu0 %v2661
    %v2663 = vpop.xlane.xlu0 %2662
    %v2664 = vsel %vm210, %v2578, 0.0
    %2665 = vadd.xlane.f32.xlu0 %v2664
    %v2666 = vpop.xlane.xlu0 %2665
    %v2667 = vsel %vm210, %v2579, 0.0
    %2668 = vadd.xlane.f32.xlu0 %v2667
    %v2669 = vpop.xlane.xlu0 %2668
    %v2670 = vsel %vm210, %v2580, 0.0
    %2671 = vadd.xlane.f32.xlu0 %v2670
    %v2672 = vpop.xlane.xlu0 %2671
    %v2673 = vsel %vm210, %v2581, 0.0
    %2674 = vadd.xlane.f32.xlu0 %v2673
    %v2675 = vpop.xlane.xlu0 %2674
    %v2676 = vsel %vm210, %v2582, 0.0
    %2677 = vadd.xlane.f32.xlu0 %v2676
    %v2678 = vpop.xlane.xlu0 %2677
    %v2679 = vmul.f32 %v2585, %v307
    %v2680 = vmul.f32 %v2588, %v307
    %v2681 = vmul.f32 %v2591, %v307
    %v2682 = vmul.f32 %v2594, %v307
    %v2683 = vmul.f32 %v2597, %v307
    %v2684 = vmul.f32 %v2600, %v307
    %v2685 = vmul.f32 %v2603, %v307
    %v2686 = vmul.f32 %v2606, %v307
    %v2687 = vmul.f32 %v2609, %v307
    %v2688 = vmul.f32 %v2612, %v307
    %v2689 = vmul.f32 %v2615, %v307
    %v2690 = vmul.f32 %v2618, %v307
    %v2691 = vmul.f32 %v2621, %v307
    %v2692 = vmul.f32 %v2624, %v307
    %v2693 = vmul.f32 %v2627, %v307
    %v2694 = vmul.f32 %v2630, %v307
    %v2695 = vmul.f32 %v2633, %v307
    %v2696 = vmul.f32 %v2636, %v307
    %v2697 = vmul.f32 %v2639, %v307
    %v2698 = vmul.f32 %v2642, %v307
    %v2699 = vmul.f32 %v2645, %v307
    %v2700 = vmul.f32 %v2648, %v307
    %v2701 = vmul.f32 %v2651, %v307
    %v2702 = vmul.f32 %v2654, %v307
    %v2703 = vmul.f32 %v2657, %v307
    %v2704 = vmul.f32 %v2660, %v307
    %v2705 = vmul.f32 %v2663, %v307
    %v2706 = vmul.f32 %v2666, %v307
    %v2707 = vmul.f32 %v2669, %v307
    %v2708 = vmul.f32 %v2672, %v307
    %v2709 = vmul.f32 %v2675, %v307
    %v2710 = vmul.f32 %v2678, %v307
    %v2711 = vsub.f32 %v2551, %v2679
    %v2712 = vsub.f32 %v2552, %v2680
    %v2713 = vsub.f32 %v2553, %v2681
    %v2714 = vsub.f32 %v2554, %v2682
    %v2715 = vsub.f32 %v2555, %v2683
    %v2716 = vsub.f32 %v2556, %v2684
    %v2717 = vsub.f32 %v2557, %v2685
    %v2718 = vsub.f32 %v2558, %v2686
    %v2719 = vsub.f32 %v2559, %v2687
    %v2720 = vsub.f32 %v2560, %v2688
    %v2721 = vsub.f32 %v2561, %v2689
    %v2722 = vsub.f32 %v2562, %v2690
    %v2723 = vsub.f32 %v2563, %v2691
    %v2724 = vsub.f32 %v2564, %v2692
    %v2725 = vsub.f32 %v2565, %v2693
    %v2726 = vsub.f32 %v2566, %v2694
    %v2727 = vsub.f32 %v2567, %v2695
    %v2728 = vsub.f32 %v2568, %v2696
    %v2729 = vsub.f32 %v2569, %v2697
    %v2730 = vsub.f32 %v2570, %v2698
    %v2731 = vsub.f32 %v2571, %v2699
    %v2732 = vsub.f32 %v2572, %v2700
    %v2733 = vsub.f32 %v2573, %v2701
    %v2734 = vsub.f32 %v2574, %v2702
    %v2735 = vsub.f32 %v2575, %v2703
    %v2736 = vsub.f32 %v2576, %v2704
    %v2737 = vsub.f32 %v2577, %v2705
    %v2738 = vsub.f32 %v2578, %v2706
    %v2739 = vsub.f32 %v2579, %v2707
    %v2740 = vsub.f32 %v2580, %v2708
    %v2741 = vsub.f32 %v2581, %v2709
    %v2742 = vsub.f32 %v2582, %v2710
    %v2743 = vmul.f32 %v2711, %v2711
    %v2744 = vmul.f32 %v2712, %v2712
    %v2745 = vmul.f32 %v2713, %v2713
    %v2746 = vmul.f32 %v2714, %v2714
    %v2747 = vmul.f32 %v2715, %v2715
    %v2748 = vmul.f32 %v2716, %v2716
    %v2749 = vmul.f32 %v2717, %v2717
    %v2750 = vmul.f32 %v2718, %v2718
    %v2751 = vmul.f32 %v2719, %v2719
    %v2752 = vmul.f32 %v2720, %v2720
    %v2753 = vmul.f32 %v2721, %v2721
    %v2754 = vmul.f32 %v2722, %v2722
    %v2755 = vmul.f32 %v2723, %v2723
    %v2756 = vmul.f32 %v2724, %v2724
    %v2757 = vmul.f32 %v2725, %v2725
    %v2758 = vmul.f32 %v2726, %v2726
    %v2759 = vmul.f32 %v2727, %v2727
    %v2760 = vmul.f32 %v2728, %v2728
    %v2761 = vmul.f32 %v2729, %v2729
    %v2762 = vmul.f32 %v2730, %v2730
    %v2763 = vmul.f32 %v2731, %v2731
    %v2764 = vmul.f32 %v2732, %v2732
    %v2765 = vmul.f32 %v2733, %v2733
    %v2766 = vmul.f32 %v2734, %v2734
    %v2767 = vmul.f32 %v2735, %v2735
    %v2768 = vmul.f32 %v2736, %v2736
    %v2769 = vmul.f32 %v2737, %v2737
    %v2770 = vmul.f32 %v2738, %v2738
    %v2771 = vmul.f32 %v2739, %v2739
    %v2772 = vmul.f32 %v2740, %v2740
    %v2773 = vmul.f32 %v2741, %v2741
    %v2774 = vmul.f32 %v2742, %v2742
    %v2775 = vsel %vm210, %v2743, 0.0
    %2776 = vadd.xlane.f32.xlu0 %v2775
    %v2777 = vpop.xlane.xlu0 %2776
    %v2778 = vsel %vm210, %v2744, 0.0
    %2779 = vadd.xlane.f32.xlu0 %v2778
    %v2780 = vpop.xlane.xlu0 %2779
    %v2781 = vsel %vm210, %v2745, 0.0
    %2782 = vadd.xlane.f32.xlu0 %v2781
    %v2783 = vpop.xlane.xlu0 %2782
    %v2784 = vsel %vm210, %v2746, 0.0
    %2785 = vadd.xlane.f32.xlu0 %v2784
    %v2786 = vpop.xlane.xlu0 %2785
    %v2787 = vsel %vm210, %v2747, 0.0
    %2788 = vadd.xlane.f32.xlu0 %v2787
    %v2789 = vpop.xlane.xlu0 %2788
    %v2790 = vsel %vm210, %v2748, 0.0
    %2791 = vadd.xlane.f32.xlu0 %v2790
    %v2792 = vpop.xlane.xlu0 %2791
    %v2793 = vsel %vm210, %v2749, 0.0
    %2794 = vadd.xlane.f32.xlu0 %v2793
    %v2795 = vpop.xlane.xlu0 %2794
    %v2796 = vsel %vm210, %v2750, 0.0
    %2797 = vadd.xlane.f32.xlu0 %v2796
    %v2798 = vpop.xlane.xlu0 %2797
    %v2799 = vsel %vm210, %v2751, 0.0
    %2800 = vadd.xlane.f32.xlu0 %v2799
    %v2801 = vpop.xlane.xlu0 %2800
    %v2802 = vsel %vm210, %v2752, 0.0
    %2803 = vadd.xlane.f32.xlu0 %v2802
    %v2804 = vpop.xlane.xlu0 %2803
    %v2805 = vsel %vm210, %v2753, 0.0
    %2806 = vadd.xlane.f32.xlu0 %v2805
    %v2807 = vpop.xlane.xlu0 %2806
    %v2808 = vsel %vm210, %v2754, 0.0
    %2809 = vadd.xlane.f32.xlu0 %v2808
    %v2810 = vpop.xlane.xlu0 %2809
    %v2811 = vsel %vm210, %v2755, 0.0
    %2812 = vadd.xlane.f32.xlu0 %v2811
    %v2813 = vpop.xlane.xlu0 %2812
    %v2814 = vsel %vm210, %v2756, 0.0
    %2815 = vadd.xlane.f32.xlu0 %v2814
    %v2816 = vpop.xlane.xlu0 %2815
    %v2817 = vsel %vm210, %v2757, 0.0
    %2818 = vadd.xlane.f32.xlu0 %v2817
    %v2819 = vpop.xlane.xlu0 %2818
    %v2820 = vsel %vm210, %v2758, 0.0
    %2821 = vadd.xlane.f32.xlu0 %v2820
    %v2822 = vpop.xlane.xlu0 %2821
    %v2823 = vsel %vm210, %v2759, 0.0
    %2824 = vadd.xlane.f32.xlu0 %v2823
    %v2825 = vpop.xlane.xlu0 %2824
    %v2826 = vsel %vm210, %v2760, 0.0
    %2827 = vadd.xlane.f32.xlu0 %v2826
    %v2828 = vpop.xlane.xlu0 %2827
    %v2829 = vsel %vm210, %v2761, 0.0
    %2830 = vadd.xlane.f32.xlu0 %v2829
    %v2831 = vpop.xlane.xlu0 %2830
    %v2832 = vsel %vm210, %v2762, 0.0
    %2833 = vadd.xlane.f32.xlu0 %v2832
    %v2834 = vpop.xlane.xlu0 %2833
    %v2835 = vsel %vm210, %v2763, 0.0
    %2836 = vadd.xlane.f32.xlu0 %v2835
    %v2837 = vpop.xlane.xlu0 %2836
    %v2838 = vsel %vm210, %v2764, 0.0
    %2839 = vadd.xlane.f32.xlu0 %v2838
    %v2840 = vpop.xlane.xlu0 %2839
    %v2841 = vsel %vm210, %v2765, 0.0
    %2842 = vadd.xlane.f32.xlu0 %v2841
    %v2843 = vpop.xlane.xlu0 %2842
    %v2844 = vsel %vm210, %v2766, 0.0
    %2845 = vadd.xlane.f32.xlu0 %v2844
    %v2846 = vpop.xlane.xlu0 %2845
    %v2847 = vsel %vm210, %v2767, 0.0
    %2848 = vadd.xlane.f32.xlu0 %v2847
    %v2849 = vpop.xlane.xlu0 %2848
    %v2850 = vsel %vm210, %v2768, 0.0
    %2851 = vadd.xlane.f32.xlu0 %v2850
    %v2852 = vpop.xlane.xlu0 %2851
    %v2853 = vsel %vm210, %v2769, 0.0
    %2854 = vadd.xlane.f32.xlu0 %v2853
    %v2855 = vpop.xlane.xlu0 %2854
    %v2856 = vsel %vm210, %v2770, 0.0
    %2857 = vadd.xlane.f32.xlu0 %v2856
    %v2858 = vpop.xlane.xlu0 %2857
    %v2859 = vsel %vm210, %v2771, 0.0
    %2860 = vadd.xlane.f32.xlu0 %v2859
    %v2861 = vpop.xlane.xlu0 %2860
    %v2862 = vsel %vm210, %v2772, 0.0
    %2863 = vadd.xlane.f32.xlu0 %v2862
    %v2864 = vpop.xlane.xlu0 %2863
    %v2865 = vsel %vm210, %v2773, 0.0
    %2866 = vadd.xlane.f32.xlu0 %v2865
    %v2867 = vpop.xlane.xlu0 %2866
    %v2868 = vsel %vm210, %v2774, 0.0
    %2869 = vadd.xlane.f32.xlu0 %v2868
    %v2870 = vpop.xlane.xlu0 %2869
    %v2871 = vmul.f32 %v2777, %v307
    %v2872 = vmul.f32 %v2780, %v307
    %v2873 = vmul.f32 %v2783, %v307
    %v2874 = vmul.f32 %v2786, %v307
    %v2875 = vmul.f32 %v2789, %v307
    %v2876 = vmul.f32 %v2792, %v307
    %v2877 = vmul.f32 %v2795, %v307
    %v2878 = vmul.f32 %v2798, %v307
    %v2879 = vmul.f32 %v2801, %v307
    %v2880 = vmul.f32 %v2804, %v307
    %v2881 = vmul.f32 %v2807, %v307
    %v2882 = vmul.f32 %v2810, %v307
    %v2883 = vmul.f32 %v2813, %v307
    %v2884 = vmul.f32 %v2816, %v307
    %v2885 = vmul.f32 %v2819, %v307
    %v2886 = vmul.f32 %v2822, %v307
    %v2887 = vmul.f32 %v2825, %v307
    %v2888 = vmul.f32 %v2828, %v307
    %v2889 = vmul.f32 %v2831, %v307
    %v2890 = vmul.f32 %v2834, %v307
    %v2891 = vmul.f32 %v2837, %v307
    %v2892 = vmul.f32 %v2840, %v307
    %v2893 = vmul.f32 %v2843, %v307
    %v2894 = vmul.f32 %v2846, %v307
    %v2895 = vmul.f32 %v2849, %v307
    %v2896 = vmul.f32 %v2852, %v307
    %v2897 = vmul.f32 %v2855, %v307
    %v2898 = vmul.f32 %v2858, %v307
    %v2899 = vmul.f32 %v2861, %v307
    %v2900 = vmul.f32 %v2864, %v307
    %v2901 = vmul.f32 %v2867, %v307
    %v2902 = vmul.f32 %v2870, %v307
    %v2903 = vadd.f32 %v2871, 1e-05
    %v2904 = vadd.f32 %v2872, 1e-05
    %v2905 = vadd.f32 %v2873, 1e-05
    %v2906 = vadd.f32 %v2874, 1e-05
    %v2907 = vadd.f32 %v2875, 1e-05
    %v2908 = vadd.f32 %v2876, 1e-05
    %v2909 = vadd.f32 %v2877, 1e-05
    %v2910 = vadd.f32 %v2878, 1e-05
    %v2911 = vadd.f32 %v2879, 1e-05
    %v2912 = vadd.f32 %v2880, 1e-05
    %v2913 = vadd.f32 %v2881, 1e-05
    %v2914 = vadd.f32 %v2882, 1e-05
    %v2915 = vadd.f32 %v2883, 1e-05
    %v2916 = vadd.f32 %v2884, 1e-05
    %v2917 = vadd.f32 %v2885, 1e-05
    %v2918 = vadd.f32 %v2886, 1e-05
    %v2919 = vadd.f32 %v2887, 1e-05
    %v2920 = vadd.f32 %v2888, 1e-05
    %v2921 = vadd.f32 %v2889, 1e-05
    %v2922 = vadd.f32 %v2890, 1e-05
    %v2923 = vadd.f32 %v2891, 1e-05
    %v2924 = vadd.f32 %v2892, 1e-05
    %v2925 = vadd.f32 %v2893, 1e-05
    %v2926 = vadd.f32 %v2894, 1e-05
    %v2927 = vadd.f32 %v2895, 1e-05
    %v2928 = vadd.f32 %v2896, 1e-05
    %v2929 = vadd.f32 %v2897, 1e-05
    %v2930 = vadd.f32 %v2898, 1e-05
    %v2931 = vadd.f32 %v2899, 1e-05
    %v2932 = vadd.f32 %v2900, 1e-05
    %v2933 = vadd.f32 %v2901, 1e-05
    %v2934 = vadd.f32 %v2902, 1e-05
    %v2935 = vrsqrt.pop %v2903
    %v2936 = vrsqrt.pop %v2904
    %v2937 = vrsqrt.pop %v2905
    %v2938 = vrsqrt.pop %v2906
    %v2939 = vrsqrt.pop %v2907
    %v2940 = vrsqrt.pop %v2908
    %v2941 = vrsqrt.pop %v2909
    %v2942 = vrsqrt.pop %v2910
    %v2943 = vrsqrt.pop %v2911
    %v2944 = vrsqrt.pop %v2912
    %v2945 = vrsqrt.pop %v2913
    %v2946 = vrsqrt.pop %v2914
    %v2947 = vrsqrt.pop %v2915
    %v2948 = vrsqrt.pop %v2916
    %v2949 = vrsqrt.pop %v2917
    %v2950 = vrsqrt.pop %v2918
    %v2951 = vrsqrt.pop %v2919
    %v2952 = vrsqrt.pop %v2920
    %v2953 = vrsqrt.pop %v2921
    %v2954 = vrsqrt.pop %v2922
    %v2955 = vrsqrt.pop %v2923
    %v2956 = vrsqrt.pop %v2924
    %v2957 = vrsqrt.pop %v2925
    %v2958 = vrsqrt.pop %v2926
    %v2959 = vrsqrt.pop %v2927
    %v2960 = vrsqrt.pop %v2928
    %v2961 = vrsqrt.pop %v2929
    %v2962 = vrsqrt.pop %v2930
    %v2963 = vrsqrt.pop %v2931
    %v2964 = vrsqrt.pop %v2932
    %v2965 = vrsqrt.pop %v2933
    %v2966 = vrsqrt.pop %v2934
    %v2967 = vmul.f32 %v2711, %v2935
    %v2968 = vmul.f32 %v2712, %v2936
    %v2969 = vmul.f32 %v2713, %v2937
    %v2970 = vmul.f32 %v2714, %v2938
    %v2971 = vmul.f32 %v2715, %v2939
    %v2972 = vmul.f32 %v2716, %v2940
    %v2973 = vmul.f32 %v2717, %v2941
    %v2974 = vmul.f32 %v2718, %v2942
    %v2975 = vmul.f32 %v2719, %v2943
    %v2976 = vmul.f32 %v2720, %v2944
    %v2977 = vmul.f32 %v2721, %v2945
    %v2978 = vmul.f32 %v2722, %v2946
    %v2979 = vmul.f32 %v2723, %v2947
    %v2980 = vmul.f32 %v2724, %v2948
    %v2981 = vmul.f32 %v2725, %v2949
    %v2982 = vmul.f32 %v2726, %v2950
    %v2983 = vmul.f32 %v2727, %v2951
    %v2984 = vmul.f32 %v2728, %v2952
    %v2985 = vmul.f32 %v2729, %v2953
    %v2986 = vmul.f32 %v2730, %v2954
    %v2987 = vmul.f32 %v2731, %v2955
    %v2988 = vmul.f32 %v2732, %v2956
    %v2989 = vmul.f32 %v2733, %v2957
    %v2990 = vmul.f32 %v2734, %v2958
    %v2991 = vmul.f32 %v2735, %v2959
    %v2992 = vmul.f32 %v2736, %v2960
    %v2993 = vmul.f32 %v2737, %v2961
    %v2994 = vmul.f32 %v2738, %v2962
    %v2995 = vmul.f32 %v2739, %v2963
    %v2996 = vmul.f32 %v2740, %v2964
    %v2997 = vmul.f32 %v2741, %v2965
    %v2998 = vmul.f32 %v2742, %v2966
    %v2999 = vmul.f32 %v2967, %v632
    %v3000 = vmul.f32 %v2968, %v632
    %v3001 = vmul.f32 %v2969, %v632
    %v3002 = vmul.f32 %v2970, %v632
    %v3003 = vmul.f32 %v2971, %v632
    %v3004 = vmul.f32 %v2972, %v632
    %v3005 = vmul.f32 %v2973, %v632
    %v3006 = vmul.f32 %v2974, %v632
    %v3007 = vmul.f32 %v2975, %v632
    %v3008 = vmul.f32 %v2976, %v632
    %v3009 = vmul.f32 %v2977, %v632
    %v3010 = vmul.f32 %v2978, %v632
    %v3011 = vmul.f32 %v2979, %v632
    %v3012 = vmul.f32 %v2980, %v632
    %v3013 = vmul.f32 %v2981, %v632
    %v3014 = vmul.f32 %v2982, %v632
    %v3015 = vmul.f32 %v2983, %v632
    %v3016 = vmul.f32 %v2984, %v632
    %v3017 = vmul.f32 %v2985, %v632
    %v3018 = vmul.f32 %v2986, %v632
    %v3019 = vmul.f32 %v2987, %v632
    %v3020 = vmul.f32 %v2988, %v632
    %v3021 = vmul.f32 %v2989, %v632
    %v3022 = vmul.f32 %v2990, %v632
    %v3023 = vmul.f32 %v2991, %v632
    %v3024 = vmul.f32 %v2992, %v632
    %v3025 = vmul.f32 %v2993, %v632
    %v3026 = vmul.f32 %v2994, %v632
    %v3027 = vmul.f32 %v2995, %v632
    %v3028 = vmul.f32 %v2996, %v632
    %v3029 = vmul.f32 %v2997, %v632
    %v3030 = vmul.f32 %v2998, %v632
    %v3031 = vadd.f32 %v2999, %v670
    %v3032 = vadd.f32 %v3000, %v670
    %v3033 = vadd.f32 %v3001, %v670
    %v3034 = vadd.f32 %v3002, %v670
    %v3035 = vadd.f32 %v3003, %v670
    %v3036 = vadd.f32 %v3004, %v670
    %v3037 = vadd.f32 %v3005, %v670
    %v3038 = vadd.f32 %v3006, %v670
    %v3039 = vadd.f32 %v3007, %v670
    %v3040 = vadd.f32 %v3008, %v670
    %v3041 = vadd.f32 %v3009, %v670
    %v3042 = vadd.f32 %v3010, %v670
    %v3043 = vadd.f32 %v3011, %v670
    %v3044 = vadd.f32 %v3012, %v670
    %v3045 = vadd.f32 %v3013, %v670
    %v3046 = vadd.f32 %v3014, %v670
    %v3047 = vadd.f32 %v3015, %v670
    %v3048 = vadd.f32 %v3016, %v670
    %v3049 = vadd.f32 %v3017, %v670
    %v3050 = vadd.f32 %v3018, %v670
    %v3051 = vadd.f32 %v3019, %v670
    %v3052 = vadd.f32 %v3020, %v670
    %v3053 = vadd.f32 %v3021, %v670
    %v3054 = vadd.f32 %v3022, %v670
    %v3055 = vadd.f32 %v3023, %v670
    %v3056 = vadd.f32 %v3024, %v670
    %v3057 = vadd.f32 %v3025, %v670
    %v3058 = vadd.f32 %v3026, %v670
    %v3059 = vadd.f32 %v3027, %v670
    %v3060 = vadd.f32 %v3028, %v670
    %v3061 = vadd.f32 %v3029, %v670
    %v3062 = vadd.f32 %v3030, %v670
    %v3063 = vld [vmem:[#allocation14] sm:$0xff]
    %v3064 = vld [vmem:[#allocation14 + $0x8] sm:$0xff]
    %v3065 = vld [vmem:[#allocation16] sm:$0x1]
    %v3067 = vlaneseq
    %v3068 = vshrl.u32 %v3067, 7
    %v3069 = vsub.s32 0, %v3068
    %v3070 = vrot.slane %v3065, %v3069
    %v3073 = vsel %vm210, %v3031, 0
    %v3076 = vsel %vm210, %v3032, 0
    %v3079 = vsel %vm210, %v3033, 0
    %v3082 = vsel %vm210, %v3034, 0
    %v3085 = vsel %vm210, %v3035, 0
    %v3088 = vsel %vm210, %v3036, 0
    %v3091 = vsel %vm210, %v3037, 0
    %v3094 = vsel %vm210, %v3038, 0
    %v3097 = vsel %vm210, %v3039, 0
    %v3100 = vsel %vm210, %v3040, 0
    %v3103 = vsel %vm210, %v3041, 0
    %v3106 = vsel %vm210, %v3042, 0
    %v3109 = vsel %vm210, %v3043, 0
    %v3112 = vsel %vm210, %v3044, 0
    %v3115 = vsel %vm210, %v3045, 0
    %v3118 = vsel %vm210, %v3046, 0
    %v3121 = vsel %vm210, %v3047, 0
    %v3124 = vsel %vm210, %v3048, 0
    %v3127 = vsel %vm210, %v3049, 0
    %v3130 = vsel %vm210, %v3050, 0
    %v3133 = vsel %vm210, %v3051, 0
    %v3136 = vsel %vm210, %v3052, 0
    %v3139 = vsel %vm210, %v3053, 0
    %v3142 = vsel %vm210, %v3054, 0
    %v3145 = vsel %vm210, %v3055, 0
    %v3148 = vsel %vm210, %v3056, 0
    %v3151 = vsel %vm210, %v3057, 0
    %v3154 = vsel %vm210, %v3058, 0
    %v3157 = vsel %vm210, %v3059, 0
    %v3160 = vsel %vm210, %v3060, 0
    %v3163 = vsel %vm210, %v3061, 0
    %v3166 = vsel %vm210, %v3062, 0
    %3168 = vmatprep.subr.mxu0 0.0
    %3169 = vmatpush1.msra.mxu0 %v3063
    %3170 = vmatprep.subr.mxu0 0.0
    %3171 = vmatpush1.msra.mxu0 %v3064
    %3172 = vmatprep.subr.mxu0 0.0
    %3173 = vmatpush1.msra.mxu0 0.0
    %3174 = vmatprep.subr.mxu0 0.0
    %3175 = vmatpush1.msra.mxu0 0.0
    %3176 = vmatprep.subr.mxu0 0.0
    %3177 = vmatpush1.msra.mxu0 0.0
    %3178 = vmatprep.subr.mxu0 0.0
    %3179 = vmatpush1.msra.mxu0 0.0
    %3180 = vmatprep.subr.mxu0 0.0
    %3181 = vmatpush1.msra.mxu0 0.0
    %3182 = vmatprep.subr.mxu0 0.0
    %3183 = vmatpush1.msra.mxu0 0.0
    %3184 = vmatprep.subr.mxu0 0.0
    %3185 = vmatpush1.msra.mxu0 0.0
    %3186 = vmatprep.subr.mxu0 0.0
    %3187 = vmatpush1.msra.mxu0 0.0
    %3188 = vmatprep.subr.mxu0 0.0
    %3189 = vmatpush1.msra.mxu0 0.0
    %3190 = vmatprep.subr.mxu0 0.0
    %3191 = vmatpush1.msra.mxu0 0.0
    %3192 = vmatprep.subr.mxu0 0.0
    %3193 = vmatpush1.msra.mxu0 0.0
    %3194 = vmatprep.subr.mxu0 0.0
    %3195 = vmatpush1.msra.mxu0 0.0
    %3196 = vmatprep.subr.mxu0 0.0
    %3197 = vmatpush1.msra.mxu0 0.0
    %3198 = vmatprep.subr.mxu0 0.0
    %3199 = vmatpush1.msra.mxu0 0.0
    %3200 = vmatprep.subr.mxu0 0.0
    %3201 = vmatpush1.msra.mxu0 0.0
    %3202 = vmatprep.subr.mxu0 0.0
    %3203 = vmatpush1.msra.mxu0 0.0
    %3204 = vmatprep.subr.mxu0 0.0
    %3205 = vmatpush1.msra.mxu0 0.0
    %3206 = vmatprep.subr.mxu0 0.0
    %3207 = vmatpush1.msra.mxu0 0.0
    %3208 = vmatprep.subr.mxu0 0.0
    %3209 = vmatpush1.msra.mxu0 0.0
    %3210 = vmatprep.subr.mxu0 0.0
    %3211 = vmatpush1.msra.mxu0 0.0
    %3212 = vmatprep.subr.mxu0 0.0
    %3213 = vmatpush1.msra.mxu0 0.0
    %3214 = vmatprep.subr.mxu0 0.0
    %3215 = vmatpush1.msra.mxu0 0.0
    %3216 = vmatprep.subr.mxu0 0.0
    %3217 = vmatpush1.msra.mxu0 0.0
    %3218 = vmatprep.subr.mxu0 0.0
    %3219 = vmatpush1.msra.mxu0 0.0
    %3220 = vmatprep.subr.mxu0 0.0
    %3221 = vmatpush1.msra.mxu0 0.0
    %3222 = vmatprep.subr.mxu0 0.0
    %3223 = vmatpush1.msra.mxu0 0.0
    %3224 = vmatprep.subr.mxu0 0.0
    %3225 = vmatpush1.msra.mxu0 0.0
    %3226 = vmatprep.subr.mxu0 0.0
    %3227 = vmatpush1.msra.mxu0 0.0
    %3228 = vmatprep.subr.mxu0 0.0
    %3229 = vmatpush1.msra.mxu0 0.0
    %3230 = vmatprep.subr.mxu0 0.0
    %3231 = vmatpush1.msra.mxu0 0.0
    %3232 = vmatprep.mubr.f32.mxu0 0.0
    %3233 = vmatmul.mubr.f32.gmra.mrb[0].mxu0 %v3073
    %v3234 = vpop.f32.mrb[0].mxu0
    %v3235 = vadd.f32 %v3070, %v3234
    %v3236 = vpop.f32.mrb[0].mxu0
    %3237 = vmatprep.mubr.f32.mxu0 0.0
    %3238 = vmatmul.mubr.f32.gmra.mrb[0].mxu0 %v3076
    %v3239 = vpop.f32.mrb[0].mxu0
    %v3240 = vadd.f32 %v3070, %v3239
    %v3241 = vpop.f32.mrb[0].mxu0
    %3242 = vmatprep.mubr.f32.mxu0 0.0
    %3243 = vmatmul.mubr.f32.gmra.mrb[0].mxu0 %v3079
    %v3244 = vpop.f32.mrb[0].mxu0
    %v3245 = vadd.f32 %v3070, %v3244
    %v3246 = vpop.f32.mrb[0].mxu0
    %3247 = vmatprep.mubr.f32.mxu0 0.0
    %3248 = vmatmul.mubr.f32.gmra.mrb[0].mxu0 %v3082
    %v3249 = vpop.f32.mrb[0].mxu0
    %v3250 = vadd.f32 %v3070, %v3249
    %v3251 = vpop.f32.mrb[0].mxu0
    %3252 = vmatprep.mubr.f32.mxu0 0.0
    %3253 = vmatmul.mubr.f32.gmra.mrb[0].mxu0 %v3085
    %v3254 = vpop.f32.mrb[0].mxu0
    %v3255 = vadd.f32 %v3070, %v3254
    %v3256 = vpop.f32.mrb[0].mxu0
    %3257 = vmatprep.mubr.f32.mxu0 0.0
    %3258 = vmatmul.mubr.f32.gmra.mrb[0].mxu0 %v3088
    %v3259 = vpop.f32.mrb[0].mxu0
    %v3260 = vadd.f32 %v3070, %v3259
    %v3261 = vpop.f32.mrb[0].mxu0
    %3262 = vmatprep.mubr.f32.mxu0 0.0
    %3263 = vmatmul.mubr.f32.gmra.mrb[0].mxu0 %v3091
    %v3264 = vpop.f32.mrb[0].mxu0
    %v3265 = vadd.f32 %v3070, %v3264
    %v3266 = vpop.f32.mrb[0].mxu0
    %3267 = vmatprep.mubr.f32.mxu0 0.0
    %3268 = vmatmul.mubr.f32.gmra.mrb[0].mxu0 %v3094
    %v3269 = vpop.f32.mrb[0].mxu0
    %v3270 = vadd.f32 %v3070, %v3269
    %v3271 = vpop.f32.mrb[0].mxu0
    %3272 = vmatprep.mubr.f32.mxu0 0.0
    %3273 = vmatmul.mubr.f32.gmra.mrb[0].mxu0 %v3097
    %v3274 = vpop.f32.mrb[0].mxu0
    %v3275 = vadd.f32 %v3070, %v3274
    %v3276 = vpop.f32.mrb[0].mxu0
    %3277 = vmatprep.mubr.f32.mxu0 0.0
    %3278 = vmatmul.mubr.f32.gmra.mrb[0].mxu0 %v3100
    %v3279 = vpop.f32.mrb[0].mxu0
    %v3280 = vadd.f32 %v3070, %v3279
    %v3281 = vpop.f32.mrb[0].mxu0
    %3282 = vmatprep.mubr.f32.mxu0 0.0
    %3283 = vmatmul.mubr.f32.gmra.mrb[0].mxu0 %v3103
    %v3284 = vpop.f32.mrb[0].mxu0
    %v3285 = vadd.f32 %v3070, %v3284
    %v3286 = vpop.f32.mrb[0].mxu0
    %3287 = vmatprep.mubr.f32.mxu0 0.0
    %3288 = vmatmul.mubr.f32.gmra.mrb[0].mxu0 %v3106
    %v3289 = vpop.f32.mrb[0].mxu0
    %v3290 = vadd.f32 %v3070, %v3289
    %v3291 = vpop.f32.mrb[0].mxu0
    %3292 = vmatprep.mubr.f32.mxu0 0.0
    %3293 = vmatmul.mubr.f32.gmra.mrb[0].mxu0 %v3109
    %v3294 = vpop.f32.mrb[0].mxu0
    %v3295 = vadd.f32 %v3070, %v3294
    %v3296 = vpop.f32.mrb[0].mxu0
    %3297 = vmatprep.mubr.f32.mxu0 0.0
    %3298 = vmatmul.mubr.f32.gmra.mrb[0].mxu0 %v3112
    %v3299 = vpop.f32.mrb[0].mxu0
    %v3300 = vadd.f32 %v3070, %v3299
    %v3301 = vpop.f32.mrb[0].mxu0
    %3302 = vmatprep.mubr.f32.mxu0 0.0
    %3303 = vmatmul.mubr.f32.gmra.mrb[0].mxu0 %v3115
    %v3304 = vpop.f32.mrb[0].mxu0
    %v3305 = vadd.f32 %v3070, %v3304
    %v3306 = vpop.f32.mrb[0].mxu0
    %3307 = vmatprep.mubr.f32.mxu0 0.0
    %3308 = vmatmul.mubr.f32.gmra.mrb[0].mxu0 %v3118
    %v3309 = vpop.f32.mrb[0].mxu0
    %v3310 = vadd.f32 %v3070, %v3309
    %v3311 = vpop.f32.mrb[0].mxu0
    %3312 = vmatprep.mubr.f32.mxu0 0.0
    %3313 = vmatmul.mubr.f32.gmra.mrb[0].mxu0 %v3121
    %v3314 = vpop.f32.mrb[0].mxu0
    %v3315 = vadd.f32 %v3070, %v3314
    %v3316 = vpop.f32.mrb[0].mxu0
    %3317 = vmatprep.mubr.f32.mxu0 0.0
    %3318 = vmatmul.mubr.f32.gmra.mrb[0].mxu0 %v3124
    %v3319 = vpop.f32.mrb[0].mxu0
    %v3320 = vadd.f32 %v3070, %v3319
    %v3321 = vpop.f32.mrb[0].mxu0
    %3322 = vmatprep.mubr.f32.mxu0 0.0
    %3323 = vmatmul.mubr.f32.gmra.mrb[0].mxu0 %v3127
    %v3324 = vpop.f32.mrb[0].mxu0
    %v3325 = vadd.f32 %v3070, %v3324
    %v3326 = vpop.f32.mrb[0].mxu0
    %3327 = vmatprep.mubr.f32.mxu0 0.0
    %3328 = vmatmul.mubr.f32.gmra.mrb[0].mxu0 %v3130
    %v3329 = vpop.f32.mrb[0].mxu0
    %v3330 = vadd.f32 %v3070, %v3329
    %v3331 = vpop.f32.mrb[0].mxu0
    %3332 = vmatprep.mubr.f32.mxu0 0.0
    %3333 = vmatmul.mubr.f32.gmra.mrb[0].mxu0 %v3133
    %v3334 = vpop.f32.mrb[0].mxu0
    %v3335 = vadd.f32 %v3070, %v3334
    %v3336 = vpop.f32.mrb[0].mxu0
    %3337 = vmatprep.mubr.f32.mxu0 0.0
    %3338 = vmatmul.mubr.f32.gmra.mrb[0].mxu0 %v3136
    %v3339 = vpop.f32.mrb[0].mxu0
    %v3340 = vadd.f32 %v3070, %v3339
    %v3341 = vpop.f32.mrb[0].mxu0
    %3342 = vmatprep.mubr.f32.mxu0 0.0
    %3343 = vmatmul.mubr.f32.gmra.mrb[0].mxu0 %v3139
    %v3344 = vpop.f32.mrb[0].mxu0
    %v3345 = vadd.f32 %v3070, %v3344
    %v3346 = vpop.f32.mrb[0].mxu0
    %3347 = vmatprep.mubr.f32.mxu0 0.0
    %3348 = vmatmul.mubr.f32.gmra.mrb[0].mxu0 %v3142
    %v3349 = vpop.f32.mrb[0].mxu0
    %v3350 = vadd.f32 %v3070, %v3349
    %v3351 = vpop.f32.mrb[0].mxu0
    %3352 = vmatprep.mubr.f32.mxu0 0.0
    %3353 = vmatmul.mubr.f32.gmra.mrb[0].mxu0 %v3145
    %v3354 = vpop.f32.mrb[0].mxu0
    %v3355 = vadd.f32 %v3070, %v3354
    %v3356 = vpop.f32.mrb[0].mxu0
    %3357 = vmatprep.mubr.f32.mxu0 0.0
    %3358 = vmatmul.mubr.f32.gmra.mrb[0].mxu0 %v3148
    %v3359 = vpop.f32.mrb[0].mxu0
    %v3360 = vadd.f32 %v3070, %v3359
    %v3361 = vpop.f32.mrb[0].mxu0
    %3362 = vmatprep.mubr.f32.mxu0 0.0
    %3363 = vmatmul.mubr.f32.gmra.mrb[0].mxu0 %v3151
    %v3364 = vpop.f32.mrb[0].mxu0
    %v3365 = vadd.f32 %v3070, %v3364
    %v3366 = vpop.f32.mrb[0].mxu0
    %3367 = vmatprep.mubr.f32.mxu0 0.0
    %3368 = vmatmul.mubr.f32.gmra.mrb[0].mxu0 %v3154
    %v3369 = vpop.f32.mrb[0].mxu0
    %v3370 = vadd.f32 %v3070, %v3369
    %v3371 = vpop.f32.mrb[0].mxu0
    %3372 = vmatprep.mubr.f32.mxu0 0.0
    %3373 = vmatmul.mubr.f32.gmra.mrb[0].mxu0 %v3157
    %v3374 = vpop.f32.mrb[0].mxu0
    %v3375 = vadd.f32 %v3070, %v3374
    %v3376 = vpop.f32.mrb[0].mxu0
    %3377 = vmatprep.mubr.f32.mxu0 0.0
    %3378 = vmatmul.mubr.f32.gmra.mrb[0].mxu0 %v3160
    %v3379 = vpop.f32.mrb[0].mxu0
    %v3380 = vadd.f32 %v3070, %v3379
    %v3381 = vpop.f32.mrb[0].mxu0
    %3382 = vmatprep.mubr.f32.mxu0 0.0
    %3383 = vmatmul.mubr.f32.gmra.mrb[0].mxu0 %v3163
    %v3384 = vpop.f32.mrb[0].mxu0
    %v3385 = vadd.f32 %v3070, %v3384
    %v3386 = vpop.f32.mrb[0].mxu0
    %3387 = vmatprep.mubr.f32.mxu0 0.0
    %3388 = vmatmul.mubr.f32.gmra.mrb[0].mxu0 %v3166
    %v3389 = vpop.f32.mrb[0].mxu0
    %v3390 = vadd.f32 %v3070, %v3389
    %v3391 = vpop.f32.mrb[0].mxu0
    %3392 = vdwg.mxu0
    %v3393 = vmul.f32 %v3235, 0.5
    %v3394 = vmul.f32 %v3240, 0.5
    %v3395 = vmul.f32 %v3245, 0.5
    %v3396 = vmul.f32 %v3250, 0.5
    %v3397 = vmul.f32 %v3255, 0.5
    %v3398 = vmul.f32 %v3260, 0.5
    %v3399 = vmul.f32 %v3265, 0.5
    %v3400 = vmul.f32 %v3270, 0.5
    %v3401 = vmul.f32 %v3275, 0.5
    %v3402 = vmul.f32 %v3280, 0.5
    %v3403 = vmul.f32 %v3285, 0.5
    %v3404 = vmul.f32 %v3290, 0.5
    %v3405 = vmul.f32 %v3295, 0.5
    %v3406 = vmul.f32 %v3300, 0.5
    %v3407 = vmul.f32 %v3305, 0.5
    %v3408 = vmul.f32 %v3310, 0.5
    %v3409 = vmul.f32 %v3315, 0.5
    %v3410 = vmul.f32 %v3320, 0.5
    %v3411 = vmul.f32 %v3325, 0.5
    %v3412 = vmul.f32 %v3330, 0.5
    %v3413 = vmul.f32 %v3335, 0.5
    %v3414 = vmul.f32 %v3340, 0.5
    %v3415 = vmul.f32 %v3345, 0.5
    %v3416 = vmul.f32 %v3350, 0.5
    %v3417 = vmul.f32 %v3355, 0.5
    %v3418 = vmul.f32 %v3360, 0.5
    %v3419 = vmul.f32 %v3365, 0.5
    %v3420 = vmul.f32 %v3370, 0.5
    %v3421 = vmul.f32 %v3375, 0.5
    %v3422 = vmul.f32 %v3380, 0.5
    %v3423 = vmul.f32 %v3385, 0.5
    %v3424 = vmul.f32 %v3390, 0.5
    %v3425 = vmul.f32 %v3235, 0.70710677
    %v3426 = vmul.f32 %v3240, 0.70710677
    %v3427 = vmul.f32 %v3245, 0.70710677
    %v3428 = vmul.f32 %v3250, 0.70710677
    %v3429 = vmul.f32 %v3255, 0.70710677
    %v3430 = vmul.f32 %v3260, 0.70710677
    %v3431 = vmul.f32 %v3265, 0.70710677
    %v3432 = vmul.f32 %v3270, 0.70710677
    %v3433 = vmul.f32 %v3275, 0.70710677
    %v3434 = vmul.f32 %v3280, 0.70710677
    %v3435 = vmul.f32 %v3285, 0.70710677
    %v3436 = vmul.f32 %v3290, 0.70710677
    %v3437 = vmul.f32 %v3295, 0.70710677
    %v3438 = vmul.f32 %v3300, 0.70710677
    %v3439 = vmul.f32 %v3305, 0.70710677
    %v3440 = vmul.f32 %v3310, 0.70710677
    %v3441 = vmul.f32 %v3315, 0.70710677
    %v3442 = vmul.f32 %v3320, 0.70710677
    %v3443 = vmul.f32 %v3325, 0.70710677
    %v3444 = vmul.f32 %v3330, 0.70710677
    %v3445 = vmul.f32 %v3335, 0.70710677
    %v3446 = vmul.f32 %v3340, 0.70710677
    %v3447 = vmul.f32 %v3345, 0.70710677
    %v3448 = vmul.f32 %v3350, 0.70710677
    %v3449 = vmul.f32 %v3355, 0.70710677
    %v3450 = vmul.f32 %v3360, 0.70710677
    %v3451 = vmul.f32 %v3365, 0.70710677
    %v3452 = vmul.f32 %v3370, 0.70710677
    %v3453 = vmul.f32 %v3375, 0.70710677
    %v3454 = vmul.f32 %v3380, 0.70710677
    %v3455 = vmul.f32 %v3385, 0.70710677
    %v3456 = vmul.f32 %v3390, 0.70710677
    %v3457 = verf.f32.pop %v3425
    %v3458 = verf.f32.pop %v3426
    %v3459 = verf.f32.pop %v3427
    %v3460 = verf.f32.pop %v3428
    %v3461 = verf.f32.pop %v3429
    %v3462 = verf.f32.pop %v3430
    %v3463 = verf.f32.pop %v3431
    %v3464 = verf.f32.pop %v3432
    %v3465 = verf.f32.pop %v3433
    %v3466 = verf.f32.pop %v3434
    %v3467 = verf.f32.pop %v3435
    %v3468 = verf.f32.pop %v3436
    %v3469 = verf.f32.pop %v3437
    %v3470 = verf.f32.pop %v3438
    %v3471 = verf.f32.pop %v3439
    %v3472 = verf.f32.pop %v3440
    %v3473 = verf.f32.pop %v3441
    %v3474 = verf.f32.pop %v3442
    %v3475 = verf.f32.pop %v3443
    %v3476 = verf.f32.pop %v3444
    %v3477 = verf.f32.pop %v3445
    %v3478 = verf.f32.pop %v3446
    %v3479 = verf.f32.pop %v3447
    %v3480 = verf.f32.pop %v3448
    %v3481 = verf.f32.pop %v3449
    %v3482 = verf.f32.pop %v3450
    %v3483 = verf.f32.pop %v3451
    %v3484 = verf.f32.pop %v3452
    %v3485 = verf.f32.pop %v3453
    %v3486 = verf.f32.pop %v3454
    %v3487 = verf.f32.pop %v3455
    %v3488 = verf.f32.pop %v3456
    %v3489 = vadd.f32 %v3457, 1.0
    %v3490 = vadd.f32 %v3458, 1.0
    %v3491 = vadd.f32 %v3459, 1.0
    %v3492 = vadd.f32 %v3460, 1.0
    %v3493 = vadd.f32 %v3461, 1.0
    %v3494 = vadd.f32 %v3462, 1.0
    %v3495 = vadd.f32 %v3463, 1.0
    %v3496 = vadd.f32 %v3464, 1.0
    %v3497 = vadd.f32 %v3465, 1.0
    %v3498 = vadd.f32 %v3466, 1.0
    %v3499 = vadd.f32 %v3467, 1.0
    %v3500 = vadd.f32 %v3468, 1.0
    %v3501 = vadd.f32 %v3469, 1.0
    %v3502 = vadd.f32 %v3470, 1.0
    %v3503 = vadd.f32 %v3471, 1.0
    %v3504 = vadd.f32 %v3472, 1.0
    %v3505 = vadd.f32 %v3473, 1.0
    %v3506 = vadd.f32 %v3474, 1.0
    %v3507 = vadd.f32 %v3475, 1.0
    %v3508 = vadd.f32 %v3476, 1.0
    %v3509 = vadd.f32 %v3477, 1.0
    %v3510 = vadd.f32 %v3478, 1.0
    %v3511 = vadd.f32 %v3479, 1.0
    %v3512 = vadd.f32 %v3480, 1.0
    %v3513 = vadd.f32 %v3481, 1.0
    %v3514 = vadd.f32 %v3482, 1.0
    %v3515 = vadd.f32 %v3483, 1.0
    %v3516 = vadd.f32 %v3484, 1.0
    %v3517 = vadd.f32 %v3485, 1.0
    %v3518 = vadd.f32 %v3486, 1.0
    %v3519 = vadd.f32 %v3487, 1.0
    %v3520 = vadd.f32 %v3488, 1.0
    %v3521 = vmul.f32 %v3393, %v3489
    %v3522 = vmul.f32 %v3394, %v3490
    %v3523 = vmul.f32 %v3395, %v3491
    %v3524 = vmul.f32 %v3396, %v3492
    %v3525 = vmul.f32 %v3397, %v3493
    %v3526 = vmul.f32 %v3398, %v3494
    %v3527 = vmul.f32 %v3399, %v3495
    %v3528 = vmul.f32 %v3400, %v3496
    %v3529 = vmul.f32 %v3401, %v3497
    %v3530 = vmul.f32 %v3402, %v3498
    %v3531 = vmul.f32 %v3403, %v3499
    %v3532 = vmul.f32 %v3404, %v3500
    %v3533 = vmul.f32 %v3405, %v3501
    %v3534 = vmul.f32 %v3406, %v3502
    %v3535 = vmul.f32 %v3407, %v3503
    %v3536 = vmul.f32 %v3408, %v3504
    %v3537 = vmul.f32 %v3409, %v3505
    %v3538 = vmul.f32 %v3410, %v3506
    %v3539 = vmul.f32 %v3411, %v3507
    %v3540 = vmul.f32 %v3412, %v3508
    %v3541 = vmul.f32 %v3413, %v3509
    %v3542 = vmul.f32 %v3414, %v3510
    %v3543 = vmul.f32 %v3415, %v3511
    %v3544 = vmul.f32 %v3416, %v3512
    %v3545 = vmul.f32 %v3417, %v3513
    %v3546 = vmul.f32 %v3418, %v3514
    %v3547 = vmul.f32 %v3419, %v3515
    %v3548 = vmul.f32 %v3420, %v3516
    %v3549 = vmul.f32 %v3421, %v3517
    %v3550 = vmul.f32 %v3422, %v3518
    %v3551 = vmul.f32 %v3423, %v3519
    %v3552 = vmul.f32 %v3424, %v3520
    %v3553 = vld [vmem:[#allocation17] sm:$0xff]
    %v3554 = vld [vmem:[#allocation17 + $0x8] sm:$0xff]
    %v3555 = vld [vmem:[#allocation17 + $0x10] sm:$0xff]
    %v3556 = vld [vmem:[#allocation17 + $0x18] sm:$0xff]
    %v3557 = vld [vmem:[#allocation19] sm:$0x1]
    %v3559 = vlaneseq
    %v3560 = vshrl.u32 %v3559, 7
    %v3561 = vsub.s32 0, %v3560
    %v3562 = vrot.slane %v3557, %v3561
    %v3565 = vsel %vm1717, %v3521, 0
    %v3568 = vsel %vm1717, %v3522, 0
    %v3571 = vsel %vm1717, %v3523, 0
    %v3574 = vsel %vm1717, %v3524, 0
    %v3577 = vsel %vm1717, %v3525, 0
    %v3580 = vsel %vm1717, %v3526, 0
    %v3583 = vsel %vm1717, %v3527, 0
    %v3586 = vsel %vm1717, %v3528, 0
    %v3589 = vsel %vm1717, %v3529, 0
    %v3592 = vsel %vm1717, %v3530, 0
    %v3595 = vsel %vm1717, %v3531, 0
    %v3598 = vsel %vm1717, %v3532, 0
    %v3601 = vsel %vm1717, %v3533, 0
    %v3604 = vsel %vm1717, %v3534, 0
    %v3607 = vsel %vm1717, %v3535, 0
    %v3610 = vsel %vm1717, %v3536, 0
    %v3613 = vsel %vm1717, %v3537, 0
    %v3616 = vsel %vm1717, %v3538, 0
    %v3619 = vsel %vm1717, %v3539, 0
    %v3622 = vsel %vm1717, %v3540, 0
    %v3625 = vsel %vm1717, %v3541, 0
    %v3628 = vsel %vm1717, %v3542, 0
    %v3631 = vsel %vm1717, %v3543, 0
    %v3634 = vsel %vm1717, %v3544, 0
    %v3637 = vsel %vm1717, %v3545, 0
    %v3640 = vsel %vm1717, %v3546, 0
    %v3643 = vsel %vm1717, %v3547, 0
    %v3646 = vsel %vm1717, %v3548, 0
    %v3649 = vsel %vm1717, %v3549, 0
    %v3652 = vsel %vm1717, %v3550, 0
    %v3655 = vsel %vm1717, %v3551, 0
    %v3658 = vsel %vm1717, %v3552, 0
    %3660 = vmatprep.subr.mxu0 0.0
    %3661 = vmatpush1.msra.mxu0 %v3553
    %3662 = vmatprep.subr.mxu0 0.0
    %3663 = vmatpush1.msra.mxu0 %v3554
    %3664 = vmatprep.subr.mxu0 0.0
    %3665 = vmatpush1.msra.mxu0 %v3555
    %3666 = vmatprep.subr.mxu0 0.0
    %3667 = vmatpush1.msra.mxu0 %v3556
    %3668 = vmatprep.subr.mxu0 0.0
    %3669 = vmatpush1.msra.mxu0 0.0
    %3670 = vmatprep.subr.mxu0 0.0
    %3671 = vmatpush1.msra.mxu0 0.0
    %3672 = vmatprep.subr.mxu0 0.0
    %3673 = vmatpush1.msra.mxu0 0.0
    %3674 = vmatprep.subr.mxu0 0.0
    %3675 = vmatpush1.msra.mxu0 0.0
    %3676 = vmatprep.subr.mxu0 0.0
    %3677 = vmatpush1.msra.mxu0 0.0
    %3678 = vmatprep.subr.mxu0 0.0
    %3679 = vmatpush1.msra.mxu0 0.0
    %3680 = vmatprep.subr.mxu0 0.0
    %3681 = vmatpush1.msra.mxu0 0.0
    %3682 = vmatprep.subr.mxu0 0.0
    %3683 = vmatpush1.msra.mxu0 0.0
    %3684 = vmatprep.subr.mxu0 0.0
    %3685 = vmatpush1.msra.mxu0 0.0
    %3686 = vmatprep.subr.mxu0 0.0
    %3687 = vmatpush1.msra.mxu0 0.0
    %3688 = vmatprep.subr.mxu0 0.0
    %3689 = vmatpush1.msra.mxu0 0.0
    %3690 = vmatprep.subr.mxu0 0.0
    %3691 = vmatpush1.msra.mxu0 0.0
    %3692 = vmatprep.subr.mxu0 0.0
    %3693 = vmatpush1.msra.mxu0 0.0
    %3694 = vmatprep.subr.mxu0 0.0
    %3695 = vmatpush1.msra.mxu0 0.0
    %3696 = vmatprep.subr.mxu0 0.0
    %3697 = vmatpush1.msra.mxu0 0.0
    %3698 = vmatprep.subr.mxu0 0.0
    %3699 = vmatpush1.msra.mxu0 0.0
    %3700 = vmatprep.subr.mxu0 0.0
    %3701 = vmatpush1.msra.mxu0 0.0
    %3702 = vmatprep.subr.mxu0 0.0
    %3703 = vmatpush1.msra.mxu0 0.0
    %3704 = vmatprep.subr.mxu0 0.0
    %3705 = vmatpush1.msra.mxu0 0.0
    %3706 = vmatprep.subr.mxu0 0.0
    %3707 = vmatpush1.msra.mxu0 0.0
    %3708 = vmatprep.subr.mxu0 0.0
    %3709 = vmatpush1.msra.mxu0 0.0
    %3710 = vmatprep.subr.mxu0 0.0
    %3711 = vmatpush1.msra.mxu0 0.0
    %3712 = vmatprep.subr.mxu0 0.0
    %3713 = vmatpush1.msra.mxu0 0.0
    %3714 = vmatprep.subr.mxu0 0.0
    %3715 = vmatpush1.msra.mxu0 0.0
    %3716 = vmatprep.subr.mxu0 0.0
    %3717 = vmatpush1.msra.mxu0 0.0
    %3718 = vmatprep.subr.mxu0 0.0
    %3719 = vmatpush1.msra.mxu0 0.0
    %3720 = vmatprep.subr.mxu0 0.0
    %3721 = vmatpush1.msra.mxu0 0.0
    %3722 = vmatprep.subr.mxu0 0.0
    %3723 = vmatpush1.msra.mxu0 0.0
    %3724 = vmatprep.mubr.f32.mxu0 0.0
    %3725 = vmatmul.mubr.f32.gmra.mrb[0].mxu0 %v3565
    %v3726 = vpop.f32.mrb[0].mxu0
    %v3727 = vadd.f32 %v3562, %v3726
    %v3728 = vpop.f32.mrb[0].mxu0
    %3729 = vmatprep.mubr.f32.mxu0 0.0
    %3730 = vmatmul.mubr.f32.gmra.mrb[0].mxu0 %v3568
    %v3731 = vpop.f32.mrb[0].mxu0
    %v3732 = vadd.f32 %v3562, %v3731
    %v3733 = vpop.f32.mrb[0].mxu0
    %3734 = vmatprep.mubr.f32.mxu0 0.0
    %3735 = vmatmul.mubr.f32.gmra.mrb[0].mxu0 %v3571
    %v3736 = vpop.f32.mrb[0].mxu0
    %v3737 = vadd.f32 %v3562, %v3736
    %v3738 = vpop.f32.mrb[0].mxu0
    %3739 = vmatprep.mubr.f32.mxu0 0.0
    %3740 = vmatmul.mubr.f32.gmra.mrb[0].mxu0 %v3574
    %v3741 = vpop.f32.mrb[0].mxu0
    %v3742 = vadd.f32 %v3562, %v3741
    %v3743 = vpop.f32.mrb[0].mxu0
    %3744 = vmatprep.mubr.f32.mxu0 0.0
    %3745 = vmatmul.mubr.f32.gmra.mrb[0].mxu0 %v3577
    %v3746 = vpop.f32.mrb[0].mxu0
    %v3747 = vadd.f32 %v3562, %v3746
    %v3748 = vpop.f32.mrb[0].mxu0
    %3749 = vmatprep.mubr.f32.mxu0 0.0
    %3750 = vmatmul.mubr.f32.gmra.mrb[0].mxu0 %v3580
    %v3751 = vpop.f32.mrb[0].mxu0
    %v3752 = vadd.f32 %v3562, %v3751
    %v3753 = vpop.f32.mrb[0].mxu0
    %3754 = vmatprep.mubr.f32.mxu0 0.0
    %3755 = vmatmul.mubr.f32.gmra.mrb[0].mxu0 %v3583
    %v3756 = vpop.f32.mrb[0].mxu0
    %v3757 = vadd.f32 %v3562, %v3756
    %v3758 = vpop.f32.mrb[0].mxu0
    %3759 = vmatprep.mubr.f32.mxu0 0.0
    %3760 = vmatmul.mubr.f32.gmra.mrb[0].mxu0 %v3586
    %v3761 = vpop.f32.mrb[0].mxu0
    %v3762 = vadd.f32 %v3562, %v3761
    %v3763 = vpop.f32.mrb[0].mxu0
    %3764 = vmatprep.mubr.f32.mxu0 0.0
    %3765 = vmatmul.mubr.f32.gmra.mrb[0].mxu0 %v3589
    %v3766 = vpop.f32.mrb[0].mxu0
    %v3767 = vadd.f32 %v3562, %v3766
    %v3768 = vpop.f32.mrb[0].mxu0
    %3769 = vmatprep.mubr.f32.mxu0 0.0
    %3770 = vmatmul.mubr.f32.gmra.mrb[0].mxu0 %v3592
    %v3771 = vpop.f32.mrb[0].mxu0
    %v3772 = vadd.f32 %v3562, %v3771
    %v3773 = vpop.f32.mrb[0].mxu0
    %3774 = vmatprep.mubr.f32.mxu0 0.0
    %3775 = vmatmul.mubr.f32.gmra.mrb[0].mxu0 %v3595
    %v3776 = vpop.f32.mrb[0].mxu0
    %v3777 = vadd.f32 %v3562, %v3776
    %v3778 = vpop.f32.mrb[0].mxu0
    %3779 = vmatprep.mubr.f32.mxu0 0.0
    %3780 = vmatmul.mubr.f32.gmra.mrb[0].mxu0 %v3598
    %v3781 = vpop.f32.mrb[0].mxu0
    %v3782 = vadd.f32 %v3562, %v3781
    %v3783 = vpop.f32.mrb[0].mxu0
    %3784 = vmatprep.mubr.f32.mxu0 0.0
    %3785 = vmatmul.mubr.f32.gmra.mrb[0].mxu0 %v3601
    %v3786 = vpop.f32.mrb[0].mxu0
    %v3787 = vadd.f32 %v3562, %v3786
    %v3788 = vpop.f32.mrb[0].mxu0
    %3789 = vmatprep.mubr.f32.mxu0 0.0
    %3790 = vmatmul.mubr.f32.gmra.mrb[0].mxu0 %v3604
    %v3791 = vpop.f32.mrb[0].mxu0
    %v3792 = vadd.f32 %v3562, %v3791
    %v3793 = vpop.f32.mrb[0].mxu0
    %3794 = vmatprep.mubr.f32.mxu0 0.0
    %3795 = vmatmul.mubr.f32.gmra.mrb[0].mxu0 %v3607
    %v3796 = vpop.f32.mrb[0].mxu0
    %v3797 = vadd.f32 %v3562, %v3796
    %v3798 = vpop.f32.mrb[0].mxu0
    %3799 = vmatprep.mubr.f32.mxu0 0.0
    %3800 = vmatmul.mubr.f32.gmra.mrb[0].mxu0 %v3610
    %v3801 = vpop.f32.mrb[0].mxu0
    %v3802 = vadd.f32 %v3562, %v3801
    %v3803 = vpop.f32.mrb[0].mxu0
    %3804 = vmatprep.mubr.f32.mxu0 0.0
    %3805 = vmatmul.mubr.f32.gmra.mrb[0].mxu0 %v3613
    %v3806 = vpop.f32.mrb[0].mxu0
    %v3807 = vadd.f32 %v3562, %v3806
    %v3808 = vpop.f32.mrb[0].mxu0
    %3809 = vmatprep.mubr.f32.mxu0 0.0
    %3810 = vmatmul.mubr.f32.gmra.mrb[0].mxu0 %v3616
    %v3811 = vpop.f32.mrb[0].mxu0
    %v3812 = vadd.f32 %v3562, %v3811
    %v3813 = vpop.f32.mrb[0].mxu0
    %3814 = vmatprep.mubr.f32.mxu0 0.0
    %3815 = vmatmul.mubr.f32.gmra.mrb[0].mxu0 %v3619
    %v3816 = vpop.f32.mrb[0].mxu0
    %v3817 = vadd.f32 %v3562, %v3816
    %v3818 = vpop.f32.mrb[0].mxu0
    %3819 = vmatprep.mubr.f32.mxu0 0.0
    %3820 = vmatmul.mubr.f32.gmra.mrb[0].mxu0 %v3622
    %v3821 = vpop.f32.mrb[0].mxu0
    %v3822 = vadd.f32 %v3562, %v3821
    %v3823 = vpop.f32.mrb[0].mxu0
    %3824 = vmatprep.mubr.f32.mxu0 0.0
    %3825 = vmatmul.mubr.f32.gmra.mrb[0].mxu0 %v3625
    %v3826 = vpop.f32.mrb[0].mxu0
    %v3827 = vadd.f32 %v3562, %v3826
    %v3828 = vpop.f32.mrb[0].mxu0
    %3829 = vmatprep.mubr.f32.mxu0 0.0
    %3830 = vmatmul.mubr.f32.gmra.mrb[0].mxu0 %v3628
    %v3831 = vpop.f32.mrb[0].mxu0
    %v3832 = vadd.f32 %v3562, %v3831
    %v3833 = vpop.f32.mrb[0].mxu0
    %3834 = vmatprep.mubr.f32.mxu0 0.0
    %3835 = vmatmul.mubr.f32.gmra.mrb[0].mxu0 %v3631
    %v3836 = vpop.f32.mrb[0].mxu0
    %v3837 = vadd.f32 %v3562, %v3836
    %v3838 = vpop.f32.mrb[0].mxu0
    %3839 = vmatprep.mubr.f32.mxu0 0.0
    %3840 = vmatmul.mubr.f32.gmra.mrb[0].mxu0 %v3634
    %v3841 = vpop.f32.mrb[0].mxu0
    %v3842 = vadd.f32 %v3562, %v3841
    %v3843 = vpop.f32.mrb[0].mxu0
    %3844 = vmatprep.mubr.f32.mxu0 0.0
    %3845 = vmatmul.mubr.f32.gmra.mrb[0].mxu0 %v3637
    %v3846 = vpop.f32.mrb[0].mxu0
    %v3847 = vadd.f32 %v3562, %v3846
    %v3848 = vpop.f32.mrb[0].mxu0
    %3849 = vmatprep.mubr.f32.mxu0 0.0
    %3850 = vmatmul.mubr.f32.gmra.mrb[0].mxu0 %v3640
    %v3851 = vpop.f32.mrb[0].mxu0
    %v3852 = vadd.f32 %v3562, %v3851
    %v3853 = vpop.f32.mrb[0].mxu0
    %3854 = vmatprep.mubr.f32.mxu0 0.0
    %3855 = vmatmul.mubr.f32.gmra.mrb[0].mxu0 %v3643
    %v3856 = vpop.f32.mrb[0].mxu0
    %v3857 = vadd.f32 %v3562, %v3856
    %v3858 = vpop.f32.mrb[0].mxu0
    %3859 = vmatprep.mubr.f32.mxu0 0.0
    %3860 = vmatmul.mubr.f32.gmra.mrb[0].mxu0 %v3646
    %v3861 = vpop.f32.mrb[0].mxu0
    %v3862 = vadd.f32 %v3562, %v3861
    %v3863 = vpop.f32.mrb[0].mxu0
    %3864 = vmatprep.mubr.f32.mxu0 0.0
    %3865 = vmatmul.mubr.f32.gmra.mrb[0].mxu0 %v3649
    %v3866 = vpop.f32.mrb[0].mxu0
    %v3867 = vadd.f32 %v3562, %v3866
    %v3868 = vpop.f32.mrb[0].mxu0
    %3869 = vmatprep.mubr.f32.mxu0 0.0
    %3870 = vmatmul.mubr.f32.gmra.mrb[0].mxu0 %v3652
    %v3871 = vpop.f32.mrb[0].mxu0
    %v3872 = vadd.f32 %v3562, %v3871
    %v3873 = vpop.f32.mrb[0].mxu0
    %3874 = vmatprep.mubr.f32.mxu0 0.0
    %3875 = vmatmul.mubr.f32.gmra.mrb[0].mxu0 %v3655
    %v3876 = vpop.f32.mrb[0].mxu0
    %v3877 = vadd.f32 %v3562, %v3876
    %v3878 = vpop.f32.mrb[0].mxu0
    %3879 = vmatprep.mubr.f32.mxu0 0.0
    %3880 = vmatmul.mubr.f32.gmra.mrb[0].mxu0 %v3658
    %v3881 = vpop.f32.mrb[0].mxu0
    %v3882 = vadd.f32 %v3562, %v3881
    %v3883 = vpop.f32.mrb[0].mxu0
    %3884 = vdwg.mxu0
    %v3885 = vadd.f32 %v2551, %v3727
    %v3886 = vadd.f32 %v2552, %v3732
    %v3887 = vadd.f32 %v2553, %v3737
    %v3888 = vadd.f32 %v2554, %v3742
    %v3889 = vadd.f32 %v2555, %v3747
    %v3890 = vadd.f32 %v2556, %v3752
    %v3891 = vadd.f32 %v2557, %v3757
    %v3892 = vadd.f32 %v2558, %v3762
    %v3893 = vadd.f32 %v2559, %v3767
    %v3894 = vadd.f32 %v2560, %v3772
    %v3895 = vadd.f32 %v2561, %v3777
    %v3896 = vadd.f32 %v2562, %v3782
    %v3897 = vadd.f32 %v2563, %v3787
    %v3898 = vadd.f32 %v2564, %v3792
    %v3899 = vadd.f32 %v2565, %v3797
    %v3900 = vadd.f32 %v2566, %v3802
    %v3901 = vadd.f32 %v2567, %v3807
    %v3902 = vadd.f32 %v2568, %v3812
    %v3903 = vadd.f32 %v2569, %v3817
    %v3904 = vadd.f32 %v2570, %v3822
    %v3905 = vadd.f32 %v2571, %v3827
    %v3906 = vadd.f32 %v2572, %v3832
    %v3907 = vadd.f32 %v2573, %v3837
    %v3908 = vadd.f32 %v2574, %v3842
    %v3909 = vadd.f32 %v2575, %v3847
    %v3910 = vadd.f32 %v2576, %v3852
    %v3911 = vadd.f32 %v2577, %v3857
    %v3912 = vadd.f32 %v2578, %v3862
    %v3913 = vadd.f32 %v2579, %v3867
    %v3914 = vadd.f32 %v2580, %v3872
    %v3915 = vadd.f32 %v2581, %v3877
    %v3916 = vadd.f32 %v2582, %v3882
    %3917 = vst.msk [vmem:[#allocation20] sm:$0xff] %vm210, %v3885
    %3918 = vst.msk [vmem:[#allocation20 + $0x8] sm:$0xff] %vm210, %v3886
    %3919 = vst.msk [vmem:[#allocation20 + $0x10] sm:$0xff] %vm210, %v3887
    %3920 = vst.msk [vmem:[#allocation20 + $0x18] sm:$0xff] %vm210, %v3888
    %3921 = vst.msk [vmem:[#allocation20 + $0x20] sm:$0xff] %vm210, %v3889
    %3922 = vst.msk [vmem:[#allocation20 + $0x28] sm:$0xff] %vm210, %v3890
    %3923 = vst.msk [vmem:[#allocation20 + $0x30] sm:$0xff] %vm210, %v3891
    %3924 = vst.msk [vmem:[#allocation20 + $0x38] sm:$0xff] %vm210, %v3892
    %3925 = vst.msk [vmem:[#allocation20 + $0x40] sm:$0xff] %vm210, %v3893
    %3926 = vst.msk [vmem:[#allocation20 + $0x48] sm:$0xff] %vm210, %v3894
    %3927 = vst.msk [vmem:[#allocation20 + $0x50] sm:$0xff] %vm210, %v3895
    %3928 = vst.msk [vmem:[#allocation20 + $0x58] sm:$0xff] %vm210, %v3896
    %3929 = vst.msk [vmem:[#allocation20 + $0x60] sm:$0xff] %vm210, %v3897
    %3930 = vst.msk [vmem:[#allocation20 + $0x68] sm:$0xff] %vm210, %v3898
    %3931 = vst.msk [vmem:[#allocation20 + $0x70] sm:$0xff] %vm210, %v3899
    %3932 = vst.msk [vmem:[#allocation20 + $0x78] sm:$0xff] %vm210, %v3900
    %3933 = vst.msk [vmem:[#allocation20 + $0x80] sm:$0xff] %vm210, %v3901
    %3934 = vst.msk [vmem:[#allocation20 + $0x88] sm:$0xff] %vm210, %v3902
    %3935 = vst.msk [vmem:[#allocation20 + $0x90] sm:$0xff] %vm210, %v3903
    %3936 = vst.msk [vmem:[#allocation20 + $0x98] sm:$0xff] %vm210, %v3904
    %3937 = vst.msk [vmem:[#allocation20 + $0xa0] sm:$0xff] %vm210, %v3905
    %3938 = vst.msk [vmem:[#allocation20 + $0xa8] sm:$0xff] %vm210, %v3906
    %3939 = vst.msk [vmem:[#allocation20 + $0xb0] sm:$0xff] %vm210, %v3907
    %3940 = vst.msk [vmem:[#allocation20 + $0xb8] sm:$0xff] %vm210, %v3908
    %3941 = vst.msk [vmem:[#allocation20 + $0xc0] sm:$0xff] %vm210, %v3909
    %3942 = vst.msk [vmem:[#allocation20 + $0xc8] sm:$0xff] %vm210, %v3910
    %3943 = vst.msk [vmem:[#allocation20 + $0xd0] sm:$0xff] %vm210, %v3911
    %3944 = vst.msk [vmem:[#allocation20 + $0xd8] sm:$0xff] %vm210, %v3912
    %3945 = vst.msk [vmem:[#allocation20 + $0xe0] sm:$0xff] %vm210, %v3913
    %3946 = vst.msk [vmem:[#allocation20 + $0xe8] sm:$0xff] %vm210, %v3914
    %3947 = vst.msk [vmem:[#allocation20 + $0xf0] sm:$0xff] %vm210, %v3915
    %3948 = vst.msk [vmem:[#allocation20 + $0xf8] sm:$0xff] %vm210, %v3916
    // Predicated region
    $region90: #{tpu_custom_call.1} parent=1 // pred_check
      _
    $region91: #{tpu_custom_call.1} parent=1 // pred_check_branch
      %3950 = sbr.rel (0) target = $region93
    $region92: #{tpu_custom_call.1} parent=1 // pred_region
      %s3952 = ssub.s32 4096, 4096
      %3953 = vsyncadd [#allocation4], %s3952
      %s3954 = sshll.u32 [#allocation20], 4
      %s3955 = int_to_ptr.vmem [resolvable:$true] %s3954
      %3960 = dma.vmem_to_hbm [thread:$0]  %s3955, 4096, %s11, [#allocation4], 128, 128, 8
    $region93: #{tpu_custom_call.1} parent=1 // pred_fallthru
      _
    // Predicated region
    $region94: #{tpu_custom_call.1} parent=1 // pred_check
      _
    $region95: #{tpu_custom_call.1} parent=1 // pred_check_branch
      %3962 = sbr.rel (0) target = $region97
    $region96: #{tpu_custom_call.1} parent=1 // pred_region
      %3963 = dma.done [#allocation4], 4096
    $region97: #{tpu_custom_call.1} parent=1 // pred_fallthru
      _
    %3964 = vsyncpa [#allocation3], 1
    %3965 = vsyncpa [#allocation6], 1
    %3966 = vsyncpa [#allocation9], 1
    %3967 = vsyncpa [#allocation12], 1
    %3968 = vsyncpa [#allocation15], 1
    %3969 = vsyncpa [#allocation18], 1
    %3970 = vsyncpa [#allocation4], 1

</llo_original>
